<compile_context>
chip_gen: v7x
topology: tpu7x:2x2x1
jax: 0.10.0
libtpu: 0.0.40
codegen_flags: <defaults>
</compile_context>

<pallas_src>
import jax
import jax.numpy as jnp
from jax import lax
from jax.experimental import pallas as pl
from jax.experimental.pallas import tpu as pltpu

LANE = 128


def _round_up(x, m):
    return (x + m - 1) // m * m


def basic_block_kernel(xs_ref, w1_ref, b1_ref, w2_ref, b2_ref, out_ref, padbuf_ref):
    # xs_ref:     (RS+4, W+2, Cp) f32   input row-strip, 2-row / 1-col zero halo
    # w*_ref:     (3, 3*Cp, Cp)   bf16  [kw, kh*Cp + cin, cout], BN scale folded
    # b*_ref:     (1, Cp)         f32   BN shift
    # out_ref:    (RS, W, Cp)     f32
    # padbuf_ref: (RS+2, PW, Cp)  f32   conv2 input scratch (y1 + zero padding)
    Hs, Wp, Cp = xs_ref.shape
    RS = Hs - 4                      # interior rows produced by this strip
    W = Wp - 2
    H1 = RS + 2                      # conv1 output rows (strip + 1-row halo each side)
    OFF = 8                          # sublane-aligned interior column offset in padbuf

    s = pl.program_id(1)
    n_strips = pl.num_programs(1)

    def conv3x3(read_tap, n_out_rows, w_ref):
        # read_tap(kw) -> (n_in_rows*W, Cp) bf16 flat slab shifted by kw.
        acc = None
        for kw in range(3):
            flat = read_tap(kw)
            # K-concatenate the 3 kh taps (row-shifted views of the same slab)
            # so the MXU accumulates over K = 3*Cp in a single dot per kw.
            lhs = jnp.concatenate(
                [flat[kh * W:(kh + n_out_rows) * W] for kh in range(3)], axis=-1)
            part = jnp.dot(lhs, w_ref[kw], preferred_element_type=jnp.float32)
            acc = part if acc is None else acc + part
        return acc                                   # (n_out_rows*W, Cp) f32

    # ---- conv1 (BN1 scale folded into w1) ----
    def tap1(kw):
        return xs_ref[:, kw:kw + W, :].astype(jnp.bfloat16).reshape(Hs * W, Cp)

    y1 = jnp.maximum(conv3x3(tap1, H1, w1_ref) + b1_ref[...], 0.0)   # bn1 shift + relu

    # ---- stage y1 (+ conv2 zero padding) into the scratch buffer ----
    zcol = jnp.zeros((H1, 1, Cp), jnp.float32)
    padbuf_ref[:, OFF - 1:OFF, :] = zcol                      # left zero-pad column
    padbuf_ref[:, OFF + W:OFF + W + 1, :] = zcol              # right zero-pad column
    padbuf_ref[:, OFF:OFF + W, :] = y1.reshape(H1, W, Cp)     # aligned interior store

    zrow = jnp.zeros((1, W, Cp), jnp.float32)

    @pl.when(s == 0)                                          # top image border
    def _():
        padbuf_ref[0:1, OFF:OFF + W, :] = zrow

    @pl.when(s == n_strips - 1)                               # bottom image border
    def _():
        padbuf_ref[H1 - 1:H1, OFF:OFF + W, :] = zrow

    # ---- conv2 (BN2 scale folded into w2) ----
    def tap2(kw):
        return padbuf_ref[:, OFF - 1 + kw:OFF - 1 + kw + W, :].astype(
            jnp.bfloat16).reshape(H1 * W, Cp)

    y2 = conv3x3(tap2, RS, w2_ref)

    # ---- bn2 shift + residual (read from strip interior) + relu ----
    ident = xs_ref[2:RS + 2, 1:W + 1, :].reshape(RS * W, Cp)
    out = jnp.maximum(y2 + b2_ref[...] + ident, 0.0)
    out_ref[...] = out.reshape(RS, W, Cp)


def _fold_bn(gamma, beta, rmean, rvar, eps=1e-5):
    inv = gamma / jnp.sqrt(rvar + eps)
    return inv, beta - rmean * inv


def _pick_vmem_limit():
    # v5e/v6e: 128 MiB physical VMEM, v7x: 64 MiB -- budget from the chip.
    try:
        cap = int(getattr(pltpu.get_tpu_info(), "vmem_capacity_bytes", 0))
    except Exception:
        cap = 0
    if cap < 32 * 1024 * 1024 or cap > 512 * 1024 * 1024:
        cap = 64 * 1024 * 1024          # conservative (v7x-sized) fallback
    return min(cap * 3 // 4, 100 * 1024 * 1024)


@jax.jit
def basic_block(x_nchw, w1_oihw, g1, be1, rm1, rv1,
                w2_oihw, g2, be2, rm2, rv2):
    """BasicBlock forward (stride=1, downsample=None), eval-mode BN. NCHW in/out."""
    x = jnp.transpose(x_nchw, (0, 2, 3, 1)).astype(jnp.float32)   # -> NHWC
    N, H, W, Cin = x.shape
    Cout = w1_oihw.shape[0]
    if Cin != Cout:
        raise ValueError("downsample=None requires in_channel == out_channel")
    Cp = max(_round_up(Cout, LANE), LANE)         # lane-dense channel count

    # Row-strip tiling of H so the grid has enough steps for DMA/compute overlap
    # and megacore sharding even at small batch; each strip carries a 2-row halo.
    RS = 8 if (H % 8 == 0 and H > 8) else H
    nS = H // RS
    PW = _round_up(W + 9, 8)                      # padbuf width (interior at col 8)

    s1, b1 = _fold_bn(g1, be1, rm1, rv1)
    s2, b2 = _fold_bn(g2, be2, rm2, rv2)

    # HWIO weights with BN scale folded into the output channels, zero-padded to
    # Cp lanes, repacked as [kw, kh*Cp + cin, cout] and cast to bf16 (MXU-native).
    w1 = jnp.transpose(w1_oihw, (2, 3, 1, 0)).astype(jnp.float32) * s1
    w2 = jnp.transpose(w2_oihw, (2, 3, 1, 0)).astype(jnp.float32) * s2
    w1 = jnp.pad(w1, ((0, 0), (0, 0), (0, Cp - Cin), (0, Cp - Cout)))
    w2 = jnp.pad(w2, ((0, 0), (0, 0), (0, Cp - Cout), (0, Cp - Cout)))
    w1k = jnp.transpose(w1, (1, 0, 2, 3)).reshape(3, 3 * Cp, Cp).astype(jnp.bfloat16)
    w2k = jnp.transpose(w2, (1, 0, 2, 3)).reshape(3, 3 * Cp, Cp).astype(jnp.bfloat16)
    b1p = jnp.pad(b1.astype(jnp.float32), (0, Cp - Cout)).reshape(1, Cp)
    b2p = jnp.pad(b2.astype(jnp.float32), (0, Cp - Cout)).reshape(1, Cp)

    # Zero-pad spatially (2 rows / 1 col each side) + channel pad, then cut into
    # overlapping row strips (RS interior rows + 2-row halo each side).
    xpad = jnp.pad(x, ((0, 0), (2, 2), (1, 1), (0, Cp - Cin)))        # (N,H+4,W+2,Cp)
    ridx = jnp.arange(nS)[:, None] * RS + jnp.arange(RS + 4)[None, :]
    x_strips = xpad[:, ridx]                                          # (N,nS,RS+4,W+2,Cp)
    # TODO(synk): the strip gather duplicates 4 halo rows per strip in HBM; a
    # halo-aware windowed BlockSpec would avoid the copy.

    # Advisory cost estimate (true, unpadded channel counts).
    flops = 2 * 9 * N * H * W * (Cin * Cout + Cout * Cout)
    bytes_accessed = (4 * x_strips.size + 4 * N * H * W * Cp
                      + 2 * (w1k.size + w2k.size) + 4 * (b1p.size + b2p.size))

    out = pl.pallas_call(
        basic_block_kernel,
        out_shape=jax.ShapeDtypeStruct((N, H, W, Cp), jnp.float32),
        grid=(N, nS),
        in_specs=[
            pl.BlockSpec((None, None, RS + 4, W + 2, Cp),
                         lambda n, s: (n, s, 0, 0, 0)),               # x strip
            pl.BlockSpec((3, 3 * Cp, Cp), lambda n, s: (0, 0, 0)),    # w1 (bf16)
            pl.BlockSpec((1, Cp), lambda n, s: (0, 0)),               # b1
            pl.BlockSpec((3, 3 * Cp, Cp), lambda n, s: (0, 0, 0)),    # w2 (bf16)
            pl.BlockSpec((1, Cp), lambda n, s: (0, 0)),               # b2
        ],
        out_specs=pl.BlockSpec((None, RS, W, Cp), lambda n, s: (n, s, 0, 0)),
        scratch_shapes=[pltpu.VMEM((RS + 2, PW, Cp), jnp.float32)],   # y1 staging
        compiler_params=pltpu.CompilerParams(
            dimension_semantics=("parallel", "parallel"),
            vmem_limit_bytes=_pick_vmem_limit()),
        cost_estimate=pl.CostEstimate(
            flops=flops, transcendentals=0, bytes_accessed=bytes_accessed),
    )(x_strips, w1k, b1p, w2k, b2p)

    out = out[..., :Cout]
    return jnp.transpose(out, (0, 3, 1, 2))                           # -> NCHW


def _reference(x_nchw, w1_oihw, g1, be1, rm1, rv1, w2_oihw, g2, be2, rm2, rv2):
    """Pure-JAX reference using lax conv (eval-mode BN), NCHW in/out."""
    x = jnp.transpose(x_nchw, (0, 2, 3, 1))
    dn = lax.conv_dimension_numbers(x.shape, (3, 3, 1, 1), ("NHWC", "HWIO", "NHWC"))
    w1 = jnp.transpose(w1_oihw, (2, 3, 1, 0))
    w2 = jnp.transpose(w2_oihw, (2, 3, 1, 0))
    s1, b1 = _fold_bn(g1, be1, rm1, rv1)
    s2, b2 = _fold_bn(g2, be2, rm2, rv2)
    o = lax.conv_general_dilated(x, w1, (1, 1), "SAME", dimension_numbers=dn)
    o = jnp.maximum(o * s1 + b1, 0.0)
    o = lax.conv_general_dilated(o, w2, (1, 1), "SAME", dimension_numbers=dn)
    o = o * s2 + b2
    o = jnp.maximum(o + x, 0.0)
    return jnp.transpose(o, (0, 3, 1, 2))


if __name__ == "__main__":
    key = jax.random.PRNGKey(0)
    N, C, H, W = 2, 4, 16, 16           # in_channel == out_channel, stride=1
    ks = jax.random.split(key, 11)

    x = jax.random.normal(ks[0], (N, C, H, W), jnp.float32)
    w1 = 0.1 * jax.random.normal(ks[1], (C, C, 3, 3), jnp.float32)   # OIHW
    w2 = 0.1 * jax.random.normal(ks[2], (C, C, 3, 3), jnp.float32)
    g1 = 1.0 + 0.1 * jax.random.normal(ks[3], (C,), jnp.float32)
    be1 = 0.1 * jax.random.normal(ks[4], (C,), jnp.float32)
    rm1 = 0.1 * jax.random.normal(ks[5], (C,), jnp.float32)
    rv1 = jnp.abs(jax.random.normal(ks[6], (C,), jnp.float32)) + 0.5
    g2 = 1.0 + 0.1 * jax.random.normal(ks[7], (C,), jnp.float32)
    be2 = 0.1 * jax.random.normal(ks[8], (C,), jnp.float32)
    rm2 = 0.1 * jax.random.normal(ks[9], (C,), jnp.float32)
    rv2 = jnp.abs(jax.random.normal(ks[10], (C,), jnp.float32)) + 0.5

    out = basic_block(x, w1, g1, be1, rm1, rv1, w2, g2, be2, rm2, rv2)
    out = jax.block_until_ready(out)

    ref = _reference(x, w1, g1, be1, rm1, rv1, w2, g2, be2, rm2, rv2)
    assert out.shape == (N, C, H, W)
    err = float(jnp.max(jnp.abs(out - ref)))
    # bf16 MXU feed (f32 accumulate): tolerance loosened per the perf review.
    assert err < 2e-2, f"mismatch vs JAX reference: max abs err = {err}"

    print("KERNEL_OK")
</pallas_src>

<mosaic_0001>
module attributes {stable_mosaic.version = 11 : i64} {
  func.func @basic_block_kernel(%arg0: i32, %arg1: i32, %arg2: memref<1x1x12x18x128xf32, #tpu.memory_space<vmem>>, %arg3: memref<3x384x128xbf16, #tpu.memory_space<vmem>>, %arg4: memref<1x128xf32, #tpu.memory_space<vmem>>, %arg5: memref<3x384x128xbf16, #tpu.memory_space<vmem>>, %arg6: memref<1x128xf32, #tpu.memory_space<vmem>>, %arg7: memref<1x8x16x128xf32, #tpu.memory_space<vmem>>, %arg8: memref<10x32x128xf32, #tpu.memory_space<vmem>>) attributes {dimension_semantics = [#tpu.dimension_semantics<parallel>, #tpu.dimension_semantics<parallel>], iteration_bounds = array<i64: 2, 2>, scalar_prefetch = 0 : i64, scratch_operands = 1 : i64, tpu.core_type = #tpu.core_type<tc>, window_params = [{transform_indices = @transform_0, window_bounds = array<i64: 1, 1, 12, 18, 128>}, {pipeline_mode = #tpu.pipeline_mode<synchronous>, transform_indices = @transform_1, window_bounds = array<i64: 3, 384, 128>}, {pipeline_mode = #tpu.pipeline_mode<synchronous>, transform_indices = @transform_2, window_bounds = array<i64: 1, 128>}, {pipeline_mode = #tpu.pipeline_mode<synchronous>, transform_indices = @transform_3, window_bounds = array<i64: 3, 384, 128>}, {pipeline_mode = #tpu.pipeline_mode<synchronous>, transform_indices = @transform_4, window_bounds = array<i64: 1, 128>}, {transform_indices = @transform_5, window_bounds = array<i64: 1, 8, 16, 128>}]} {
    %c0 = arith.constant 0 : index
    %c0_0 = arith.constant 0 : index
    %c0_1 = arith.constant 0 : index
    %c0_2 = arith.constant 0 : index
    %c0_3 = arith.constant 0 : index
    %0 = vector.load %arg2[%c0, %c0_0, %c0_1, %c0_2, %c0_3] : memref<1x1x12x18x128xf32, #tpu.memory_space<vmem>>, vector<1x1x12x16x128xf32>
    %1 = vector.shape_cast %0 : vector<1x1x12x16x128xf32> to vector<12x16x128xf32>
    %2 = arith.truncf %1 : vector<12x16x128xf32> to vector<12x16x128xbf16>
    %3 = vector.shape_cast %2 : vector<12x16x128xbf16> to vector<192x128xbf16>
    %4 = vector.extract_strided_slice %3 {offsets = [0, 0], sizes = [160, 128], strides = [1, 1]} : vector<192x128xbf16> to vector<160x128xbf16>
    %5 = vector.extract_strided_slice %3 {offsets = [16, 0], sizes = [160, 128], strides = [1, 1]} : vector<192x128xbf16> to vector<160x128xbf16>
    %6 = vector.extract_strided_slice %3 {offsets = [32, 0], sizes = [160, 128], strides = [1, 1]} : vector<192x128xbf16> to vector<160x128xbf16>
    %7 = tpu.concatenate %4, %5, %6 in 1 : vector<160x128xbf16>, vector<160x128xbf16>, vector<160x128xbf16> -> vector<160x384xbf16>
    %c0_4 = arith.constant 0 : index
    %c0_5 = arith.constant 0 : index
    %c0_6 = arith.constant 0 : index
    %8 = vector.load %arg3[%c0_4, %c0_5, %c0_6] : memref<3x384x128xbf16, #tpu.memory_space<vmem>>, vector<1x384x128xbf16>
    %9 = vector.shape_cast %8 : vector<1x384x128xbf16> to vector<384x128xbf16>
    %cst = arith.constant dense<0.000000e+00> : vector<160x128xf32>
    %10 = tpu.matmul %7, %9, %cst {dimension_numbers = #tpu.dot_dimension_numbers<[1], [0], [0], [1], [0, 0, 1, 1], [], []>} : vector<160x384xbf16>, vector<384x128xbf16>, vector<160x128xf32> -> vector<160x128xf32>
    %c0_7 = arith.constant 0 : index
    %c0_8 = arith.constant 0 : index
    %c0_9 = arith.constant 0 : index
    %c1 = arith.constant 1 : index
    %c0_10 = arith.constant 0 : index
    %11 = vector.load %arg2[%c0_7, %c0_8, %c0_9, %c1, %c0_10] : memref<1x1x12x18x128xf32, #tpu.memory_space<vmem>>, vector<1x1x12x16x128xf32>
    %12 = vector.shape_cast %11 : vector<1x1x12x16x128xf32> to vector<12x16x128xf32>
    %13 = arith.truncf %12 : vector<12x16x128xf32> to vector<12x16x128xbf16>
    %14 = vector.shape_cast %13 : vector<12x16x128xbf16> to vector<192x128xbf16>
    %15 = vector.extract_strided_slice %14 {offsets = [0, 0], sizes = [160, 128], strides = [1, 1]} : vector<192x128xbf16> to vector<160x128xbf16>
    %16 = vector.extract_strided_slice %14 {offsets = [16, 0], sizes = [160, 128], strides = [1, 1]} : vector<192x128xbf16> to vector<160x128xbf16>
    %17 = vector.extract_strided_slice %14 {offsets = [32, 0], sizes = [160, 128], strides = [1, 1]} : vector<192x128xbf16> to vector<160x128xbf16>
    %18 = tpu.concatenate %15, %16, %17 in 1 : vector<160x128xbf16>, vector<160x128xbf16>, vector<160x128xbf16> -> vector<160x384xbf16>
    %c1_11 = arith.constant 1 : index
    %c0_12 = arith.constant 0 : index
    %c0_13 = arith.constant 0 : index
    %19 = vector.load %arg3[%c1_11, %c0_12, %c0_13] : memref<3x384x128xbf16, #tpu.memory_space<vmem>>, vector<1x384x128xbf16>
    %20 = vector.shape_cast %19 : vector<1x384x128xbf16> to vector<384x128xbf16>
    %cst_14 = arith.constant dense<0.000000e+00> : vector<160x128xf32>
    %21 = tpu.matmul %18, %20, %cst_14 {dimension_numbers = #tpu.dot_dimension_numbers<[1], [0], [0], [1], [0, 0, 1, 1], [], []>} : vector<160x384xbf16>, vector<384x128xbf16>, vector<160x128xf32> -> vector<160x128xf32>
    %22 = arith.addf %10, %21 : vector<160x128xf32>
    %c0_15 = arith.constant 0 : index
    %c0_16 = arith.constant 0 : index
    %c0_17 = arith.constant 0 : index
    %c2 = arith.constant 2 : index
    %c0_18 = arith.constant 0 : index
    %23 = vector.load %arg2[%c0_15, %c0_16, %c0_17, %c2, %c0_18] : memref<1x1x12x18x128xf32, #tpu.memory_space<vmem>>, vector<1x1x12x16x128xf32>
    %24 = vector.shape_cast %23 : vector<1x1x12x16x128xf32> to vector<12x16x128xf32>
    %25 = arith.truncf %24 : vector<12x16x128xf32> to vector<12x16x128xbf16>
    %26 = vector.shape_cast %25 : vector<12x16x128xbf16> to vector<192x128xbf16>
    %27 = vector.extract_strided_slice %26 {offsets = [0, 0], sizes = [160, 128], strides = [1, 1]} : vector<192x128xbf16> to vector<160x128xbf16>
    %28 = vector.extract_strided_slice %26 {offsets = [16, 0], sizes = [160, 128], strides = [1, 1]} : vector<192x128xbf16> to vector<160x128xbf16>
    %29 = vector.extract_strided_slice %26 {offsets = [32, 0], sizes = [160, 128], strides = [1, 1]} : vector<192x128xbf16> to vector<160x128xbf16>
    %30 = tpu.concatenate %27, %28, %29 in 1 : vector<160x128xbf16>, vector<160x128xbf16>, vector<160x128xbf16> -> vector<160x384xbf16>
    %c2_19 = arith.constant 2 : index
    %c0_20 = arith.constant 0 : index
    %c0_21 = arith.constant 0 : index
    %31 = vector.load %arg3[%c2_19, %c0_20, %c0_21] : memref<3x384x128xbf16, #tpu.memory_space<vmem>>, vector<1x384x128xbf16>
    %32 = vector.shape_cast %31 : vector<1x384x128xbf16> to vector<384x128xbf16>
    %cst_22 = arith.constant dense<0.000000e+00> : vector<160x128xf32>
    %33 = tpu.matmul %30, %32, %cst_22 {dimension_numbers = #tpu.dot_dimension_numbers<[1], [0], [0], [1], [0, 0, 1, 1], [], []>} : vector<160x384xbf16>, vector<384x128xbf16>, vector<160x128xf32> -> vector<160x128xf32>
    %34 = arith.addf %22, %33 : vector<160x128xf32>
    %c0_23 = arith.constant 0 : index
    %c0_24 = arith.constant 0 : index
    %35 = vector.load %arg4[%c0_23, %c0_24] : memref<1x128xf32, #tpu.memory_space<vmem>>, vector<1x128xf32>
    %36 = vector.broadcast %35 : vector<1x128xf32> to vector<160x128xf32>
    %37 = arith.addf %34, %36 : vector<160x128xf32>
    %cst_25 = arith.constant 0.000000e+00 : f32
    %38 = vector.broadcast %cst_25 : f32 to vector<160x128xf32>
    %39 = arith.maximumf %37, %38 : vector<160x128xf32>
    %cst_26 = arith.constant 0.000000e+00 : f32
    %40 = vector.broadcast %cst_26 : f32 to vector<10x1x128xf32>
    %c0_27 = arith.constant 0 : index
    %c7 = arith.constant 7 : index
    %c0_28 = arith.constant 0 : index
    %41 = vector.load %arg8[%c0_27, %c7, %c0_28] : memref<10x32x128xf32, #tpu.memory_space<vmem>>, vector<10x1x128xf32>
    tpu.vector_store %arg8[%c0_27, %c7, %c0_28], %40 {strides = array<i32>} : memref<10x32x128xf32, #tpu.memory_space<vmem>>, vector<10x1x128xf32>,
    %c0_29 = arith.constant 0 : index
    %c24 = arith.constant 24 : index
    %c0_30 = arith.constant 0 : index
    %42 = vector.load %arg8[%c0_29, %c24, %c0_30] : memref<10x32x128xf32, #tpu.memory_space<vmem>>, vector<10x1x128xf32>
    tpu.vector_store %arg8[%c0_29, %c24, %c0_30], %40 {strides = array<i32>} : memref<10x32x128xf32, #tpu.memory_space<vmem>>, vector<10x1x128xf32>,
    %43 = vector.shape_cast %39 : vector<160x128xf32> to vector<10x16x128xf32>
    %c0_31 = arith.constant 0 : index
    %c8 = arith.constant 8 : index
    %c0_32 = arith.constant 0 : index
    %44 = vector.load %arg8[%c0_31, %c8, %c0_32] : memref<10x32x128xf32, #tpu.memory_space<vmem>>, vector<10x16x128xf32>
    tpu.vector_store %arg8[%c0_31, %c8, %c0_32], %43 {strides = array<i32>} : memref<10x32x128xf32, #tpu.memory_space<vmem>>, vector<10x16x128xf32>,
    %cst_33 = arith.constant 0.000000e+00 : f32
    %45 = vector.broadcast %cst_33 : f32 to vector<1x16x128xf32>
    %c0_i32 = arith.constant 0 : i32
    %46 = arith.cmpi eq, %arg1, %c0_i32 : i32
    %47 = arith.extui %46 : i1 to i32
    %c0_i32_34 = arith.constant 0 : i32
    %48 = arith.cmpi ne, %47, %c0_i32_34 : i32
    scf.if %48 {
      %c0_68 = arith.constant 0 : index
      %c8_69 = arith.constant 8 : index
      %c0_70 = arith.constant 0 : index
      %97 = vector.load %arg8[%c0_68, %c8_69, %c0_70] : memref<10x32x128xf32, #tpu.memory_space<vmem>>, vector<1x16x128xf32>
      tpu.vector_store %arg8[%c0_68, %c8_69, %c0_70], %45 {strides = array<i32>} : memref<10x32x128xf32, #tpu.memory_space<vmem>>, vector<1x16x128xf32>,
    } else {
    }
    %c1_i32 = arith.constant 1 : i32
    %49 = arith.cmpi eq, %arg1, %c1_i32 : i32
    %50 = arith.extui %49 : i1 to i32
    %c0_i32_35 = arith.constant 0 : i32
    %51 = arith.cmpi ne, %50, %c0_i32_35 : i32
    scf.if %51 {
      %c9_68 = arith.constant 9 : index
      %c8_69 = arith.constant 8 : index
      %c0_70 = arith.constant 0 : index
      %97 = vector.load %arg8[%c9_68, %c8_69, %c0_70] : memref<10x32x128xf32, #tpu.memory_space<vmem>>, vector<1x16x128xf32>
      tpu.vector_store %arg8[%c9_68, %c8_69, %c0_70], %45 {strides = array<i32>} : memref<10x32x128xf32, #tpu.memory_space<vmem>>, vector<1x16x128xf32>,
    } else {
    }
    %c0_36 = arith.constant 0 : index
    %c7_37 = arith.constant 7 : index
    %c0_38 = arith.constant 0 : index
    %52 = vector.load %arg8[%c0_36, %c7_37, %c0_38] : memref<10x32x128xf32, #tpu.memory_space<vmem>>, vector<10x16x128xf32>
    %53 = arith.truncf %52 : vector<10x16x128xf32> to vector<10x16x128xbf16>
    %54 = vector.shape_cast %53 : vector<10x16x128xbf16> to vector<160x128xbf16>
    %55 = vector.extract_strided_slice %54 {offsets = [0, 0], sizes = [128, 128], strides = [1, 1]} : vector<160x128xbf16> to vector<128x128xbf16>
    %56 = vector.extract_strided_slice %54 {offsets = [16, 0], sizes = [128, 128], strides = [1, 1]} : vector<160x128xbf16> to vector<128x128xbf16>
    %57 = vector.extract_strided_slice %54 {offsets = [32, 0], sizes = [128, 128], strides = [1, 1]} : vector<160x128xbf16> to vector<128x128xbf16>
    %58 = tpu.concatenate %55, %56, %57 in 1 : vector<128x128xbf16>, vector<128x128xbf16>, vector<128x128xbf16> -> vector<128x384xbf16>
    %c0_39 = arith.constant 0 : index
    %c0_40 = arith.constant 0 : index
    %c0_41 = arith.constant 0 : index
    %59 = vector.load %arg5[%c0_39, %c0_40, %c0_41] : memref<3x384x128xbf16, #tpu.memory_space<vmem>>, vector<1x384x128xbf16>
    %60 = vector.shape_cast %59 : vector<1x384x128xbf16> to vector<384x128xbf16>
    %cst_42 = arith.constant dense<0.000000e+00> : vector<128x128xf32>
    %61 = tpu.matmul %58, %60, %cst_42 {dimension_numbers = #tpu.dot_dimension_numbers<[1], [0], [0], [1], [0, 0, 1, 1], [], []>} : vector<128x384xbf16>, vector<384x128xbf16>, vector<128x128xf32> -> vector<128x128xf32>
    %c0_43 = arith.constant 0 : index
    %c8_44 = arith.constant 8 : index
    %c0_45 = arith.constant 0 : index
    %62 = vector.load %arg8[%c0_43, %c8_44, %c0_45] : memref<10x32x128xf32, #tpu.memory_space<vmem>>, vector<10x16x128xf32>
    %63 = arith.truncf %62 : vector<10x16x128xf32> to vector<10x16x128xbf16>
    %64 = vector.shape_cast %63 : vector<10x16x128xbf16> to vector<160x128xbf16>
    %65 = vector.extract_strided_slice %64 {offsets = [0, 0], sizes = [128, 128], strides = [1, 1]} : vector<160x128xbf16> to vector<128x128xbf16>
    %66 = vector.extract_strided_slice %64 {offsets = [16, 0], sizes = [128, 128], strides = [1, 1]} : vector<160x128xbf16> to vector<128x128xbf16>
    %67 = vector.extract_strided_slice %64 {offsets = [32, 0], sizes = [128, 128], strides = [1, 1]} : vector<160x128xbf16> to vector<128x128xbf16>
    %68 = tpu.concatenate %65, %66, %67 in 1 : vector<128x128xbf16>, vector<128x128xbf16>, vector<128x128xbf16> -> vector<128x384xbf16>
    %c1_46 = arith.constant 1 : index
    %c0_47 = arith.constant 0 : index
    %c0_48 = arith.constant 0 : index
    %69 = vector.load %arg5[%c1_46, %c0_47, %c0_48] : memref<3x384x128xbf16, #tpu.memory_space<vmem>>, vector<1x384x128xbf16>
    %70 = vector.shape_cast %69 : vector<1x384x128xbf16> to vector<384x128xbf16>
    %cst_49 = arith.constant dense<0.000000e+00> : vector<128x128xf32>
    %71 = tpu.matmul %68, %70, %cst_49 {dimension_numbers = #tpu.dot_dimension_numbers<[1], [0], [0], [1], [0, 0, 1, 1], [], []>} : vector<128x384xbf16>, vector<384x128xbf16>, vector<128x128xf32> -> vector<128x128xf32>
    %72 = arith.addf %61, %71 : vector<128x128xf32>
    %c0_50 = arith.constant 0 : index
    %c9 = arith.constant 9 : index
    %c0_51 = arith.constant 0 : index
    %73 = vector.load %arg8[%c0_50, %c9, %c0_51] : memref<10x32x128xf32, #tpu.memory_space<vmem>>, vector<10x16x128xf32>
    %74 = arith.truncf %73 : vector<10x16x128xf32> to vector<10x16x128xbf16>
    %75 = vector.shape_cast %74 : vector<10x16x128xbf16> to vector<160x128xbf16>
    %76 = vector.extract_strided_slice %75 {offsets = [0, 0], sizes = [128, 128], strides = [1, 1]} : vector<160x128xbf16> to vector<128x128xbf16>
    %77 = vector.extract_strided_slice %75 {offsets = [16, 0], sizes = [128, 128], strides = [1, 1]} : vector<160x128xbf16> to vector<128x128xbf16>
    %78 = vector.extract_strided_slice %75 {offsets = [32, 0], sizes = [128, 128], strides = [1, 1]} : vector<160x128xbf16> to vector<128x128xbf16>
    %79 = tpu.concatenate %76, %77, %78 in 1 : vector<128x128xbf16>, vector<128x128xbf16>, vector<128x128xbf16> -> vector<128x384xbf16>
    %c2_52 = arith.constant 2 : index
    %c0_53 = arith.constant 0 : index
    %c0_54 = arith.constant 0 : index
    %80 = vector.load %arg5[%c2_52, %c0_53, %c0_54] : memref<3x384x128xbf16, #tpu.memory_space<vmem>>, vector<1x384x128xbf16>
    %81 = vector.shape_cast %80 : vector<1x384x128xbf16> to vector<384x128xbf16>
    %cst_55 = arith.constant dense<0.000000e+00> : vector<128x128xf32>
    %82 = tpu.matmul %79, %81, %cst_55 {dimension_numbers = #tpu.dot_dimension_numbers<[1], [0], [0], [1], [0, 0, 1, 1], [], []>} : vector<128x384xbf16>, vector<384x128xbf16>, vector<128x128xf32> -> vector<128x128xf32>
    %83 = arith.addf %72, %82 : vector<128x128xf32>
    %c0_56 = arith.constant 0 : index
    %c0_57 = arith.constant 0 : index
    %c2_58 = arith.constant 2 : index
    %c1_59 = arith.constant 1 : index
    %c0_60 = arith.constant 0 : index
    %84 = vector.load %arg2[%c0_56, %c0_57, %c2_58, %c1_59, %c0_60] : memref<1x1x12x18x128xf32, #tpu.memory_space<vmem>>, vector<1x1x8x16x128xf32>
    %85 = vector.shape_cast %84 : vector<1x1x8x16x128xf32> to vector<8x16x128xf32>
    %86 = vector.shape_cast %85 : vector<8x16x128xf32> to vector<128x128xf32>
    %c0_61 = arith.constant 0 : index
    %c0_62 = arith.constant 0 : index
    %87 = vector.load %arg6[%c0_61, %c0_62] : memref<1x128xf32, #tpu.memory_space<vmem>>, vector<1x128xf32>
    %88 = vector.broadcast %87 : vector<1x128xf32> to vector<128x128xf32>
    %89 = arith.addf %83, %88 : vector<128x128xf32>
    %90 = arith.addf %89, %86 : vector<128x128xf32>
    %cst_63 = arith.constant 0.000000e+00 : f32
    %91 = vector.broadcast %cst_63 : f32 to vector<128x128xf32>
    %92 = arith.maximumf %90, %91 : vector<128x128xf32>
    %93 = vector.shape_cast %92 : vector<128x128xf32> to vector<8x16x128xf32>
    %c0_64 = arith.constant 0 : index
    %c0_65 = arith.constant 0 : index
    %c0_66 = arith.constant 0 : index
    %c0_67 = arith.constant 0 : index
    %94 = vector.load %arg7[%c0_64, %c0_65, %c0_66, %c0_67] : memref<1x8x16x128xf32, #tpu.memory_space<vmem>>, vector<1x8x16x128xf32>
    %95 = vector.shape_cast %94 : vector<1x8x16x128xf32> to vector<8x16x128xf32>
    %96 = vector.shape_cast %93 : vector<8x16x128xf32> to vector<1x8x16x128xf32>
    tpu.vector_store %arg7[%c0_64, %c0_65, %c0_66, %c0_67], %96 {strides = array<i32>} : memref<1x8x16x128xf32, #tpu.memory_space<vmem>>, vector<1x8x16x128xf32>,
    return
  }
  func.func @transform_0(%arg0: i32, %arg1: i32) -> (i32, i32, i32, i32, i32) {
    %c0_i32 = arith.constant 0 : i32
    %c0_i32_0 = arith.constant 0 : i32
    %c0_i32_1 = arith.constant 0 : i32
    %c0_i32_2 = arith.constant 0 : i32
    return %arg0, %arg1, %c0_i32, %c0_i32_0, %c0_i32_1 : i32, i32, i32, i32, i32
  }
  func.func @transform_1(%arg0: i32, %arg1: i32) -> (i32, i32, i32) {
    %c0_i32 = arith.constant 0 : i32
    %c0_i32_0 = arith.constant 0 : i32
    %c0_i32_1 = arith.constant 0 : i32
    %c0_i32_2 = arith.constant 0 : i32
    return %c0_i32, %c0_i32_0, %c0_i32_1 : i32, i32, i32
  }
  func.func @transform_2(%arg0: i32, %arg1: i32) -> (i32, i32) {
    %c0_i32 = arith.constant 0 : i32
    %c0_i32_0 = arith.constant 0 : i32
    %c0_i32_1 = arith.constant 0 : i32
    return %c0_i32, %c0_i32_0 : i32, i32
  }
  func.func @transform_3(%arg0: i32, %arg1: i32) -> (i32, i32, i32) {
    %c0_i32 = arith.constant 0 : i32
    %c0_i32_0 = arith.constant 0 : i32
    %c0_i32_1 = arith.constant 0 : i32
    %c0_i32_2 = arith.constant 0 : i32
    return %c0_i32, %c0_i32_0, %c0_i32_1 : i32, i32, i32
  }
  func.func @transform_4(%arg0: i32, %arg1: i32) -> (i32, i32) {
    %c0_i32 = arith.constant 0 : i32
    %c0_i32_0 = arith.constant 0 : i32
    %c0_i32_1 = arith.constant 0 : i32
    return %c0_i32, %c0_i32_0 : i32, i32
  }
  func.func @transform_5(%arg0: i32, %arg1: i32) -> (i32, i32, i32, i32) {
    %c0_i32 = arith.constant 0 : i32
    %c0_i32_0 = arith.constant 0 : i32
    %c0_i32_1 = arith.constant 0 : i32
    return %arg0, %arg1, %c0_i32, %c0_i32_0 : i32, i32, i32, i32
  }
}

</mosaic_0001>

<llo_original>
// kernel: basic_block.1
$region0: #{basic_block.1}
  #allocation0 [shape = 'u32[]', space=smem, size = 0x4, offset = 0x4, fixed_abs, tag = 'smem constant byte address 0x4 - core index']
  #allocation1 [shape = 'u32[144,128]{1,0:T(1,128)}', space=vmem, size = 0x12000, scoped, tag = 'internal scratch']
  #allocation2 [shape = 'f32[10,32,128]{2,1,0:T(8,128)}', space=vmem, size = 0x28000, scoped, tag = 'scratch operand']
  %s0 = inlined_call_operand.vmem [shape: f32[2,2,12,18,128], index: 0, kind: input, shape index: {}]
  %s1 = inlined_call_operand.vmem [shape: bf16[3,384,128], index: 1, kind: input, shape index: {}]
  %s2 = inlined_call_operand.vmem [shape: f32[1,128], index: 2, kind: input, shape index: {}]
  %s3 = inlined_call_operand.vmem [shape: bf16[3,384,128], index: 3, kind: input, shape index: {}]
  %s4 = inlined_call_operand.vmem [shape: f32[1,128], index: 4, kind: input, shape index: {}]
  %s5 = inlined_call_operand.vmem [shape: f32[2,16,16,128], index: 5, kind: output, shape index: {}]
  %s6 = sld [smem:[#allocation0]]
  $region61: #{basic_block.1} parent=0
    _
  %s8 = ssub.s32 1, %s6
  %s9 = scalar_select 0, %s8, %s6
  loop: start=0, step=1, limit=6
  $region2: #{basic_block.1} parent=0 // loop_pre_header
    _
  $region3: #{basic_block.1} parent=0 // loop_header
    %s11 = sphi 0, %s15
    %p12 = scmp.ge.s32.totalorder %s11, 6
    %s18 = sphi 0, %s30
    %s19 = sphi 0, %s26
    %s20 = sphi 0, %s18
    %s21 = sphi 0, %s19
    %s22 = sphi 0, %s20
    %s23 = sphi 0, %s21
    %s35 = sphi 0, %s37
    %s38 = sphi 0, %s35
    %s39 = sphi 0, %s38
    %s55 = sphi 0, %s39
    %s59 = sphi 0, %s59
    %s61 = sphi 0, %s59
    %s62 = sphi 0, %s61
    %s76 = sphi 0, %s62
    %s80 = sphi 0, %s80
    %s82 = sphi 0, %s80
    %s83 = sphi 0, %s82
    %s97 = sphi 0, %s83
    %s101 = sphi 0, %s101
    %s103 = sphi 0, %s101
    %s104 = sphi 0, %s103
    %s118 = sphi 0, %s104
    %s122 = sphi 0, %s122
    %s124 = sphi 0, %s122
    %s125 = sphi 0, %s124
    %s139 = sphi 0, %s125
    %s147 = sphi 0, %s149
    %s150 = sphi 0, %s147
    %s151 = sphi 0, %s150
    %s167 = sphi 0, %s151
  $region4: #{basic_block.1} parent=0 // loop_header_branch
    %14 = sbr.rel (%p12) target = $region8
  $region5: #{basic_block.1} parent=0 // loop_body
    %s16 = ssub.s32 %s11, 1
    %s17 = ssub.s32 %s11, 2
    %s24 = sadd.s32 1, %s19
    %p25 = scmp.ge.s32.totalorder %s24, 2
    %s26 = scalar_select %p25, 0, %s24
    %s27 = sadd.s32 1, %s18
    %s28 = scalar_select %p25, %s27, %s18
    %p29 = scmp.ge.s32.totalorder %s28, 2
    %s30 = scalar_select %p29, 0, %s28
    %s31 = ssub.s32 %s18, %s30
    %s32 = ssub.s32 %s19, %s26
    %s33 = sor.u32 %s31, %s32
    %p34 = scmp.eq.s32.totalorder %s33, 0
    %s36 = sadd.s32 %s35, 1
    %s37 = scalar_select %p34, %s35, %s36
    %p40 = pneg %p34
    %p41 = scmp.eq.s32.totalorder %s11, 3
    %p42 = por %p40, %p41
    %p43 = scmp.ne.s32.totalorder %s35, %s38
    %p44 = scmp.eq.s32.totalorder %s11, 0
    %p45 = por %p43, %p44
    %p46 = scmp.ne.s32.totalorder %s35, %s38
    %p47 = scmp.eq.s32.totalorder %s16, 3
    %p48 = por %p46, %p47
    %p49 = scmp.ne.s32.totalorder %s38, %s39
    %p50 = scmp.eq.s32.totalorder %s16, 0
    %p51 = por %p49, %p50
    %p52 = scmp.ne.s32.totalorder %s38, %s39
    %p53 = scmp.eq.s32.totalorder %s17, 3
    %p54 = por %p52, %p53
    %p56 = scmp.ne.s32.totalorder %s39, %s55
    %p57 = scmp.eq.s32.totalorder %s17, 0
    %p58 = por %p56, %p57
    %s60 = sadd.s32 %s59, 1
    %p63 = scmp.eq.s32.totalorder %s11, 3
    %p64 = scmp.ne.s32.totalorder %s59, %s61
    %p65 = scmp.eq.s32.totalorder %s11, 0
    %p66 = por %p64, %p65
    %p67 = scmp.ne.s32.totalorder %s59, %s61
    %p68 = scmp.eq.s32.totalorder %s16, 3
    %p69 = por %p67, %p68
    %p70 = scmp.ne.s32.totalorder %s61, %s62
    %p71 = scmp.eq.s32.totalorder %s16, 0
    %p72 = por %p70, %p71
    %p73 = scmp.ne.s32.totalorder %s61, %s62
    %p74 = scmp.eq.s32.totalorder %s17, 3
    %p75 = por %p73, %p74
    %p77 = scmp.ne.s32.totalorder %s62, %s76
    %p78 = scmp.eq.s32.totalorder %s17, 0
    %p79 = por %p77, %p78
    %s81 = sadd.s32 %s80, 1
    %p84 = scmp.eq.s32.totalorder %s11, 3
    %p85 = scmp.ne.s32.totalorder %s80, %s82
    %p86 = scmp.eq.s32.totalorder %s11, 0
    %p87 = por %p85, %p86
    %p88 = scmp.ne.s32.totalorder %s80, %s82
    %p89 = scmp.eq.s32.totalorder %s16, 3
    %p90 = por %p88, %p89
    %p91 = scmp.ne.s32.totalorder %s82, %s83
    %p92 = scmp.eq.s32.totalorder %s16, 0
    %p93 = por %p91, %p92
    %p94 = scmp.ne.s32.totalorder %s82, %s83
    %p95 = scmp.eq.s32.totalorder %s17, 3
    %p96 = por %p94, %p95
    %p98 = scmp.ne.s32.totalorder %s83, %s97
    %p99 = scmp.eq.s32.totalorder %s17, 0
    %p100 = por %p98, %p99
    %s102 = sadd.s32 %s101, 1
    %p105 = scmp.eq.s32.totalorder %s11, 3
    %p106 = scmp.ne.s32.totalorder %s101, %s103
    %p107 = scmp.eq.s32.totalorder %s11, 0
    %p108 = por %p106, %p107
    %p109 = scmp.ne.s32.totalorder %s101, %s103
    %p110 = scmp.eq.s32.totalorder %s16, 3
    %p111 = por %p109, %p110
    %p112 = scmp.ne.s32.totalorder %s103, %s104
    %p113 = scmp.eq.s32.totalorder %s16, 0
    %p114 = por %p112, %p113
    %p115 = scmp.ne.s32.totalorder %s103, %s104
    %p116 = scmp.eq.s32.totalorder %s17, 3
    %p117 = por %p115, %p116
    %p119 = scmp.ne.s32.totalorder %s104, %s118
    %p120 = scmp.eq.s32.totalorder %s17, 0
    %p121 = por %p119, %p120
    %s123 = sadd.s32 %s122, 1
    %p126 = scmp.eq.s32.totalorder %s11, 3
    %p127 = scmp.ne.s32.totalorder %s122, %s124
    %p128 = scmp.eq.s32.totalorder %s11, 0
    %p129 = por %p127, %p128
    %p130 = scmp.ne.s32.totalorder %s122, %s124
    %p131 = scmp.eq.s32.totalorder %s16, 3
    %p132 = por %p130, %p131
    %p133 = scmp.ne.s32.totalorder %s124, %s125
    %p134 = scmp.eq.s32.totalorder %s16, 0
    %p135 = por %p133, %p134
    %p136 = scmp.ne.s32.totalorder %s124, %s125
    %p137 = scmp.eq.s32.totalorder %s17, 3
    %p138 = por %p136, %p137
    %p140 = scmp.ne.s32.totalorder %s125, %s139
    %p141 = scmp.eq.s32.totalorder %s17, 0
    %p142 = por %p140, %p141
    %s143 = ssub.s32 %s18, %s30
    %s144 = ssub.s32 %s19, %s26
    %s145 = sor.u32 %s143, %s144
    %p146 = scmp.eq.s32.totalorder %s145, 0
    %s148 = sadd.s32 %s147, 1
    %s149 = scalar_select %p146, %s147, %s148
    %p152 = pneg %p146
    %p153 = scmp.eq.s32.totalorder %s11, 3
    %p154 = por %p152, %p153
    %p155 = scmp.ne.s32.totalorder %s147, %s150
    %p156 = scmp.eq.s32.totalorder %s11, 0
    %p157 = por %p155, %p156
    %p158 = scmp.ne.s32.totalorder %s147, %s150
    %p159 = scmp.eq.s32.totalorder %s16, 3
    %p160 = por %p158, %p159
    %p161 = scmp.ne.s32.totalorder %s150, %s151
    %p162 = scmp.eq.s32.totalorder %s16, 0
    %p163 = por %p161, %p162
    %p164 = scmp.ne.s32.totalorder %s150, %s151
    %p165 = scmp.eq.s32.totalorder %s17, 3
    %p166 = por %p164, %p165
    %p168 = scmp.ne.s32.totalorder %s151, %s167
    %p169 = scmp.eq.s32.totalorder %s17, 0
    %p170 = por %p168, %p169
    %p171 = scmp.le.s32.totalorder 1, %s11
    %p172 = scmp.lt.s32.totalorder %s11, 5
    %p173 = pnand %p171, %p172
    %p174 = pneg %p173
    // Predicated region
    $region9: #{basic_block.1} parent=5 // pred_check
      _
    $region10: #{basic_block.1} parent=5 // pred_check_branch
      %176 = sbr.rel (%p173) target = $region12
    $region11: #{basic_block.1} parent=5 // pred_region
      %s177 = ssub.s32 %s11, 1
      // Predicated region
      $region13: #{basic_block.1} parent=11 // pred_check
        %p178 = pneg %p72
      $region14: #{basic_block.1} parent=11 // pred_check_branch
        %180 = sbr.rel (%p178) target = $region16
      $region15: #{basic_block.1} parent=11 // pred_region
        _
      $region16: #{basic_block.1} parent=11 // pred_fallthru
        _
      // Predicated region
      $region17: #{basic_block.1} parent=11 // pred_check
        %p181 = pneg %p93
      $region18: #{basic_block.1} parent=11 // pred_check_branch
        %183 = sbr.rel (%p181) target = $region20
      $region19: #{basic_block.1} parent=11 // pred_region
        _
      $region20: #{basic_block.1} parent=11 // pred_fallthru
        _
      // Predicated region
      $region21: #{basic_block.1} parent=11 // pred_check
        %p184 = pneg %p114
      $region22: #{basic_block.1} parent=11 // pred_check_branch
        %186 = sbr.rel (%p184) target = $region24
      $region23: #{basic_block.1} parent=11 // pred_region
        _
      $region24: #{basic_block.1} parent=11 // pred_fallthru
        _
      // Predicated region
      $region25: #{basic_block.1} parent=11 // pred_check
        %p187 = pneg %p135
      $region26: #{basic_block.1} parent=11 // pred_check_branch
        %189 = sbr.rel (%p187) target = $region28
      $region27: #{basic_block.1} parent=11 // pred_region
        _
      $region28: #{basic_block.1} parent=11 // pred_fallthru
        _
    $region12: #{basic_block.1} parent=5 // pred_fallthru
      _
    %p190 = scmp.lt.s32.totalorder %s11, 4
    // Predicated region
    $region29: #{basic_block.1} parent=5 // pred_check
      %p191 = pneg %p190
    $region30: #{basic_block.1} parent=5 // pred_check_branch
      %193 = sbr.rel (%p191) target = $region32
    $region31: #{basic_block.1} parent=5 // pred_region
      // Predicated region
      $region33: #{basic_block.1} parent=31 // pred_check
        %p194 = pneg %p45
      $region34: #{basic_block.1} parent=31 // pred_check_branch
        %196 = sbr.rel (%p194) target = $region36
      $region35: #{basic_block.1} parent=31 // pred_region
        %p197 = scmp.lt.s32.totalorder %s18, 1
        %s198 = scalar_select %p197, %s18, 1
        %p199 = scmp.lt.s32.totalorder %s19, 1
        %s200 = scalar_select %p199, %s19, 1
        %s201 = smul.addr %s200, 36
        %s202 = smul.addr %s198, 72
        %s203 = sadd.s32 %s201, %s202
        %s204 = smul.addr %s203, 8
        %s205 = scalar_lea.vmem %s0, %s204
      $region36: #{basic_block.1} parent=31 // pred_fallthru
        _
    $region32: #{basic_block.1} parent=5 // pred_fallthru
      _
    %p206 = scmp.le.s32.totalorder 1, %s11
    %p207 = scmp.lt.s32.totalorder %s11, 5
    %p208 = pnand %p206, %p207
    %p209 = pneg %p208
    // Predicated region
    $region37: #{basic_block.1} parent=5 // pred_check
      _
    $region38: #{basic_block.1} parent=5 // pred_check_branch
      %211 = sbr.rel (%p208) target = $region40
    $region39: #{basic_block.1} parent=5 // pred_region
      %s212 = ssub.s32 %s11, 1
      %p213 = scmp.lt.s32.totalorder %s20, 1
      %s214 = scalar_select %p213, %s20, 1
      %p215 = scmp.lt.s32.totalorder %s21, 1
      %s216 = scalar_select %p215, %s21, 1
      %s217 = smul.addr %s216, 36
      %s218 = smul.addr %s214, 72
      %s219 = sadd.s32 %s217, %s218
      %s220 = smul.addr %s219, 8
      %s221 = scalar_lea.vmem %s0, %s220
      %p222 = pneg %p51
      %p223 = pneg %p48
      %p224 = pneg %p72
      %p225 = pneg %p69
      %p226 = pneg %p93
      %p227 = pneg %p90
      %p228 = pneg %p114
      %p229 = pneg %p111
      %p230 = pneg %p135
      %p231 = pneg %p132
      %p232 = pneg %p163
      %p233 = pneg %p160
      %s234 = smul.u32 8, %s21
      %p235 = scmp.lt.s32.totalorder %s20, 1
      %s236 = scalar_select %p235, %s20, 1
      %p237 = scmp.lt.s32.totalorder %s234, 15
      %s238 = scalar_select %p237, %s234, 15
      %s239 = smul.addr %s238, 2
      %s240 = smul.addr %s236, 32
      %s241 = sadd.s32 %s239, %s240
      %s242 = smul.addr %s241, 8
      %s243 = scalar_lea.vmem %s5, %s242
      %p244 = scmp.lt.s32.totalorder %s20, 1
      %s245 = scalar_select %p244, %s20, 1
      %p246 = scmp.lt.s32.totalorder %s21, 1
      %s247 = scalar_select %p246, %s21, 1
      %s248 = smul.addr %s247, 36
      %s249 = smul.addr %s245, 72
      %s250 = sadd.s32 %s248, %s249
      %s251 = smul.addr %s250, 8
      %s252 = scalar_lea.vmem %s0, %s251
      %s253 = smul.u32 8, %s21
      %p254 = scmp.lt.s32.totalorder %s20, 1
      %s255 = scalar_select %p254, %s20, 1
      %p256 = scmp.lt.s32.totalorder %s253, 15
      %s257 = scalar_select %p256, %s253, 15
      %s258 = smul.addr %s257, 2
      %s259 = smul.addr %s255, 32
      %s260 = sadd.s32 %s258, %s259
      %s261 = smul.addr %s260, 8
      %s262 = scalar_lea.vmem %s5, %s261
      %s263 = smul.u32 8, %s21
      %v265 = vld [vmem:[%s252] sm:$0xff]
      %v266 = vld [vmem:[%s252 + $0x8] sm:$0xff]
      %v267 = vld [vmem:[%s252 + $0x18] sm:$0xff]
      %v268 = vld [vmem:[%s252 + $0x20] sm:$0xff]
      %v269 = vld [vmem:[%s252 + $0x30] sm:$0xff]
      %v270 = vld [vmem:[%s252 + $0x38] sm:$0xff]
      %v271 = vld [vmem:[%s252 + $0x48] sm:$0xff]
      %v272 = vld [vmem:[%s252 + $0x50] sm:$0xff]
      %v273 = vld [vmem:[%s252 + $0x60] sm:$0xff]
      %v274 = vld [vmem:[%s252 + $0x68] sm:$0xff]
      %v275 = vld [vmem:[%s252 + $0x78] sm:$0xff]
      %v276 = vld [vmem:[%s252 + $0x80] sm:$0xff]
      %v277 = vld [vmem:[%s252 + $0x90] sm:$0xff]
      %v278 = vld [vmem:[%s252 + $0x98] sm:$0xff]
      %v279 = vld [vmem:[%s252 + $0xa8] sm:$0xff]
      %v280 = vld [vmem:[%s252 + $0xb0] sm:$0xff]
      %v281 = vld [vmem:[%s252 + $0xc0] sm:$0xff]
      %v282 = vld [vmem:[%s252 + $0xc8] sm:$0xff]
      %v283 = vld [vmem:[%s252 + $0xd8] sm:$0xff]
      %v284 = vld [vmem:[%s252 + $0xe0] sm:$0xff]
      %v285 = vld [vmem:[%s252 + $0xf0] sm:$0xff]
      %v286 = vld [vmem:[%s252 + $0xf8] sm:$0xff]
      %v287 = vld [vmem:[%s252 + $0x108] sm:$0xff]
      %v288 = vld [vmem:[%s252 + $0x110] sm:$0xff]
      %v289 = vpack.c.bf16 %v266, %v265
      %v290 = vpack.c.bf16 %v268, %v267
      %v291 = vpack.c.bf16 %v270, %v269
      %v292 = vpack.c.bf16 %v272, %v271
      %v293 = vpack.c.bf16 %v274, %v273
      %v294 = vpack.c.bf16 %v276, %v275
      %v295 = vpack.c.bf16 %v278, %v277
      %v296 = vpack.c.bf16 %v280, %v279
      %v297 = vpack.c.bf16 %v282, %v281
      %v298 = vpack.c.bf16 %v284, %v283
      %v299 = vpack.c.bf16 %v286, %v285
      %v300 = vpack.c.bf16 %v288, %v287
      %v301 = vld [vmem:[%s1] sm:$0xf]
      %v302 = vld [vmem:[%s1 + $0x4] sm:$0xf]
      %v303 = vld [vmem:[%s1 + $0x8] sm:$0xf]
      %v304 = vld [vmem:[%s1 + $0xc] sm:$0xf]
      %v305 = vld [vmem:[%s1 + $0x10] sm:$0xf]
      %v306 = vld [vmem:[%s1 + $0x14] sm:$0xf]
      %v307 = vld [vmem:[%s1 + $0x18] sm:$0xf]
      %v308 = vld [vmem:[%s1 + $0x1c] sm:$0xf]
      %v309 = vld [vmem:[%s1 + $0x20] sm:$0xf]
      %v310 = vld [vmem:[%s1 + $0x24] sm:$0xf]
      %v311 = vld [vmem:[%s1 + $0x28] sm:$0xf]
      %v312 = vld [vmem:[%s1 + $0x2c] sm:$0xf]
      %v313 = vld [vmem:[%s1 + $0x30] sm:$0xf]
      %v314 = vld [vmem:[%s1 + $0x34] sm:$0xf]
      %v315 = vld [vmem:[%s1 + $0x38] sm:$0xf]
      %v316 = vld [vmem:[%s1 + $0x3c] sm:$0xf]
      %v317 = vld [vmem:[%s1 + $0x40] sm:$0xf]
      %v318 = vld [vmem:[%s1 + $0x44] sm:$0xf]
      %v319 = vld [vmem:[%s1 + $0x48] sm:$0xf]
      %v320 = vld [vmem:[%s1 + $0x4c] sm:$0xf]
      %v321 = vld [vmem:[%s1 + $0x50] sm:$0xf]
      %v322 = vld [vmem:[%s1 + $0x54] sm:$0xf]
      %v323 = vld [vmem:[%s1 + $0x58] sm:$0xf]
      %v324 = vld [vmem:[%s1 + $0x5c] sm:$0xf]
      %v325 = vld [vmem:[%s1 + $0x60] sm:$0xf]
      %v326 = vld [vmem:[%s1 + $0x64] sm:$0xf]
      %v327 = vld [vmem:[%s1 + $0x68] sm:$0xf]
      %v328 = vld [vmem:[%s1 + $0x6c] sm:$0xf]
      %v329 = vld [vmem:[%s1 + $0x70] sm:$0xf]
      %v330 = vld [vmem:[%s1 + $0x74] sm:$0xf]
      %v331 = vld [vmem:[%s1 + $0x78] sm:$0xf]
      %v332 = vld [vmem:[%s1 + $0x7c] sm:$0xf]
      %v333 = vld [vmem:[%s1 + $0x80] sm:$0xf]
      %v334 = vld [vmem:[%s1 + $0x84] sm:$0xf]
      %v335 = vld [vmem:[%s1 + $0x88] sm:$0xf]
      %v336 = vld [vmem:[%s1 + $0x8c] sm:$0xf]
      %v337 = vld [vmem:[%s1 + $0x90] sm:$0xf]
      %v338 = vld [vmem:[%s1 + $0x94] sm:$0xf]
      %v339 = vld [vmem:[%s1 + $0x98] sm:$0xf]
      %v340 = vld [vmem:[%s1 + $0x9c] sm:$0xf]
      %v341 = vld [vmem:[%s1 + $0xa0] sm:$0xf]
      %v342 = vld [vmem:[%s1 + $0xa4] sm:$0xf]
      %v343 = vld [vmem:[%s1 + $0xa8] sm:$0xf]
      %v344 = vld [vmem:[%s1 + $0xac] sm:$0xf]
      %v345 = vld [vmem:[%s1 + $0xb0] sm:$0xf]
      %v346 = vld [vmem:[%s1 + $0xb4] sm:$0xf]
      %v347 = vld [vmem:[%s1 + $0xb8] sm:$0xf]
      %v348 = vld [vmem:[%s1 + $0xbc] sm:$0xf]
      %v349 = vld [vmem:[%s252 + $0x1] sm:$0xff]
      %v350 = vld [vmem:[%s252 + $0x9] sm:$0xff]
      %v351 = vld [vmem:[%s252 + $0x19] sm:$0xff]
      %v352 = vld [vmem:[%s252 + $0x21] sm:$0xff]
      %v353 = vld [vmem:[%s252 + $0x31] sm:$0xff]
      %v354 = vld [vmem:[%s252 + $0x39] sm:$0xff]
      %v355 = vld [vmem:[%s252 + $0x49] sm:$0xff]
      %v356 = vld [vmem:[%s252 + $0x51] sm:$0xff]
      %v357 = vld [vmem:[%s252 + $0x61] sm:$0xff]
      %v358 = vld [vmem:[%s252 + $0x69] sm:$0xff]
      %v359 = vld [vmem:[%s252 + $0x79] sm:$0xff]
      %v360 = vld [vmem:[%s252 + $0x81] sm:$0xff]
      %v361 = vld [vmem:[%s252 + $0x91] sm:$0xff]
      %v362 = vld [vmem:[%s252 + $0x99] sm:$0xff]
      %v363 = vld [vmem:[%s252 + $0xa9] sm:$0xff]
      %v364 = vld [vmem:[%s252 + $0xb1] sm:$0xff]
      %v365 = vld [vmem:[%s252 + $0xc1] sm:$0xff]
      %v366 = vld [vmem:[%s252 + $0xc9] sm:$0xff]
      %v367 = vld [vmem:[%s252 + $0xd9] sm:$0xff]
      %v368 = vld [vmem:[%s252 + $0xe1] sm:$0xff]
      %v369 = vld [vmem:[%s252 + $0xf1] sm:$0xff]
      %v370 = vld [vmem:[%s252 + $0xf9] sm:$0xff]
      %v371 = vld [vmem:[%s252 + $0x109] sm:$0xff]
      %v372 = vld [vmem:[%s252 + $0x111] sm:$0xff]
      %v373 = vpack.c.bf16 %v350, %v349
      %v374 = vpack.c.bf16 %v352, %v351
      %v375 = vpack.c.bf16 %v354, %v353
      %v376 = vpack.c.bf16 %v356, %v355
      %v377 = vpack.c.bf16 %v358, %v357
      %v378 = vpack.c.bf16 %v360, %v359
      %v379 = vpack.c.bf16 %v362, %v361
      %v380 = vpack.c.bf16 %v364, %v363
      %v381 = vpack.c.bf16 %v366, %v365
      %v382 = vpack.c.bf16 %v368, %v367
      %v383 = vpack.c.bf16 %v370, %v369
      %v384 = vpack.c.bf16 %v372, %v371
      %s385 = scalar_lea.vmem %s1, 192
      %v386 = vld [vmem:[%s385] sm:$0xf]
      %v387 = vld [vmem:[%s385 + $0x4] sm:$0xf]
      %v388 = vld [vmem:[%s385 + $0x8] sm:$0xf]
      %v389 = vld [vmem:[%s385 + $0xc] sm:$0xf]
      %v390 = vld [vmem:[%s385 + $0x10] sm:$0xf]
      %v391 = vld [vmem:[%s385 + $0x14] sm:$0xf]
      %v392 = vld [vmem:[%s385 + $0x18] sm:$0xf]
      %v393 = vld [vmem:[%s385 + $0x1c] sm:$0xf]
      %v394 = vld [vmem:[%s385 + $0x20] sm:$0xf]
      %v395 = vld [vmem:[%s385 + $0x24] sm:$0xf]
      %v396 = vld [vmem:[%s385 + $0x28] sm:$0xf]
      %v397 = vld [vmem:[%s385 + $0x2c] sm:$0xf]
      %v398 = vld [vmem:[%s385 + $0x30] sm:$0xf]
      %v399 = vld [vmem:[%s385 + $0x34] sm:$0xf]
      %v400 = vld [vmem:[%s385 + $0x38] sm:$0xf]
      %v401 = vld [vmem:[%s385 + $0x3c] sm:$0xf]
      %v402 = vld [vmem:[%s385 + $0x40] sm:$0xf]
      %v403 = vld [vmem:[%s385 + $0x44] sm:$0xf]
      %v404 = vld [vmem:[%s385 + $0x48] sm:$0xf]
      %v405 = vld [vmem:[%s385 + $0x4c] sm:$0xf]
      %v406 = vld [vmem:[%s385 + $0x50] sm:$0xf]
      %v407 = vld [vmem:[%s385 + $0x54] sm:$0xf]
      %v408 = vld [vmem:[%s385 + $0x58] sm:$0xf]
      %v409 = vld [vmem:[%s385 + $0x5c] sm:$0xf]
      %v410 = vld [vmem:[%s385 + $0x60] sm:$0xf]
      %v411 = vld [vmem:[%s385 + $0x64] sm:$0xf]
      %v412 = vld [vmem:[%s385 + $0x68] sm:$0xf]
      %v413 = vld [vmem:[%s385 + $0x6c] sm:$0xf]
      %v414 = vld [vmem:[%s385 + $0x70] sm:$0xf]
      %v415 = vld [vmem:[%s385 + $0x74] sm:$0xf]
      %v416 = vld [vmem:[%s385 + $0x78] sm:$0xf]
      %v417 = vld [vmem:[%s385 + $0x7c] sm:$0xf]
      %v418 = vld [vmem:[%s385 + $0x80] sm:$0xf]
      %v419 = vld [vmem:[%s385 + $0x84] sm:$0xf]
      %v420 = vld [vmem:[%s385 + $0x88] sm:$0xf]
      %v421 = vld [vmem:[%s385 + $0x8c] sm:$0xf]
      %v422 = vld [vmem:[%s385 + $0x90] sm:$0xf]
      %v423 = vld [vmem:[%s385 + $0x94] sm:$0xf]
      %v424 = vld [vmem:[%s385 + $0x98] sm:$0xf]
      %v425 = vld [vmem:[%s385 + $0x9c] sm:$0xf]
      %v426 = vld [vmem:[%s385 + $0xa0] sm:$0xf]
      %v427 = vld [vmem:[%s385 + $0xa4] sm:$0xf]
      %v428 = vld [vmem:[%s385 + $0xa8] sm:$0xf]
      %v429 = vld [vmem:[%s385 + $0xac] sm:$0xf]
      %v430 = vld [vmem:[%s385 + $0xb0] sm:$0xf]
      %v431 = vld [vmem:[%s385 + $0xb4] sm:$0xf]
      %v432 = vld [vmem:[%s385 + $0xb8] sm:$0xf]
      %v433 = vld [vmem:[%s385 + $0xbc] sm:$0xf]
      %v482 = vunpack.c.l.b16 %v386
      %v483 = vunpack.c.l.b16 %v387
      %v484 = vunpack.c.l.b16 %v388
      %v485 = vunpack.c.l.b16 %v389
      %v486 = vunpack.c.l.b16 %v390
      %v487 = vunpack.c.l.b16 %v391
      %v488 = vunpack.c.l.b16 %v392
      %v489 = vunpack.c.l.b16 %v393
      %v490 = vunpack.c.l.b16 %v394
      %v491 = vunpack.c.l.b16 %v395
      %v492 = vunpack.c.l.b16 %v396
      %v493 = vunpack.c.l.b16 %v397
      %v494 = vunpack.c.l.b16 %v398
      %v495 = vunpack.c.l.b16 %v399
      %v496 = vunpack.c.l.b16 %v400
      %v497 = vunpack.c.l.b16 %v401
      %v498 = vunpack.c.l.b16 %v402
      %v499 = vunpack.c.l.b16 %v403
      %v500 = vunpack.c.l.b16 %v404
      %v501 = vunpack.c.l.b16 %v405
      %v502 = vunpack.c.l.b16 %v406
      %v503 = vunpack.c.l.b16 %v407
      %v504 = vunpack.c.l.b16 %v408
      %v505 = vunpack.c.l.b16 %v409
      %v506 = vunpack.c.l.b16 %v410
      %v507 = vunpack.c.l.b16 %v411
      %v508 = vunpack.c.l.b16 %v412
      %v509 = vunpack.c.l.b16 %v413
      %v510 = vunpack.c.l.b16 %v414
      %v511 = vunpack.c.l.b16 %v415
      %v512 = vunpack.c.l.b16 %v416
      %v513 = vunpack.c.l.b16 %v417
      %v514 = vunpack.c.l.b16 %v418
      %v515 = vunpack.c.l.b16 %v419
      %v516 = vunpack.c.l.b16 %v420
      %v517 = vunpack.c.l.b16 %v421
      %v518 = vunpack.c.l.b16 %v422
      %v519 = vunpack.c.l.b16 %v423
      %v520 = vunpack.c.l.b16 %v424
      %v521 = vunpack.c.l.b16 %v425
      %v522 = vunpack.c.l.b16 %v426
      %v523 = vunpack.c.l.b16 %v427
      %v524 = vunpack.c.l.b16 %v428
      %v525 = vunpack.c.l.b16 %v429
      %v526 = vunpack.c.l.b16 %v430
      %v527 = vunpack.c.l.b16 %v431
      %v528 = vunpack.c.l.b16 %v432
      %v529 = vunpack.c.l.b16 %v433
      %v530 = vpack.c.b16 %v483, %v482
      %v531 = vpack.c.b16 %v485, %v484
      %v532 = vpack.c.b16 %v487, %v486
      %v533 = vpack.c.b16 %v489, %v488
      %v534 = vpack.c.b16 %v491, %v490
      %v535 = vpack.c.b16 %v493, %v492
      %v536 = vpack.c.b16 %v495, %v494
      %v537 = vpack.c.b16 %v497, %v496
      %v538 = vpack.c.b16 %v499, %v498
      %v539 = vpack.c.b16 %v501, %v500
      %v540 = vpack.c.b16 %v503, %v502
      %v541 = vpack.c.b16 %v505, %v504
      %v542 = vpack.c.b16 %v507, %v506
      %v543 = vpack.c.b16 %v509, %v508
      %v544 = vpack.c.b16 %v511, %v510
      %v545 = vpack.c.b16 %v513, %v512
      %v546 = vpack.c.b16 %v515, %v514
      %v547 = vpack.c.b16 %v517, %v516
      %v548 = vpack.c.b16 %v519, %v518
      %v549 = vpack.c.b16 %v521, %v520
      %v550 = vpack.c.b16 %v523, %v522
      %v551 = vpack.c.b16 %v525, %v524
      %v552 = vpack.c.b16 %v527, %v526
      %v553 = vpack.c.b16 %v529, %v528
      %578 = vmatprep.subr.bf16.mxu0 0
      %579 = vmatpush1.bf16.msra.mxu0 %v530
      %580 = vmatprep.subr.bf16.mxu0 0
      %581 = vmatpush1.bf16.msra.mxu0 %v531
      %582 = vmatprep.subr.bf16.mxu0 0
      %583 = vmatpush1.bf16.msra.mxu0 %v532
      %584 = vmatprep.subr.bf16.mxu0 0
      %585 = vmatpush1.bf16.msra.mxu0 %v533
      %586 = vmatprep.subr.bf16.mxu0 0
      %587 = vmatpush1.bf16.msra.mxu0 %v534
      %588 = vmatprep.subr.bf16.mxu0 0
      %589 = vmatpush1.bf16.msra.mxu0 %v535
      %590 = vmatprep.subr.bf16.mxu0 0
      %591 = vmatpush1.bf16.msra.mxu0 %v536
      %592 = vmatprep.subr.bf16.mxu0 0
      %593 = vmatpush1.bf16.msra.mxu0 %v537
      %594 = vmatprep.subr.bf16.mxu0 0
      %595 = vmatpush1.bf16.msra.mxu0 %v538
      %596 = vmatprep.subr.bf16.mxu0 0
      %597 = vmatpush1.bf16.msra.mxu0 %v539
      %598 = vmatprep.subr.bf16.mxu0 0
      %599 = vmatpush1.bf16.msra.mxu0 %v540
      %600 = vmatprep.subr.bf16.mxu0 0
      %601 = vmatpush1.bf16.msra.mxu0 %v541
      %602 = vmatprep.subr.bf16.mxu0 0
      %603 = vmatpush1.bf16.msra.mxu0 %v542
      %604 = vmatprep.subr.bf16.mxu0 0
      %605 = vmatpush1.bf16.msra.mxu0 %v543
      %606 = vmatprep.subr.bf16.mxu0 0
      %607 = vmatpush1.bf16.msra.mxu0 %v544
      %608 = vmatprep.subr.bf16.mxu0 0
      %609 = vmatpush1.bf16.msra.mxu0 %v545
      %610 = vmatprep.mubr.bf16.mxu0 %v374
      %611 = vmatmul.mubr.bf16.gmra.mrb[0].mxu0 %v373
      %v612 = vpop.f32.mrb[0].mxu0
      %v613 = vadd.f32 0.0, %v612
      %v614 = vpop.f32.mrb[0].mxu0
      %v615 = vpop.f32.mrb[0].mxu0
      %v616 = vadd.f32 0.0, %v615
      %v617 = vpop.f32.mrb[0].mxu0
      %618 = vmatprep.mubr.bf16.mxu0 %v375
      %619 = vmatmul.mubr.bf16.gmra.mrb[0].mxu0 %v374
      %v620 = vpop.f32.mrb[0].mxu0
      %v621 = vadd.f32 0.0, %v620
      %v622 = vpop.f32.mrb[0].mxu0
      %v623 = vpop.f32.mrb[0].mxu0
      %v624 = vadd.f32 0.0, %v623
      %v625 = vpop.f32.mrb[0].mxu0
      %626 = vmatprep.mubr.bf16.mxu0 %v376
      %627 = vmatmul.mubr.bf16.gmra.mrb[0].mxu0 %v375
      %v628 = vpop.f32.mrb[0].mxu0
      %v629 = vadd.f32 0.0, %v628
      %v630 = vpop.f32.mrb[0].mxu0
      %v631 = vpop.f32.mrb[0].mxu0
      %v632 = vadd.f32 0.0, %v631
      %v633 = vpop.f32.mrb[0].mxu0
      %634 = vmatprep.mubr.bf16.mxu0 %v377
      %635 = vmatmul.mubr.bf16.gmra.mrb[0].mxu0 %v376
      %v636 = vpop.f32.mrb[0].mxu0
      %v637 = vadd.f32 0.0, %v636
      %v638 = vpop.f32.mrb[0].mxu0
      %v639 = vpop.f32.mrb[0].mxu0
      %v640 = vadd.f32 0.0, %v639
      %v641 = vpop.f32.mrb[0].mxu0
      %642 = vmatprep.mubr.bf16.mxu0 %v378
      %643 = vmatmul.mubr.bf16.gmra.mrb[0].mxu0 %v377
      %v644 = vpop.f32.mrb[0].mxu0
      %v645 = vadd.f32 0.0, %v644
      %v646 = vpop.f32.mrb[0].mxu0
      %v647 = vpop.f32.mrb[0].mxu0
      %v648 = vadd.f32 0.0, %v647
      %v649 = vpop.f32.mrb[0].mxu0
      %650 = vmatprep.mubr.bf16.mxu0 %v379
      %651 = vmatmul.mubr.bf16.gmra.mrb[0].mxu0 %v378
      %v652 = vpop.f32.mrb[0].mxu0
      %v653 = vadd.f32 0.0, %v652
      %v654 = vpop.f32.mrb[0].mxu0
      %v655 = vpop.f32.mrb[0].mxu0
      %v656 = vadd.f32 0.0, %v655
      %v657 = vpop.f32.mrb[0].mxu0
      %658 = vmatprep.mubr.bf16.mxu0 %v380
      %659 = vmatmul.mubr.bf16.gmra.mrb[0].mxu0 %v379
      %v660 = vpop.f32.mrb[0].mxu0
      %v661 = vadd.f32 0.0, %v660
      %v662 = vpop.f32.mrb[0].mxu0
      %v663 = vpop.f32.mrb[0].mxu0
      %v664 = vadd.f32 0.0, %v663
      %v665 = vpop.f32.mrb[0].mxu0
      %666 = vmatprep.mubr.bf16.mxu0 %v381
      %667 = vmatmul.mubr.bf16.gmra.mrb[0].mxu0 %v380
      %v668 = vpop.f32.mrb[0].mxu0
      %v669 = vadd.f32 0.0, %v668
      %v670 = vpop.f32.mrb[0].mxu0
      %v671 = vpop.f32.mrb[0].mxu0
      %v672 = vadd.f32 0.0, %v671
      %v673 = vpop.f32.mrb[0].mxu0
      %674 = vmatprep.mubr.bf16.mxu0 %v382
      %675 = vmatmul.mubr.bf16.gmra.mrb[0].mxu0 %v381
      %v676 = vpop.f32.mrb[0].mxu0
      %v677 = vadd.f32 0.0, %v676
      %v678 = vpop.f32.mrb[0].mxu0
      %v679 = vpop.f32.mrb[0].mxu0
      %v680 = vadd.f32 0.0, %v679
      %v681 = vpop.f32.mrb[0].mxu0
      %682 = vmatprep.mubr.bf16.mxu0 %v383
      %683 = vmatmul.mubr.bf16.gmra.mrb[0].mxu0 %v382
      %v684 = vpop.f32.mrb[0].mxu0
      %v685 = vadd.f32 0.0, %v684
      %v686 = vpop.f32.mrb[0].mxu0
      %v687 = vpop.f32.mrb[0].mxu0
      %v688 = vadd.f32 0.0, %v687
      %v689 = vpop.f32.mrb[0].mxu0
      %690 = vdwg.mxu0
      %691 = vmatprep.subr.bf16.mxu0 0
      %692 = vmatpush1.bf16.msra.mxu0 %v546
      %693 = vmatprep.subr.bf16.mxu0 0
      %694 = vmatpush1.bf16.msra.mxu0 %v547
      %695 = vmatprep.subr.bf16.mxu0 0
      %696 = vmatpush1.bf16.msra.mxu0 %v548
      %697 = vmatprep.subr.bf16.mxu0 0
      %698 = vmatpush1.bf16.msra.mxu0 %v549
      %699 = vmatprep.subr.bf16.mxu0 0
      %700 = vmatpush1.bf16.msra.mxu0 %v550
      %701 = vmatprep.subr.bf16.mxu0 0
      %702 = vmatpush1.bf16.msra.mxu0 %v551
      %703 = vmatprep.subr.bf16.mxu0 0
      %704 = vmatpush1.bf16.msra.mxu0 %v552
      %705 = vmatprep.subr.bf16.mxu0 0
      %706 = vmatpush1.bf16.msra.mxu0 %v553
      %707 = vmatprep.subr.bf16.mxu0 0
      %708 = vmatpush1.bf16.msra.mxu0 0
      %709 = vmatprep.subr.bf16.mxu0 0
      %710 = vmatpush1.bf16.msra.mxu0 0
      %711 = vmatprep.subr.bf16.mxu0 0
      %712 = vmatpush1.bf16.msra.mxu0 0
      %713 = vmatprep.subr.bf16.mxu0 0
      %714 = vmatpush1.bf16.msra.mxu0 0
      %715 = vmatprep.subr.bf16.mxu0 0
      %716 = vmatpush1.bf16.msra.mxu0 0
      %717 = vmatprep.subr.bf16.mxu0 0
      %718 = vmatpush1.bf16.msra.mxu0 0
      %719 = vmatprep.subr.bf16.mxu0 0
      %720 = vmatpush1.bf16.msra.mxu0 0
      %721 = vmatprep.subr.bf16.mxu0 0
      %722 = vmatpush1.bf16.msra.mxu0 0
      %723 = vmatprep.mubr.bf16.mxu0 0
      %724 = vmatmul.mubr.bf16.gmra.mrb[0].mxu0 %v375
      %v725 = vpop.f32.mrb[0].mxu0
      %v726 = vadd.f32 %v613, %v725
      %v727 = vpop.f32.mrb[0].mxu0
      %v728 = vpop.f32.mrb[0].mxu0
      %v729 = vadd.f32 %v616, %v728
      %v730 = vpop.f32.mrb[0].mxu0
      %731 = vmatprep.mubr.bf16.mxu0 0
      %732 = vmatmul.mubr.bf16.gmra.mrb[0].mxu0 %v376
      %v733 = vpop.f32.mrb[0].mxu0
      %v734 = vadd.f32 %v621, %v733
      %v735 = vpop.f32.mrb[0].mxu0
      %v736 = vpop.f32.mrb[0].mxu0
      %v737 = vadd.f32 %v624, %v736
      %v738 = vpop.f32.mrb[0].mxu0
      %739 = vmatprep.mubr.bf16.mxu0 0
      %740 = vmatmul.mubr.bf16.gmra.mrb[0].mxu0 %v377
      %v741 = vpop.f32.mrb[0].mxu0
      %v742 = vadd.f32 %v629, %v741
      %v743 = vpop.f32.mrb[0].mxu0
      %v744 = vpop.f32.mrb[0].mxu0
      %v745 = vadd.f32 %v632, %v744
      %v746 = vpop.f32.mrb[0].mxu0
      %747 = vmatprep.mubr.bf16.mxu0 0
      %748 = vmatmul.mubr.bf16.gmra.mrb[0].mxu0 %v378
      %v749 = vpop.f32.mrb[0].mxu0
      %v750 = vadd.f32 %v637, %v749
      %v751 = vpop.f32.mrb[0].mxu0
      %v752 = vpop.f32.mrb[0].mxu0
      %v753 = vadd.f32 %v640, %v752
      %v754 = vpop.f32.mrb[0].mxu0
      %755 = vmatprep.mubr.bf16.mxu0 0
      %756 = vmatmul.mubr.bf16.gmra.mrb[0].mxu0 %v379
      %v757 = vpop.f32.mrb[0].mxu0
      %v758 = vadd.f32 %v645, %v757
      %v759 = vpop.f32.mrb[0].mxu0
      %v760 = vpop.f32.mrb[0].mxu0
      %v761 = vadd.f32 %v648, %v760
      %v762 = vpop.f32.mrb[0].mxu0
      %763 = vmatprep.mubr.bf16.mxu0 0
      %764 = vmatmul.mubr.bf16.gmra.mrb[0].mxu0 %v380
      %v765 = vpop.f32.mrb[0].mxu0
      %v766 = vadd.f32 %v653, %v765
      %v767 = vpop.f32.mrb[0].mxu0
      %v768 = vpop.f32.mrb[0].mxu0
      %v769 = vadd.f32 %v656, %v768
      %v770 = vpop.f32.mrb[0].mxu0
      %771 = vmatprep.mubr.bf16.mxu0 0
      %772 = vmatmul.mubr.bf16.gmra.mrb[0].mxu0 %v381
      %v773 = vpop.f32.mrb[0].mxu0
      %v774 = vadd.f32 %v661, %v773
      %v775 = vpop.f32.mrb[0].mxu0
      %v776 = vpop.f32.mrb[0].mxu0
      %v777 = vadd.f32 %v664, %v776
      %v778 = vpop.f32.mrb[0].mxu0
      %779 = vmatprep.mubr.bf16.mxu0 0
      %780 = vmatmul.mubr.bf16.gmra.mrb[0].mxu0 %v382
      %v781 = vpop.f32.mrb[0].mxu0
      %v782 = vadd.f32 %v669, %v781
      %v783 = vpop.f32.mrb[0].mxu0
      %v784 = vpop.f32.mrb[0].mxu0
      %v785 = vadd.f32 %v672, %v784
      %v786 = vpop.f32.mrb[0].mxu0
      %787 = vmatprep.mubr.bf16.mxu0 0
      %788 = vmatmul.mubr.bf16.gmra.mrb[0].mxu0 %v383
      %v789 = vpop.f32.mrb[0].mxu0
      %v790 = vadd.f32 %v677, %v789
      %v791 = vpop.f32.mrb[0].mxu0
      %v792 = vpop.f32.mrb[0].mxu0
      %v793 = vadd.f32 %v680, %v792
      %v794 = vpop.f32.mrb[0].mxu0
      %795 = vmatprep.mubr.bf16.mxu0 0
      %796 = vmatmul.mubr.bf16.gmra.mrb[0].mxu0 %v384
      %v797 = vpop.f32.mrb[0].mxu0
      %v798 = vadd.f32 %v685, %v797
      %v799 = vpop.f32.mrb[0].mxu0
      %v800 = vpop.f32.mrb[0].mxu0
      %v801 = vadd.f32 %v688, %v800
      %v802 = vpop.f32.mrb[0].mxu0
      %803 = vdwg.mxu0
      %v852 = vunpack.c.l.b16 %v301
      %v853 = vunpack.c.l.b16 %v302
      %v854 = vunpack.c.l.b16 %v303
      %v855 = vunpack.c.l.b16 %v304
      %v856 = vunpack.c.l.b16 %v305
      %v857 = vunpack.c.l.b16 %v306
      %v858 = vunpack.c.l.b16 %v307
      %v859 = vunpack.c.l.b16 %v308
      %v860 = vunpack.c.l.b16 %v309
      %v861 = vunpack.c.l.b16 %v310
      %v862 = vunpack.c.l.b16 %v311
      %v863 = vunpack.c.l.b16 %v312
      %v864 = vunpack.c.l.b16 %v313
      %v865 = vunpack.c.l.b16 %v314
      %v866 = vunpack.c.l.b16 %v315
      %v867 = vunpack.c.l.b16 %v316
      %v868 = vunpack.c.l.b16 %v317
      %v869 = vunpack.c.l.b16 %v318
      %v870 = vunpack.c.l.b16 %v319
      %v871 = vunpack.c.l.b16 %v320
      %v872 = vunpack.c.l.b16 %v321
      %v873 = vunpack.c.l.b16 %v322
      %v874 = vunpack.c.l.b16 %v323
      %v875 = vunpack.c.l.b16 %v324
      %v876 = vunpack.c.l.b16 %v325
      %v877 = vunpack.c.l.b16 %v326
      %v878 = vunpack.c.l.b16 %v327
      %v879 = vunpack.c.l.b16 %v328
      %v880 = vunpack.c.l.b16 %v329
      %v881 = vunpack.c.l.b16 %v330
      %v882 = vunpack.c.l.b16 %v331
      %v883 = vunpack.c.l.b16 %v332
      %v884 = vunpack.c.l.b16 %v333
      %v885 = vunpack.c.l.b16 %v334
      %v886 = vunpack.c.l.b16 %v335
      %v887 = vunpack.c.l.b16 %v336
      %v888 = vunpack.c.l.b16 %v337
      %v889 = vunpack.c.l.b16 %v338
      %v890 = vunpack.c.l.b16 %v339
      %v891 = vunpack.c.l.b16 %v340
      %v892 = vunpack.c.l.b16 %v341
      %v893 = vunpack.c.l.b16 %v342
      %v894 = vunpack.c.l.b16 %v343
      %v895 = vunpack.c.l.b16 %v344
      %v896 = vunpack.c.l.b16 %v345
      %v897 = vunpack.c.l.b16 %v346
      %v898 = vunpack.c.l.b16 %v347
      %v899 = vunpack.c.l.b16 %v348
      %v900 = vpack.c.b16 %v853, %v852
      %v901 = vpack.c.b16 %v855, %v854
      %v902 = vpack.c.b16 %v857, %v856
      %v903 = vpack.c.b16 %v859, %v858
      %v904 = vpack.c.b16 %v861, %v860
      %v905 = vpack.c.b16 %v863, %v862
      %v906 = vpack.c.b16 %v865, %v864
      %v907 = vpack.c.b16 %v867, %v866
      %v908 = vpack.c.b16 %v869, %v868
      %v909 = vpack.c.b16 %v871, %v870
      %v910 = vpack.c.b16 %v873, %v872
      %v911 = vpack.c.b16 %v875, %v874
      %v912 = vpack.c.b16 %v877, %v876
      %v913 = vpack.c.b16 %v879, %v878
      %v914 = vpack.c.b16 %v881, %v880
      %v915 = vpack.c.b16 %v883, %v882
      %v916 = vpack.c.b16 %v885, %v884
      %v917 = vpack.c.b16 %v887, %v886
      %v918 = vpack.c.b16 %v889, %v888
      %v919 = vpack.c.b16 %v891, %v890
      %v920 = vpack.c.b16 %v893, %v892
      %v921 = vpack.c.b16 %v895, %v894
      %v922 = vpack.c.b16 %v897, %v896
      %v923 = vpack.c.b16 %v899, %v898
      %948 = vmatprep.subr.bf16.mxu0 0
      %949 = vmatpush1.bf16.msra.mxu0 %v900
      %950 = vmatprep.subr.bf16.mxu0 0
      %951 = vmatpush1.bf16.msra.mxu0 %v901
      %952 = vmatprep.subr.bf16.mxu0 0
      %953 = vmatpush1.bf16.msra.mxu0 %v902
      %954 = vmatprep.subr.bf16.mxu0 0
      %955 = vmatpush1.bf16.msra.mxu0 %v903
      %956 = vmatprep.subr.bf16.mxu0 0
      %957 = vmatpush1.bf16.msra.mxu0 %v904
      %958 = vmatprep.subr.bf16.mxu0 0
      %959 = vmatpush1.bf16.msra.mxu0 %v905
      %960 = vmatprep.subr.bf16.mxu0 0
      %961 = vmatpush1.bf16.msra.mxu0 %v906
      %962 = vmatprep.subr.bf16.mxu0 0
      %963 = vmatpush1.bf16.msra.mxu0 %v907
      %964 = vmatprep.subr.bf16.mxu0 0
      %965 = vmatpush1.bf16.msra.mxu0 %v908
      %966 = vmatprep.subr.bf16.mxu0 0
      %967 = vmatpush1.bf16.msra.mxu0 %v909
      %968 = vmatprep.subr.bf16.mxu0 0
      %969 = vmatpush1.bf16.msra.mxu0 %v910
      %970 = vmatprep.subr.bf16.mxu0 0
      %971 = vmatpush1.bf16.msra.mxu0 %v911
      %972 = vmatprep.subr.bf16.mxu0 0
      %973 = vmatpush1.bf16.msra.mxu0 %v912
      %974 = vmatprep.subr.bf16.mxu0 0
      %975 = vmatpush1.bf16.msra.mxu0 %v913
      %976 = vmatprep.subr.bf16.mxu0 0
      %977 = vmatpush1.bf16.msra.mxu0 %v914
      %978 = vmatprep.subr.bf16.mxu0 0
      %979 = vmatpush1.bf16.msra.mxu0 %v915
      %980 = vmatprep.mubr.bf16.mxu0 %v290
      %981 = vmatmul.mubr.bf16.gmra.mrb[0].mxu0 %v289
      %v982 = vpop.f32.mrb[0].mxu0
      %v983 = vadd.f32 %v726, %v982
      %v984 = vpop.f32.mrb[0].mxu0
      %v985 = vpop.f32.mrb[0].mxu0
      %v986 = vadd.f32 %v729, %v985
      %v987 = vpop.f32.mrb[0].mxu0
      %988 = vmatprep.mubr.bf16.mxu0 %v291
      %989 = vmatmul.mubr.bf16.gmra.mrb[0].mxu0 %v290
      %v990 = vpop.f32.mrb[0].mxu0
      %v991 = vadd.f32 %v734, %v990
      %v992 = vpop.f32.mrb[0].mxu0
      %v993 = vpop.f32.mrb[0].mxu0
      %v994 = vadd.f32 %v737, %v993
      %v995 = vpop.f32.mrb[0].mxu0
      %996 = vmatprep.mubr.bf16.mxu0 %v292
      %997 = vmatmul.mubr.bf16.gmra.mrb[0].mxu0 %v291
      %v998 = vpop.f32.mrb[0].mxu0
      %v999 = vadd.f32 %v742, %v998
      %v1000 = vpop.f32.mrb[0].mxu0
      %v1001 = vpop.f32.mrb[0].mxu0
      %v1002 = vadd.f32 %v745, %v1001
      %v1003 = vpop.f32.mrb[0].mxu0
      %1004 = vmatprep.mubr.bf16.mxu0 %v293
      %1005 = vmatmul.mubr.bf16.gmra.mrb[0].mxu0 %v292
      %v1006 = vpop.f32.mrb[0].mxu0
      %v1007 = vadd.f32 %v750, %v1006
      %v1008 = vpop.f32.mrb[0].mxu0
      %v1009 = vpop.f32.mrb[0].mxu0
      %v1010 = vadd.f32 %v753, %v1009
      %v1011 = vpop.f32.mrb[0].mxu0
      %1012 = vmatprep.mubr.bf16.mxu0 %v294
      %1013 = vmatmul.mubr.bf16.gmra.mrb[0].mxu0 %v293
      %v1014 = vpop.f32.mrb[0].mxu0
      %v1015 = vadd.f32 %v758, %v1014
      %v1016 = vpop.f32.mrb[0].mxu0
      %v1017 = vpop.f32.mrb[0].mxu0
      %v1018 = vadd.f32 %v761, %v1017
      %v1019 = vpop.f32.mrb[0].mxu0
      %1020 = vmatprep.mubr.bf16.mxu0 %v295
      %1021 = vmatmul.mubr.bf16.gmra.mrb[0].mxu0 %v294
      %v1022 = vpop.f32.mrb[0].mxu0
      %v1023 = vadd.f32 %v766, %v1022
      %v1024 = vpop.f32.mrb[0].mxu0
      %v1025 = vpop.f32.mrb[0].mxu0
      %v1026 = vadd.f32 %v769, %v1025
      %v1027 = vpop.f32.mrb[0].mxu0
      %1028 = vmatprep.mubr.bf16.mxu0 %v296
      %1029 = vmatmul.mubr.bf16.gmra.mrb[0].mxu0 %v295
      %v1030 = vpop.f32.mrb[0].mxu0
      %v1031 = vadd.f32 %v774, %v1030
      %v1032 = vpop.f32.mrb[0].mxu0
      %v1033 = vpop.f32.mrb[0].mxu0
      %v1034 = vadd.f32 %v777, %v1033
      %v1035 = vpop.f32.mrb[0].mxu0
      %1036 = vmatprep.mubr.bf16.mxu0 %v297
      %1037 = vmatmul.mubr.bf16.gmra.mrb[0].mxu0 %v296
      %v1038 = vpop.f32.mrb[0].mxu0
      %v1039 = vadd.f32 %v782, %v1038
      %v1040 = vpop.f32.mrb[0].mxu0
      %v1041 = vpop.f32.mrb[0].mxu0
      %v1042 = vadd.f32 %v785, %v1041
      %v1043 = vpop.f32.mrb[0].mxu0
      %1044 = vmatprep.mubr.bf16.mxu0 %v298
      %1045 = vmatmul.mubr.bf16.gmra.mrb[0].mxu0 %v297
      %v1046 = vpop.f32.mrb[0].mxu0
      %v1047 = vadd.f32 %v790, %v1046
      %v1048 = vpop.f32.mrb[0].mxu0
      %v1049 = vpop.f32.mrb[0].mxu0
      %v1050 = vadd.f32 %v793, %v1049
      %v1051 = vpop.f32.mrb[0].mxu0
      %1052 = vmatprep.mubr.bf16.mxu0 %v299
      %1053 = vmatmul.mubr.bf16.gmra.mrb[0].mxu0 %v298
      %v1054 = vpop.f32.mrb[0].mxu0
      %v1055 = vadd.f32 %v798, %v1054
      %v1056 = vpop.f32.mrb[0].mxu0
      %v1057 = vpop.f32.mrb[0].mxu0
      %v1058 = vadd.f32 %v801, %v1057
      %v1059 = vpop.f32.mrb[0].mxu0
      %1060 = vdwg.mxu0
      %1061 = vmatprep.subr.bf16.mxu0 0
      %1062 = vmatpush1.bf16.msra.mxu0 %v916
      %1063 = vmatprep.subr.bf16.mxu0 0
      %1064 = vmatpush1.bf16.msra.mxu0 %v917
      %1065 = vmatprep.subr.bf16.mxu0 0
      %1066 = vmatpush1.bf16.msra.mxu0 %v918
      %1067 = vmatprep.subr.bf16.mxu0 0
      %1068 = vmatpush1.bf16.msra.mxu0 %v919
      %1069 = vmatprep.subr.bf16.mxu0 0
      %1070 = vmatpush1.bf16.msra.mxu0 %v920
      %1071 = vmatprep.subr.bf16.mxu0 0
      %1072 = vmatpush1.bf16.msra.mxu0 %v921
      %1073 = vmatprep.subr.bf16.mxu0 0
      %1074 = vmatpush1.bf16.msra.mxu0 %v922
      %1075 = vmatprep.subr.bf16.mxu0 0
      %1076 = vmatpush1.bf16.msra.mxu0 %v923
      %1077 = vmatprep.subr.bf16.mxu0 0
      %1078 = vmatpush1.bf16.msra.mxu0 0
      %1079 = vmatprep.subr.bf16.mxu0 0
      %1080 = vmatpush1.bf16.msra.mxu0 0
      %1081 = vmatprep.subr.bf16.mxu0 0
      %1082 = vmatpush1.bf16.msra.mxu0 0
      %1083 = vmatprep.subr.bf16.mxu0 0
      %1084 = vmatpush1.bf16.msra.mxu0 0
      %1085 = vmatprep.subr.bf16.mxu0 0
      %1086 = vmatpush1.bf16.msra.mxu0 0
      %1087 = vmatprep.subr.bf16.mxu0 0
      %1088 = vmatpush1.bf16.msra.mxu0 0
      %1089 = vmatprep.subr.bf16.mxu0 0
      %1090 = vmatpush1.bf16.msra.mxu0 0
      %1091 = vmatprep.subr.bf16.mxu0 0
      %1092 = vmatpush1.bf16.msra.mxu0 0
      %1093 = vmatprep.mubr.bf16.mxu0 0
      %1094 = vmatmul.mubr.bf16.gmra.mrb[0].mxu0 %v291
      %v1095 = vpop.f32.mrb[0].mxu0
      %v1096 = vadd.f32 %v983, %v1095
      %v1097 = vpop.f32.mrb[0].mxu0
      %v1098 = vpop.f32.mrb[0].mxu0
      %v1099 = vadd.f32 %v986, %v1098
      %v1100 = vpop.f32.mrb[0].mxu0
      %1101 = vmatprep.mubr.bf16.mxu0 0
      %1102 = vmatmul.mubr.bf16.gmra.mrb[0].mxu0 %v292
      %v1103 = vpop.f32.mrb[0].mxu0
      %v1104 = vadd.f32 %v991, %v1103
      %v1105 = vpop.f32.mrb[0].mxu0
      %v1106 = vpop.f32.mrb[0].mxu0
      %v1107 = vadd.f32 %v994, %v1106
      %v1108 = vpop.f32.mrb[0].mxu0
      %1109 = vmatprep.mubr.bf16.mxu0 0
      %1110 = vmatmul.mubr.bf16.gmra.mrb[0].mxu0 %v293
      %v1111 = vpop.f32.mrb[0].mxu0
      %v1112 = vadd.f32 %v999, %v1111
      %v1113 = vpop.f32.mrb[0].mxu0
      %v1114 = vpop.f32.mrb[0].mxu0
      %v1115 = vadd.f32 %v1002, %v1114
      %v1116 = vpop.f32.mrb[0].mxu0
      %1117 = vmatprep.mubr.bf16.mxu0 0
      %1118 = vmatmul.mubr.bf16.gmra.mrb[0].mxu0 %v294
      %v1119 = vpop.f32.mrb[0].mxu0
      %v1120 = vadd.f32 %v1007, %v1119
      %v1121 = vpop.f32.mrb[0].mxu0
      %v1122 = vpop.f32.mrb[0].mxu0
      %v1123 = vadd.f32 %v1010, %v1122
      %v1124 = vpop.f32.mrb[0].mxu0
      %1125 = vmatprep.mubr.bf16.mxu0 0
      %1126 = vmatmul.mubr.bf16.gmra.mrb[0].mxu0 %v295
      %v1127 = vpop.f32.mrb[0].mxu0
      %v1128 = vadd.f32 %v1015, %v1127
      %v1129 = vpop.f32.mrb[0].mxu0
      %v1130 = vpop.f32.mrb[0].mxu0
      %v1131 = vadd.f32 %v1018, %v1130
      %v1132 = vpop.f32.mrb[0].mxu0
      %1133 = vmatprep.mubr.bf16.mxu0 0
      %1134 = vmatmul.mubr.bf16.gmra.mrb[0].mxu0 %v296
      %v1135 = vpop.f32.mrb[0].mxu0
      %v1136 = vadd.f32 %v1023, %v1135
      %v1137 = vpop.f32.mrb[0].mxu0
      %v1138 = vpop.f32.mrb[0].mxu0
      %v1139 = vadd.f32 %v1026, %v1138
      %v1140 = vpop.f32.mrb[0].mxu0
      %1141 = vmatprep.mubr.bf16.mxu0 0
      %1142 = vmatmul.mubr.bf16.gmra.mrb[0].mxu0 %v297
      %v1143 = vpop.f32.mrb[0].mxu0
      %v1144 = vadd.f32 %v1031, %v1143
      %v1145 = vpop.f32.mrb[0].mxu0
      %v1146 = vpop.f32.mrb[0].mxu0
      %v1147 = vadd.f32 %v1034, %v1146
      %v1148 = vpop.f32.mrb[0].mxu0
      %1149 = vmatprep.mubr.bf16.mxu0 0
      %1150 = vmatmul.mubr.bf16.gmra.mrb[0].mxu0 %v298
      %v1151 = vpop.f32.mrb[0].mxu0
      %v1152 = vadd.f32 %v1039, %v1151
      %v1153 = vpop.f32.mrb[0].mxu0
      %v1154 = vpop.f32.mrb[0].mxu0
      %v1155 = vadd.f32 %v1042, %v1154
      %v1156 = vpop.f32.mrb[0].mxu0
      %1157 = vmatprep.mubr.bf16.mxu0 0
      %1158 = vmatmul.mubr.bf16.gmra.mrb[0].mxu0 %v299
      %v1159 = vpop.f32.mrb[0].mxu0
      %v1160 = vadd.f32 %v1047, %v1159
      %v1161 = vpop.f32.mrb[0].mxu0
      %v1162 = vpop.f32.mrb[0].mxu0
      %v1163 = vadd.f32 %v1050, %v1162
      %v1164 = vpop.f32.mrb[0].mxu0
      %1165 = vmatprep.mubr.bf16.mxu0 0
      %1166 = vmatmul.mubr.bf16.gmra.mrb[0].mxu0 %v300
      %v1167 = vpop.f32.mrb[0].mxu0
      %v1168 = vadd.f32 %v1055, %v1167
      %v1169 = vpop.f32.mrb[0].mxu0
      %v1170 = vpop.f32.mrb[0].mxu0
      %v1171 = vadd.f32 %v1058, %v1170
      %v1172 = vpop.f32.mrb[0].mxu0
      %1173 = vdwg.mxu0
      %v1174 = vld [vmem:[%s252 + $0x2] sm:$0xff]
      %v1175 = vld [vmem:[%s252 + $0xa] sm:$0xff]
      %v1176 = vld [vmem:[%s252 + $0x1a] sm:$0xff]
      %v1177 = vld [vmem:[%s252 + $0x22] sm:$0xff]
      %v1178 = vld [vmem:[%s252 + $0x32] sm:$0xff]
      %v1179 = vld [vmem:[%s252 + $0x3a] sm:$0xff]
      %v1180 = vld [vmem:[%s252 + $0x4a] sm:$0xff]
      %v1181 = vld [vmem:[%s252 + $0x52] sm:$0xff]
      %v1182 = vld [vmem:[%s252 + $0x62] sm:$0xff]
      %v1183 = vld [vmem:[%s252 + $0x6a] sm:$0xff]
      %v1184 = vld [vmem:[%s252 + $0x7a] sm:$0xff]
      %v1185 = vld [vmem:[%s252 + $0x82] sm:$0xff]
      %v1186 = vld [vmem:[%s252 + $0x92] sm:$0xff]
      %v1187 = vld [vmem:[%s252 + $0x9a] sm:$0xff]
      %v1188 = vld [vmem:[%s252 + $0xaa] sm:$0xff]
      %v1189 = vld [vmem:[%s252 + $0xb2] sm:$0xff]
      %v1190 = vld [vmem:[%s252 + $0xc2] sm:$0xff]
      %v1191 = vld [vmem:[%s252 + $0xca] sm:$0xff]
      %v1192 = vld [vmem:[%s252 + $0xda] sm:$0xff]
      %v1193 = vld [vmem:[%s252 + $0xe2] sm:$0xff]
      %v1194 = vld [vmem:[%s252 + $0xf2] sm:$0xff]
      %v1195 = vld [vmem:[%s252 + $0xfa] sm:$0xff]
      %v1196 = vld [vmem:[%s252 + $0x10a] sm:$0xff]
      %v1197 = vld [vmem:[%s252 + $0x112] sm:$0xff]
      %v1198 = vpack.c.bf16 %v1175, %v1174
      %v1199 = vpack.c.bf16 %v1177, %v1176
      %v1200 = vpack.c.bf16 %v1179, %v1178
      %v1201 = vpack.c.bf16 %v1181, %v1180
      %v1202 = vpack.c.bf16 %v1183, %v1182
      %v1203 = vpack.c.bf16 %v1185, %v1184
      %v1204 = vpack.c.bf16 %v1187, %v1186
      %v1205 = vpack.c.bf16 %v1189, %v1188
      %v1206 = vpack.c.bf16 %v1191, %v1190
      %v1207 = vpack.c.bf16 %v1193, %v1192
      %v1208 = vpack.c.bf16 %v1195, %v1194
      %v1209 = vpack.c.bf16 %v1197, %v1196
      %s1210 = scalar_lea.vmem %s1, 384
      %v1211 = vld [vmem:[%s1210] sm:$0xf]
      %v1212 = vld [vmem:[%s1210 + $0x4] sm:$0xf]
      %v1213 = vld [vmem:[%s1210 + $0x8] sm:$0xf]
      %v1214 = vld [vmem:[%s1210 + $0xc] sm:$0xf]
      %v1215 = vld [vmem:[%s1210 + $0x10] sm:$0xf]
      %v1216 = vld [vmem:[%s1210 + $0x14] sm:$0xf]
      %v1217 = vld [vmem:[%s1210 + $0x18] sm:$0xf]
      %v1218 = vld [vmem:[%s1210 + $0x1c] sm:$0xf]
      %v1219 = vld [vmem:[%s1210 + $0x20] sm:$0xf]
      %v1220 = vld [vmem:[%s1210 + $0x24] sm:$0xf]
      %v1221 = vld [vmem:[%s1210 + $0x28] sm:$0xf]
      %v1222 = vld [vmem:[%s1210 + $0x2c] sm:$0xf]
      %v1223 = vld [vmem:[%s1210 + $0x30] sm:$0xf]
      %v1224 = vld [vmem:[%s1210 + $0x34] sm:$0xf]
      %v1225 = vld [vmem:[%s1210 + $0x38] sm:$0xf]
      %v1226 = vld [vmem:[%s1210 + $0x3c] sm:$0xf]
      %v1227 = vld [vmem:[%s1210 + $0x40] sm:$0xf]
      %v1228 = vld [vmem:[%s1210 + $0x44] sm:$0xf]
      %v1229 = vld [vmem:[%s1210 + $0x48] sm:$0xf]
      %v1230 = vld [vmem:[%s1210 + $0x4c] sm:$0xf]
      %v1231 = vld [vmem:[%s1210 + $0x50] sm:$0xf]
      %v1232 = vld [vmem:[%s1210 + $0x54] sm:$0xf]
      %v1233 = vld [vmem:[%s1210 + $0x58] sm:$0xf]
      %v1234 = vld [vmem:[%s1210 + $0x5c] sm:$0xf]
      %v1235 = vld [vmem:[%s1210 + $0x60] sm:$0xf]
      %v1236 = vld [vmem:[%s1210 + $0x64] sm:$0xf]
      %v1237 = vld [vmem:[%s1210 + $0x68] sm:$0xf]
      %v1238 = vld [vmem:[%s1210 + $0x6c] sm:$0xf]
      %v1239 = vld [vmem:[%s1210 + $0x70] sm:$0xf]
      %v1240 = vld [vmem:[%s1210 + $0x74] sm:$0xf]
      %v1241 = vld [vmem:[%s1210 + $0x78] sm:$0xf]
      %v1242 = vld [vmem:[%s1210 + $0x7c] sm:$0xf]
      %v1243 = vld [vmem:[%s1210 + $0x80] sm:$0xf]
      %v1244 = vld [vmem:[%s1210 + $0x84] sm:$0xf]
      %v1245 = vld [vmem:[%s1210 + $0x88] sm:$0xf]
      %v1246 = vld [vmem:[%s1210 + $0x8c] sm:$0xf]
      %v1247 = vld [vmem:[%s1210 + $0x90] sm:$0xf]
      %v1248 = vld [vmem:[%s1210 + $0x94] sm:$0xf]
      %v1249 = vld [vmem:[%s1210 + $0x98] sm:$0xf]
      %v1250 = vld [vmem:[%s1210 + $0x9c] sm:$0xf]
      %v1251 = vld [vmem:[%s1210 + $0xa0] sm:$0xf]
      %v1252 = vld [vmem:[%s1210 + $0xa4] sm:$0xf]
      %v1253 = vld [vmem:[%s1210 + $0xa8] sm:$0xf]
      %v1254 = vld [vmem:[%s1210 + $0xac] sm:$0xf]
      %v1255 = vld [vmem:[%s1210 + $0xb0] sm:$0xf]
      %v1256 = vld [vmem:[%s1210 + $0xb4] sm:$0xf]
      %v1257 = vld [vmem:[%s1210 + $0xb8] sm:$0xf]
      %v1258 = vld [vmem:[%s1210 + $0xbc] sm:$0xf]
      %v1307 = vunpack.c.l.b16 %v1211
      %v1308 = vunpack.c.l.b16 %v1212
      %v1309 = vunpack.c.l.b16 %v1213
      %v1310 = vunpack.c.l.b16 %v1214
      %v1311 = vunpack.c.l.b16 %v1215
      %v1312 = vunpack.c.l.b16 %v1216
      %v1313 = vunpack.c.l.b16 %v1217
      %v1314 = vunpack.c.l.b16 %v1218
      %v1315 = vunpack.c.l.b16 %v1219
      %v1316 = vunpack.c.l.b16 %v1220
      %v1317 = vunpack.c.l.b16 %v1221
      %v1318 = vunpack.c.l.b16 %v1222
      %v1319 = vunpack.c.l.b16 %v1223
      %v1320 = vunpack.c.l.b16 %v1224
      %v1321 = vunpack.c.l.b16 %v1225
      %v1322 = vunpack.c.l.b16 %v1226
      %v1323 = vunpack.c.l.b16 %v1227
      %v1324 = vunpack.c.l.b16 %v1228
      %v1325 = vunpack.c.l.b16 %v1229
      %v1326 = vunpack.c.l.b16 %v1230
      %v1327 = vunpack.c.l.b16 %v1231
      %v1328 = vunpack.c.l.b16 %v1232
      %v1329 = vunpack.c.l.b16 %v1233
      %v1330 = vunpack.c.l.b16 %v1234
      %v1331 = vunpack.c.l.b16 %v1235
      %v1332 = vunpack.c.l.b16 %v1236
      %v1333 = vunpack.c.l.b16 %v1237
      %v1334 = vunpack.c.l.b16 %v1238
      %v1335 = vunpack.c.l.b16 %v1239
      %v1336 = vunpack.c.l.b16 %v1240
      %v1337 = vunpack.c.l.b16 %v1241
      %v1338 = vunpack.c.l.b16 %v1242
      %v1339 = vunpack.c.l.b16 %v1243
      %v1340 = vunpack.c.l.b16 %v1244
      %v1341 = vunpack.c.l.b16 %v1245
      %v1342 = vunpack.c.l.b16 %v1246
      %v1343 = vunpack.c.l.b16 %v1247
      %v1344 = vunpack.c.l.b16 %v1248
      %v1345 = vunpack.c.l.b16 %v1249
      %v1346 = vunpack.c.l.b16 %v1250
      %v1347 = vunpack.c.l.b16 %v1251
      %v1348 = vunpack.c.l.b16 %v1252
      %v1349 = vunpack.c.l.b16 %v1253
      %v1350 = vunpack.c.l.b16 %v1254
      %v1351 = vunpack.c.l.b16 %v1255
      %v1352 = vunpack.c.l.b16 %v1256
      %v1353 = vunpack.c.l.b16 %v1257
      %v1354 = vunpack.c.l.b16 %v1258
      %v1355 = vpack.c.b16 %v1308, %v1307
      %v1356 = vpack.c.b16 %v1310, %v1309
      %v1357 = vpack.c.b16 %v1312, %v1311
      %v1358 = vpack.c.b16 %v1314, %v1313
      %v1359 = vpack.c.b16 %v1316, %v1315
      %v1360 = vpack.c.b16 %v1318, %v1317
      %v1361 = vpack.c.b16 %v1320, %v1319
      %v1362 = vpack.c.b16 %v1322, %v1321
      %v1363 = vpack.c.b16 %v1324, %v1323
      %v1364 = vpack.c.b16 %v1326, %v1325
      %v1365 = vpack.c.b16 %v1328, %v1327
      %v1366 = vpack.c.b16 %v1330, %v1329
      %v1367 = vpack.c.b16 %v1332, %v1331
      %v1368 = vpack.c.b16 %v1334, %v1333
      %v1369 = vpack.c.b16 %v1336, %v1335
      %v1370 = vpack.c.b16 %v1338, %v1337
      %v1371 = vpack.c.b16 %v1340, %v1339
      %v1372 = vpack.c.b16 %v1342, %v1341
      %v1373 = vpack.c.b16 %v1344, %v1343
      %v1374 = vpack.c.b16 %v1346, %v1345
      %v1375 = vpack.c.b16 %v1348, %v1347
      %v1376 = vpack.c.b16 %v1350, %v1349
      %v1377 = vpack.c.b16 %v1352, %v1351
      %v1378 = vpack.c.b16 %v1354, %v1353
      %1403 = vmatprep.subr.bf16.mxu0 0
      %1404 = vmatpush1.bf16.msra.mxu0 %v1355
      %1405 = vmatprep.subr.bf16.mxu0 0
      %1406 = vmatpush1.bf16.msra.mxu0 %v1356
      %1407 = vmatprep.subr.bf16.mxu0 0
      %1408 = vmatpush1.bf16.msra.mxu0 %v1357
      %1409 = vmatprep.subr.bf16.mxu0 0
      %1410 = vmatpush1.bf16.msra.mxu0 %v1358
      %1411 = vmatprep.subr.bf16.mxu0 0
      %1412 = vmatpush1.bf16.msra.mxu0 %v1359
      %1413 = vmatprep.subr.bf16.mxu0 0
      %1414 = vmatpush1.bf16.msra.mxu0 %v1360
      %1415 = vmatprep.subr.bf16.mxu0 0
      %1416 = vmatpush1.bf16.msra.mxu0 %v1361
      %1417 = vmatprep.subr.bf16.mxu0 0
      %1418 = vmatpush1.bf16.msra.mxu0 %v1362
      %1419 = vmatprep.subr.bf16.mxu0 0
      %1420 = vmatpush1.bf16.msra.mxu0 %v1363
      %1421 = vmatprep.subr.bf16.mxu0 0
      %1422 = vmatpush1.bf16.msra.mxu0 %v1364
      %1423 = vmatprep.subr.bf16.mxu0 0
      %1424 = vmatpush1.bf16.msra.mxu0 %v1365
      %1425 = vmatprep.subr.bf16.mxu0 0
      %1426 = vmatpush1.bf16.msra.mxu0 %v1366
      %1427 = vmatprep.subr.bf16.mxu0 0
      %1428 = vmatpush1.bf16.msra.mxu0 %v1367
      %1429 = vmatprep.subr.bf16.mxu0 0
      %1430 = vmatpush1.bf16.msra.mxu0 %v1368
      %1431 = vmatprep.subr.bf16.mxu0 0
      %1432 = vmatpush1.bf16.msra.mxu0 %v1369
      %1433 = vmatprep.subr.bf16.mxu0 0
      %1434 = vmatpush1.bf16.msra.mxu0 %v1370
      %1435 = vmatprep.mubr.bf16.mxu0 %v1199
      %1436 = vmatmul.mubr.bf16.gmra.mrb[0].mxu0 %v1198
      %v1437 = vpop.f32.mrb[0].mxu0
      %v1438 = vadd.f32 0.0, %v1437
      %v1439 = vpop.f32.mrb[0].mxu0
      %v1440 = vpop.f32.mrb[0].mxu0
      %v1441 = vadd.f32 0.0, %v1440
      %v1442 = vpop.f32.mrb[0].mxu0
      %1443 = vmatprep.mubr.bf16.mxu0 %v1200
      %1444 = vmatmul.mubr.bf16.gmra.mrb[0].mxu0 %v1199
      %v1445 = vpop.f32.mrb[0].mxu0
      %v1446 = vadd.f32 0.0, %v1445
      %v1447 = vpop.f32.mrb[0].mxu0
      %v1448 = vpop.f32.mrb[0].mxu0
      %v1449 = vadd.f32 0.0, %v1448
      %v1450 = vpop.f32.mrb[0].mxu0
      %1451 = vmatprep.mubr.bf16.mxu0 %v1201
      %1452 = vmatmul.mubr.bf16.gmra.mrb[0].mxu0 %v1200
      %v1453 = vpop.f32.mrb[0].mxu0
      %v1454 = vadd.f32 0.0, %v1453
      %v1455 = vpop.f32.mrb[0].mxu0
      %v1456 = vpop.f32.mrb[0].mxu0
      %v1457 = vadd.f32 0.0, %v1456
      %v1458 = vpop.f32.mrb[0].mxu0
      %1459 = vmatprep.mubr.bf16.mxu0 %v1202
      %1460 = vmatmul.mubr.bf16.gmra.mrb[0].mxu0 %v1201
      %v1461 = vpop.f32.mrb[0].mxu0
      %v1462 = vadd.f32 0.0, %v1461
      %v1463 = vpop.f32.mrb[0].mxu0
      %v1464 = vpop.f32.mrb[0].mxu0
      %v1465 = vadd.f32 0.0, %v1464
      %v1466 = vpop.f32.mrb[0].mxu0
      %1467 = vmatprep.mubr.bf16.mxu0 %v1203
      %1468 = vmatmul.mubr.bf16.gmra.mrb[0].mxu0 %v1202
      %v1469 = vpop.f32.mrb[0].mxu0
      %v1470 = vadd.f32 0.0, %v1469
      %v1471 = vpop.f32.mrb[0].mxu0
      %v1472 = vpop.f32.mrb[0].mxu0
      %v1473 = vadd.f32 0.0, %v1472
      %v1474 = vpop.f32.mrb[0].mxu0
      %1475 = vmatprep.mubr.bf16.mxu0 %v1204
      %1476 = vmatmul.mubr.bf16.gmra.mrb[0].mxu0 %v1203
      %v1477 = vpop.f32.mrb[0].mxu0
      %v1478 = vadd.f32 0.0, %v1477
      %v1479 = vpop.f32.mrb[0].mxu0
      %v1480 = vpop.f32.mrb[0].mxu0
      %v1481 = vadd.f32 0.0, %v1480
      %v1482 = vpop.f32.mrb[0].mxu0
      %1483 = vmatprep.mubr.bf16.mxu0 %v1205
      %1484 = vmatmul.mubr.bf16.gmra.mrb[0].mxu0 %v1204
      %v1485 = vpop.f32.mrb[0].mxu0
      %v1486 = vadd.f32 0.0, %v1485
      %v1487 = vpop.f32.mrb[0].mxu0
      %v1488 = vpop.f32.mrb[0].mxu0
      %v1489 = vadd.f32 0.0, %v1488
      %v1490 = vpop.f32.mrb[0].mxu0
      %1491 = vmatprep.mubr.bf16.mxu0 %v1206
      %1492 = vmatmul.mubr.bf16.gmra.mrb[0].mxu0 %v1205
      %v1493 = vpop.f32.mrb[0].mxu0
      %v1494 = vadd.f32 0.0, %v1493
      %v1495 = vpop.f32.mrb[0].mxu0
      %v1496 = vpop.f32.mrb[0].mxu0
      %v1497 = vadd.f32 0.0, %v1496
      %v1498 = vpop.f32.mrb[0].mxu0
      %1499 = vmatprep.mubr.bf16.mxu0 %v1207
      %1500 = vmatmul.mubr.bf16.gmra.mrb[0].mxu0 %v1206
      %v1501 = vpop.f32.mrb[0].mxu0
      %v1502 = vadd.f32 0.0, %v1501
      %v1503 = vpop.f32.mrb[0].mxu0
      %v1504 = vpop.f32.mrb[0].mxu0
      %v1505 = vadd.f32 0.0, %v1504
      %v1506 = vpop.f32.mrb[0].mxu0
      %1507 = vmatprep.mubr.bf16.mxu0 %v1208
      %1508 = vmatmul.mubr.bf16.gmra.mrb[0].mxu0 %v1207
      %v1509 = vpop.f32.mrb[0].mxu0
      %v1510 = vadd.f32 0.0, %v1509
      %v1511 = vpop.f32.mrb[0].mxu0
      %v1512 = vpop.f32.mrb[0].mxu0
      %v1513 = vadd.f32 0.0, %v1512
      %v1514 = vpop.f32.mrb[0].mxu0
      %1515 = vdwg.mxu0
      %1516 = vmatprep.subr.bf16.mxu0 0
      %1517 = vmatpush1.bf16.msra.mxu0 %v1371
      %1518 = vmatprep.subr.bf16.mxu0 0
      %1519 = vmatpush1.bf16.msra.mxu0 %v1372
      %1520 = vmatprep.subr.bf16.mxu0 0
      %1521 = vmatpush1.bf16.msra.mxu0 %v1373
      %1522 = vmatprep.subr.bf16.mxu0 0
      %1523 = vmatpush1.bf16.msra.mxu0 %v1374
      %1524 = vmatprep.subr.bf16.mxu0 0
      %1525 = vmatpush1.bf16.msra.mxu0 %v1375
      %1526 = vmatprep.subr.bf16.mxu0 0
      %1527 = vmatpush1.bf16.msra.mxu0 %v1376
      %1528 = vmatprep.subr.bf16.mxu0 0
      %1529 = vmatpush1.bf16.msra.mxu0 %v1377
      %1530 = vmatprep.subr.bf16.mxu0 0
      %1531 = vmatpush1.bf16.msra.mxu0 %v1378
      %1532 = vmatprep.subr.bf16.mxu0 0
      %1533 = vmatpush1.bf16.msra.mxu0 0
      %1534 = vmatprep.subr.bf16.mxu0 0
      %1535 = vmatpush1.bf16.msra.mxu0 0
      %1536 = vmatprep.subr.bf16.mxu0 0
      %1537 = vmatpush1.bf16.msra.mxu0 0
      %1538 = vmatprep.subr.bf16.mxu0 0
      %1539 = vmatpush1.bf16.msra.mxu0 0
      %1540 = vmatprep.subr.bf16.mxu0 0
      %1541 = vmatpush1.bf16.msra.mxu0 0
      %1542 = vmatprep.subr.bf16.mxu0 0
      %1543 = vmatpush1.bf16.msra.mxu0 0
      %1544 = vmatprep.subr.bf16.mxu0 0
      %1545 = vmatpush1.bf16.msra.mxu0 0
      %1546 = vmatprep.subr.bf16.mxu0 0
      %1547 = vmatpush1.bf16.msra.mxu0 0
      %1548 = vmatprep.mubr.bf16.mxu0 0
      %1549 = vmatmul.mubr.bf16.gmra.mrb[0].mxu0 %v1200
      %v1550 = vpop.f32.mrb[0].mxu0
      %v1551 = vadd.f32 %v1438, %v1550
      %v1552 = vpop.f32.mrb[0].mxu0
      %v1553 = vpop.f32.mrb[0].mxu0
      %v1554 = vadd.f32 %v1441, %v1553
      %v1555 = vpop.f32.mrb[0].mxu0
      %1556 = vmatprep.mubr.bf16.mxu0 0
      %1557 = vmatmul.mubr.bf16.gmra.mrb[0].mxu0 %v1201
      %v1558 = vpop.f32.mrb[0].mxu0
      %v1559 = vadd.f32 %v1446, %v1558
      %v1560 = vpop.f32.mrb[0].mxu0
      %v1561 = vpop.f32.mrb[0].mxu0
      %v1562 = vadd.f32 %v1449, %v1561
      %v1563 = vpop.f32.mrb[0].mxu0
      %1564 = vmatprep.mubr.bf16.mxu0 0
      %1565 = vmatmul.mubr.bf16.gmra.mrb[0].mxu0 %v1202
      %v1566 = vpop.f32.mrb[0].mxu0
      %v1567 = vadd.f32 %v1454, %v1566
      %v1568 = vpop.f32.mrb[0].mxu0
      %v1569 = vpop.f32.mrb[0].mxu0
      %v1570 = vadd.f32 %v1457, %v1569
      %v1571 = vpop.f32.mrb[0].mxu0
      %1572 = vmatprep.mubr.bf16.mxu0 0
      %1573 = vmatmul.mubr.bf16.gmra.mrb[0].mxu0 %v1203
      %v1574 = vpop.f32.mrb[0].mxu0
      %v1575 = vadd.f32 %v1462, %v1574
      %v1576 = vpop.f32.mrb[0].mxu0
      %v1577 = vpop.f32.mrb[0].mxu0
      %v1578 = vadd.f32 %v1465, %v1577
      %v1579 = vpop.f32.mrb[0].mxu0
      %1580 = vmatprep.mubr.bf16.mxu0 0
      %1581 = vmatmul.mubr.bf16.gmra.mrb[0].mxu0 %v1204
      %v1582 = vpop.f32.mrb[0].mxu0
      %v1583 = vadd.f32 %v1470, %v1582
      %v1584 = vpop.f32.mrb[0].mxu0
      %v1585 = vpop.f32.mrb[0].mxu0
      %v1586 = vadd.f32 %v1473, %v1585
      %v1587 = vpop.f32.mrb[0].mxu0
      %1588 = vmatprep.mubr.bf16.mxu0 0
      %1589 = vmatmul.mubr.bf16.gmra.mrb[0].mxu0 %v1205
      %v1590 = vpop.f32.mrb[0].mxu0
      %v1591 = vadd.f32 %v1478, %v1590
      %v1592 = vpop.f32.mrb[0].mxu0
      %v1593 = vpop.f32.mrb[0].mxu0
      %v1594 = vadd.f32 %v1481, %v1593
      %v1595 = vpop.f32.mrb[0].mxu0
      %1596 = vmatprep.mubr.bf16.mxu0 0
      %1597 = vmatmul.mubr.bf16.gmra.mrb[0].mxu0 %v1206
      %v1598 = vpop.f32.mrb[0].mxu0
      %v1599 = vadd.f32 %v1486, %v1598
      %v1600 = vpop.f32.mrb[0].mxu0
      %v1601 = vpop.f32.mrb[0].mxu0
      %v1602 = vadd.f32 %v1489, %v1601
      %v1603 = vpop.f32.mrb[0].mxu0
      %1604 = vmatprep.mubr.bf16.mxu0 0
      %1605 = vmatmul.mubr.bf16.gmra.mrb[0].mxu0 %v1207
      %v1606 = vpop.f32.mrb[0].mxu0
      %v1607 = vadd.f32 %v1494, %v1606
      %v1608 = vpop.f32.mrb[0].mxu0
      %v1609 = vpop.f32.mrb[0].mxu0
      %v1610 = vadd.f32 %v1497, %v1609
      %v1611 = vpop.f32.mrb[0].mxu0
      %1612 = vmatprep.mubr.bf16.mxu0 0
      %1613 = vmatmul.mubr.bf16.gmra.mrb[0].mxu0 %v1208
      %v1614 = vpop.f32.mrb[0].mxu0
      %v1615 = vadd.f32 %v1502, %v1614
      %v1616 = vpop.f32.mrb[0].mxu0
      %v1617 = vpop.f32.mrb[0].mxu0
      %v1618 = vadd.f32 %v1505, %v1617
      %v1619 = vpop.f32.mrb[0].mxu0
      %1620 = vmatprep.mubr.bf16.mxu0 0
      %1621 = vmatmul.mubr.bf16.gmra.mrb[0].mxu0 %v1209
      %v1622 = vpop.f32.mrb[0].mxu0
      %v1623 = vadd.f32 %v1510, %v1622
      %v1624 = vpop.f32.mrb[0].mxu0
      %v1625 = vpop.f32.mrb[0].mxu0
      %v1626 = vadd.f32 %v1513, %v1625
      %v1627 = vpop.f32.mrb[0].mxu0
      %1628 = vdwg.mxu0
      %v1629 = vadd.f32 %v1096, %v1551
      %v1630 = vadd.f32 %v1099, %v1554
      %v1631 = vadd.f32 %v1104, %v1559
      %v1632 = vadd.f32 %v1107, %v1562
      %v1633 = vadd.f32 %v1112, %v1567
      %v1634 = vadd.f32 %v1115, %v1570
      %v1635 = vadd.f32 %v1120, %v1575
      %v1636 = vadd.f32 %v1123, %v1578
      %v1637 = vadd.f32 %v1128, %v1583
      %v1638 = vadd.f32 %v1131, %v1586
      %v1639 = vadd.f32 %v1136, %v1591
      %v1640 = vadd.f32 %v1139, %v1594
      %v1641 = vadd.f32 %v1144, %v1599
      %v1642 = vadd.f32 %v1147, %v1602
      %v1643 = vadd.f32 %v1152, %v1607
      %v1644 = vadd.f32 %v1155, %v1610
      %v1645 = vadd.f32 %v1160, %v1615
      %v1646 = vadd.f32 %v1163, %v1618
      %v1647 = vadd.f32 %v1168, %v1623
      %v1648 = vadd.f32 %v1171, %v1626
      %v1649 = vld [vmem:[%s2] sm:$0x1]
      %v1651 = vlaneseq
      %v1652 = vshrl.u32 %v1651, 7
      %v1653 = vsub.s32 0, %v1652
      %v1654 = vrot.slane %v1649, %v1653
      %v1656 = vadd.f32 %v1629, %v1654
      %v1657 = vadd.f32 %v1630, %v1654
      %v1658 = vadd.f32 %v1631, %v1654
      %v1659 = vadd.f32 %v1632, %v1654
      %v1660 = vadd.f32 %v1633, %v1654
      %v1661 = vadd.f32 %v1634, %v1654
      %v1662 = vadd.f32 %v1635, %v1654
      %v1663 = vadd.f32 %v1636, %v1654
      %v1664 = vadd.f32 %v1637, %v1654
      %v1665 = vadd.f32 %v1638, %v1654
      %v1666 = vadd.f32 %v1639, %v1654
      %v1667 = vadd.f32 %v1640, %v1654
      %v1668 = vadd.f32 %v1641, %v1654
      %v1669 = vadd.f32 %v1642, %v1654
      %v1670 = vadd.f32 %v1643, %v1654
      %v1671 = vadd.f32 %v1644, %v1654
      %v1672 = vadd.f32 %v1645, %v1654
      %v1673 = vadd.f32 %v1646, %v1654
      %v1674 = vadd.f32 %v1647, %v1654
      %v1675 = vadd.f32 %v1648, %v1654
      %v1676 = vmax.f32 %v1656, 0.0
      %v1677 = vmax.f32 %v1657, 0.0
      %v1678 = vmax.f32 %v1658, 0.0
      %v1679 = vmax.f32 %v1659, 0.0
      %v1680 = vmax.f32 %v1660, 0.0
      %v1681 = vmax.f32 %v1661, 0.0
      %v1682 = vmax.f32 %v1662, 0.0
      %v1683 = vmax.f32 %v1663, 0.0
      %v1684 = vmax.f32 %v1664, 0.0
      %v1685 = vmax.f32 %v1665, 0.0
      %v1686 = vmax.f32 %v1666, 0.0
      %v1687 = vmax.f32 %v1667, 0.0
      %v1688 = vmax.f32 %v1668, 0.0
      %v1689 = vmax.f32 %v1669, 0.0
      %v1690 = vmax.f32 %v1670, 0.0
      %v1691 = vmax.f32 %v1671, 0.0
      %v1692 = vmax.f32 %v1672, 0.0
      %v1693 = vmax.f32 %v1673, 0.0
      %v1694 = vmax.f32 %v1674, 0.0
      %v1695 = vmax.f32 %v1675, 0.0
      %1696 = vst [vmem:[#allocation2 + $0x7] sm:$0x1] 0.0
      %1697 = vst [vmem:[#allocation2 + $0x27] sm:$0x1] 0.0
      %1698 = vst [vmem:[#allocation2 + $0x47] sm:$0x1] 0.0
      %1699 = vst [vmem:[#allocation2 + $0x67] sm:$0x1] 0.0
      %1700 = vst [vmem:[#allocation2 + $0x87] sm:$0x1] 0.0
      %1701 = vst [vmem:[#allocation2 + $0xa7] sm:$0x1] 0.0
      %1702 = vst [vmem:[#allocation2 + $0xc7] sm:$0x1] 0.0
      %1703 = vst [vmem:[#allocation2 + $0xe7] sm:$0x1] 0.0
      %1704 = vst [vmem:[#allocation2 + $0x107] sm:$0x1] 0.0
      %1705 = vst [vmem:[#allocation2 + $0x127] sm:$0x1] 0.0
      %1706 = vst [vmem:[#allocation2 + $0x18] sm:$0x1] 0.0
      %1707 = vst [vmem:[#allocation2 + $0x38] sm:$0x1] 0.0
      %1708 = vst [vmem:[#allocation2 + $0x58] sm:$0x1] 0.0
      %1709 = vst [vmem:[#allocation2 + $0x78] sm:$0x1] 0.0
      %1710 = vst [vmem:[#allocation2 + $0x98] sm:$0x1] 0.0
      %1711 = vst [vmem:[#allocation2 + $0xb8] sm:$0x1] 0.0
      %1712 = vst [vmem:[#allocation2 + $0xd8] sm:$0x1] 0.0
      %1713 = vst [vmem:[#allocation2 + $0xf8] sm:$0x1] 0.0
      %1714 = vst [vmem:[#allocation2 + $0x118] sm:$0x1] 0.0
      %1715 = vst [vmem:[#allocation2 + $0x138] sm:$0x1] 0.0
      %1716 = vst [vmem:[#allocation2 + $0x8] sm:$0xff] %v1676
      %1717 = vst [vmem:[#allocation2 + $0x10] sm:$0xff] %v1677
      %1718 = vst [vmem:[#allocation2 + $0x28] sm:$0xff] %v1678
      %1719 = vst [vmem:[#allocation2 + $0x30] sm:$0xff] %v1679
      %1720 = vst [vmem:[#allocation2 + $0x48] sm:$0xff] %v1680
      %1721 = vst [vmem:[#allocation2 + $0x50] sm:$0xff] %v1681
      %1722 = vst [vmem:[#allocation2 + $0x68] sm:$0xff] %v1682
      %1723 = vst [vmem:[#allocation2 + $0x70] sm:$0xff] %v1683
      %1724 = vst [vmem:[#allocation2 + $0x88] sm:$0xff] %v1684
      %1725 = vst [vmem:[#allocation2 + $0x90] sm:$0xff] %v1685
      %1726 = vst [vmem:[#allocation2 + $0xa8] sm:$0xff] %v1686
      %1727 = vst [vmem:[#allocation2 + $0xb0] sm:$0xff] %v1687
      %1728 = vst [vmem:[#allocation2 + $0xc8] sm:$0xff] %v1688
      %1729 = vst [vmem:[#allocation2 + $0xd0] sm:$0xff] %v1689
      %1730 = vst [vmem:[#allocation2 + $0xe8] sm:$0xff] %v1690
      %1731 = vst [vmem:[#allocation2 + $0xf0] sm:$0xff] %v1691
      %1732 = vst [vmem:[#allocation2 + $0x108] sm:$0xff] %v1692
      %1733 = vst [vmem:[#allocation2 + $0x110] sm:$0xff] %v1693
      %1734 = vst [vmem:[#allocation2 + $0x128] sm:$0xff] %v1694
      %1735 = vst [vmem:[#allocation2 + $0x130] sm:$0xff] %v1695
      %p1736 = scmp.eq.s32.totalorder %s21, 0
      // Predicated region
      $region41: #{basic_block.1} parent=39 // pred_check
        %p1737 = pneg %p1736
      $region42: #{basic_block.1} parent=39 // pred_check_branch
        %1739 = sbr.rel (%p1737) target = $region44
      $region43: #{basic_block.1} parent=39 // pred_region
        %1740 = vst [vmem:[#allocation2 + $0x8] sm:$0xff] 0.0
        %1741 = vst [vmem:[#allocation2 + $0x10] sm:$0xff] 0.0
      $region44: #{basic_block.1} parent=39 // pred_fallthru
        _
      %p1742 = scmp.eq.s32.totalorder %s21, 1
      // Predicated region
      $region45: #{basic_block.1} parent=39 // pred_check
        %p1743 = pneg %p1742
      $region46: #{basic_block.1} parent=39 // pred_check_branch
        %1745 = sbr.rel (%p1743) target = $region48
      $region47: #{basic_block.1} parent=39 // pred_region
        %s1746 = scalar_lea.vmem [#allocation2], 288
        %1747 = vst [vmem:[%s1746 + $0x8] sm:$0xff] 0.0
        %1748 = vst [vmem:[%s1746 + $0x10] sm:$0xff] 0.0
      $region48: #{basic_block.1} parent=39 // pred_fallthru
        _
      %v1749 = vld [vmem:[#allocation2 + $0x7] sm:$0xff]
      %v1750 = vld [vmem:[#allocation2 + $0xf] sm:$0xff]
      %v1751 = vld [vmem:[#allocation2 + $0x27] sm:$0xff]
      %v1752 = vld [vmem:[#allocation2 + $0x2f] sm:$0xff]
      %v1753 = vld [vmem:[#allocation2 + $0x47] sm:$0xff]
      %v1754 = vld [vmem:[#allocation2 + $0x4f] sm:$0xff]
      %v1755 = vld [vmem:[#allocation2 + $0x67] sm:$0xff]
      %v1756 = vld [vmem:[#allocation2 + $0x6f] sm:$0xff]
      %v1757 = vld [vmem:[#allocation2 + $0x87] sm:$0xff]
      %v1758 = vld [vmem:[#allocation2 + $0x8f] sm:$0xff]
      %v1759 = vld [vmem:[#allocation2 + $0xa7] sm:$0xff]
      %v1760 = vld [vmem:[#allocation2 + $0xaf] sm:$0xff]
      %v1761 = vld [vmem:[#allocation2 + $0xc7] sm:$0xff]
      %v1762 = vld [vmem:[#allocation2 + $0xcf] sm:$0xff]
      %v1763 = vld [vmem:[#allocation2 + $0xe7] sm:$0xff]
      %v1764 = vld [vmem:[#allocation2 + $0xef] sm:$0xff]
      %v1765 = vld [vmem:[#allocation2 + $0x107] sm:$0xff]
      %v1766 = vld [vmem:[#allocation2 + $0x10f] sm:$0xff]
      %v1767 = vld [vmem:[#allocation2 + $0x127] sm:$0xff]
      %v1768 = vld [vmem:[#allocation2 + $0x12f] sm:$0xff]
      %v1769 = vpack.c.bf16 %v1750, %v1749
      %v1770 = vpack.c.bf16 %v1752, %v1751
      %v1771 = vpack.c.bf16 %v1754, %v1753
      %v1772 = vpack.c.bf16 %v1756, %v1755
      %v1773 = vpack.c.bf16 %v1758, %v1757
      %v1774 = vpack.c.bf16 %v1760, %v1759
      %v1775 = vpack.c.bf16 %v1762, %v1761
      %v1776 = vpack.c.bf16 %v1764, %v1763
      %v1777 = vpack.c.bf16 %v1766, %v1765
      %v1778 = vpack.c.bf16 %v1768, %v1767
      %v1779 = vld [vmem:[%s3] sm:$0xf]
      %v1780 = vld [vmem:[%s3 + $0x4] sm:$0xf]
      %v1781 = vld [vmem:[%s3 + $0x8] sm:$0xf]
      %v1782 = vld [vmem:[%s3 + $0xc] sm:$0xf]
      %v1783 = vld [vmem:[%s3 + $0x10] sm:$0xf]
      %v1784 = vld [vmem:[%s3 + $0x14] sm:$0xf]
      %v1785 = vld [vmem:[%s3 + $0x18] sm:$0xf]
      %v1786 = vld [vmem:[%s3 + $0x1c] sm:$0xf]
      %v1787 = vld [vmem:[%s3 + $0x20] sm:$0xf]
      %v1788 = vld [vmem:[%s3 + $0x24] sm:$0xf]
      %v1789 = vld [vmem:[%s3 + $0x28] sm:$0xf]
      %v1790 = vld [vmem:[%s3 + $0x2c] sm:$0xf]
      %v1791 = vld [vmem:[%s3 + $0x30] sm:$0xf]
      %v1792 = vld [vmem:[%s3 + $0x34] sm:$0xf]
      %v1793 = vld [vmem:[%s3 + $0x38] sm:$0xf]
      %v1794 = vld [vmem:[%s3 + $0x3c] sm:$0xf]
      %v1795 = vld [vmem:[%s3 + $0x40] sm:$0xf]
      %v1796 = vld [vmem:[%s3 + $0x44] sm:$0xf]
      %v1797 = vld [vmem:[%s3 + $0x48] sm:$0xf]
      %v1798 = vld [vmem:[%s3 + $0x4c] sm:$0xf]
      %v1799 = vld [vmem:[%s3 + $0x50] sm:$0xf]
      %v1800 = vld [vmem:[%s3 + $0x54] sm:$0xf]
      %v1801 = vld [vmem:[%s3 + $0x58] sm:$0xf]
      %v1802 = vld [vmem:[%s3 + $0x5c] sm:$0xf]
      %v1803 = vld [vmem:[%s3 + $0x60] sm:$0xf]
      %v1804 = vld [vmem:[%s3 + $0x64] sm:$0xf]
      %v1805 = vld [vmem:[%s3 + $0x68] sm:$0xf]
      %v1806 = vld [vmem:[%s3 + $0x6c] sm:$0xf]
      %v1807 = vld [vmem:[%s3 + $0x70] sm:$0xf]
      %v1808 = vld [vmem:[%s3 + $0x74] sm:$0xf]
      %v1809 = vld [vmem:[%s3 + $0x78] sm:$0xf]
      %v1810 = vld [vmem:[%s3 + $0x7c] sm:$0xf]
      %v1811 = vld [vmem:[%s3 + $0x80] sm:$0xf]
      %v1812 = vld [vmem:[%s3 + $0x84] sm:$0xf]
      %v1813 = vld [vmem:[%s3 + $0x88] sm:$0xf]
      %v1814 = vld [vmem:[%s3 + $0x8c] sm:$0xf]
      %v1815 = vld [vmem:[%s3 + $0x90] sm:$0xf]
      %v1816 = vld [vmem:[%s3 + $0x94] sm:$0xf]
      %v1817 = vld [vmem:[%s3 + $0x98] sm:$0xf]
      %v1818 = vld [vmem:[%s3 + $0x9c] sm:$0xf]
      %v1819 = vld [vmem:[%s3 + $0xa0] sm:$0xf]
      %v1820 = vld [vmem:[%s3 + $0xa4] sm:$0xf]
      %v1821 = vld [vmem:[%s3 + $0xa8] sm:$0xf]
      %v1822 = vld [vmem:[%s3 + $0xac] sm:$0xf]
      %v1823 = vld [vmem:[%s3 + $0xb0] sm:$0xf]
      %v1824 = vld [vmem:[%s3 + $0xb4] sm:$0xf]
      %v1825 = vld [vmem:[%s3 + $0xb8] sm:$0xf]
      %v1826 = vld [vmem:[%s3 + $0xbc] sm:$0xf]
      %v1827 = vld [vmem:[#allocation2 + $0x8] sm:$0xff]
      %v1828 = vld [vmem:[#allocation2 + $0x10] sm:$0xff]
      %v1829 = vld [vmem:[#allocation2 + $0x28] sm:$0xff]
      %v1830 = vld [vmem:[#allocation2 + $0x30] sm:$0xff]
      %v1831 = vld [vmem:[#allocation2 + $0x48] sm:$0xff]
      %v1832 = vld [vmem:[#allocation2 + $0x50] sm:$0xff]
      %v1833 = vld [vmem:[#allocation2 + $0x68] sm:$0xff]
      %v1834 = vld [vmem:[#allocation2 + $0x70] sm:$0xff]
      %v1835 = vld [vmem:[#allocation2 + $0x88] sm:$0xff]
      %v1836 = vld [vmem:[#allocation2 + $0x90] sm:$0xff]
      %v1837 = vld [vmem:[#allocation2 + $0xa8] sm:$0xff]
      %v1838 = vld [vmem:[#allocation2 + $0xb0] sm:$0xff]
      %v1839 = vld [vmem:[#allocation2 + $0xc8] sm:$0xff]
      %v1840 = vld [vmem:[#allocation2 + $0xd0] sm:$0xff]
      %v1841 = vld [vmem:[#allocation2 + $0xe8] sm:$0xff]
      %v1842 = vld [vmem:[#allocation2 + $0xf0] sm:$0xff]
      %v1843 = vld [vmem:[#allocation2 + $0x108] sm:$0xff]
      %v1844 = vld [vmem:[#allocation2 + $0x110] sm:$0xff]
      %v1845 = vld [vmem:[#allocation2 + $0x128] sm:$0xff]
      %v1846 = vld [vmem:[#allocation2 + $0x130] sm:$0xff]
      %v1847 = vpack.c.bf16 %v1828, %v1827
      %v1848 = vpack.c.bf16 %v1830, %v1829
      %v1849 = vpack.c.bf16 %v1832, %v1831
      %v1850 = vpack.c.bf16 %v1834, %v1833
      %v1851 = vpack.c.bf16 %v1836, %v1835
      %v1852 = vpack.c.bf16 %v1838, %v1837
      %v1853 = vpack.c.bf16 %v1840, %v1839
      %v1854 = vpack.c.bf16 %v1842, %v1841
      %v1855 = vpack.c.bf16 %v1844, %v1843
      %v1856 = vpack.c.bf16 %v1846, %v1845
      %s1857 = scalar_lea.vmem %s3, 192
      %v1858 = vld [vmem:[%s1857] sm:$0xf]
      %v1859 = vld [vmem:[%s1857 + $0x4] sm:$0xf]
      %v1860 = vld [vmem:[%s1857 + $0x8] sm:$0xf]
      %v1861 = vld [vmem:[%s1857 + $0xc] sm:$0xf]
      %v1862 = vld [vmem:[%s1857 + $0x10] sm:$0xf]
      %v1863 = vld [vmem:[%s1857 + $0x14] sm:$0xf]
      %v1864 = vld [vmem:[%s1857 + $0x18] sm:$0xf]
      %v1865 = vld [vmem:[%s1857 + $0x1c] sm:$0xf]
      %v1866 = vld [vmem:[%s1857 + $0x20] sm:$0xf]
      %v1867 = vld [vmem:[%s1857 + $0x24] sm:$0xf]
      %v1868 = vld [vmem:[%s1857 + $0x28] sm:$0xf]
      %v1869 = vld [vmem:[%s1857 + $0x2c] sm:$0xf]
      %v1870 = vld [vmem:[%s1857 + $0x30] sm:$0xf]
      %v1871 = vld [vmem:[%s1857 + $0x34] sm:$0xf]
      %v1872 = vld [vmem:[%s1857 + $0x38] sm:$0xf]
      %v1873 = vld [vmem:[%s1857 + $0x3c] sm:$0xf]
      %v1874 = vld [vmem:[%s1857 + $0x40] sm:$0xf]
      %v1875 = vld [vmem:[%s1857 + $0x44] sm:$0xf]
      %v1876 = vld [vmem:[%s1857 + $0x48] sm:$0xf]
      %v1877 = vld [vmem:[%s1857 + $0x4c] sm:$0xf]
      %v1878 = vld [vmem:[%s1857 + $0x50] sm:$0xf]
      %v1879 = vld [vmem:[%s1857 + $0x54] sm:$0xf]
      %v1880 = vld [vmem:[%s1857 + $0x58] sm:$0xf]
      %v1881 = vld [vmem:[%s1857 + $0x5c] sm:$0xf]
      %v1882 = vld [vmem:[%s1857 + $0x60] sm:$0xf]
      %v1883 = vld [vmem:[%s1857 + $0x64] sm:$0xf]
      %v1884 = vld [vmem:[%s1857 + $0x68] sm:$0xf]
      %v1885 = vld [vmem:[%s1857 + $0x6c] sm:$0xf]
      %v1886 = vld [vmem:[%s1857 + $0x70] sm:$0xf]
      %v1887 = vld [vmem:[%s1857 + $0x74] sm:$0xf]
      %v1888 = vld [vmem:[%s1857 + $0x78] sm:$0xf]
      %v1889 = vld [vmem:[%s1857 + $0x7c] sm:$0xf]
      %v1890 = vld [vmem:[%s1857 + $0x80] sm:$0xf]
      %v1891 = vld [vmem:[%s1857 + $0x84] sm:$0xf]
      %v1892 = vld [vmem:[%s1857 + $0x88] sm:$0xf]
      %v1893 = vld [vmem:[%s1857 + $0x8c] sm:$0xf]
      %v1894 = vld [vmem:[%s1857 + $0x90] sm:$0xf]
      %v1895 = vld [vmem:[%s1857 + $0x94] sm:$0xf]
      %v1896 = vld [vmem:[%s1857 + $0x98] sm:$0xf]
      %v1897 = vld [vmem:[%s1857 + $0x9c] sm:$0xf]
      %v1898 = vld [vmem:[%s1857 + $0xa0] sm:$0xf]
      %v1899 = vld [vmem:[%s1857 + $0xa4] sm:$0xf]
      %v1900 = vld [vmem:[%s1857 + $0xa8] sm:$0xf]
      %v1901 = vld [vmem:[%s1857 + $0xac] sm:$0xf]
      %v1902 = vld [vmem:[%s1857 + $0xb0] sm:$0xf]
      %v1903 = vld [vmem:[%s1857 + $0xb4] sm:$0xf]
      %v1904 = vld [vmem:[%s1857 + $0xb8] sm:$0xf]
      %v1905 = vld [vmem:[%s1857 + $0xbc] sm:$0xf]
      %v1954 = vunpack.c.l.b16 %v1858
      %v1955 = vunpack.c.l.b16 %v1859
      %v1956 = vunpack.c.l.b16 %v1860
      %v1957 = vunpack.c.l.b16 %v1861
      %v1958 = vunpack.c.l.b16 %v1862
      %v1959 = vunpack.c.l.b16 %v1863
      %v1960 = vunpack.c.l.b16 %v1864
      %v1961 = vunpack.c.l.b16 %v1865
      %v1962 = vunpack.c.l.b16 %v1866
      %v1963 = vunpack.c.l.b16 %v1867
      %v1964 = vunpack.c.l.b16 %v1868
      %v1965 = vunpack.c.l.b16 %v1869
      %v1966 = vunpack.c.l.b16 %v1870
      %v1967 = vunpack.c.l.b16 %v1871
      %v1968 = vunpack.c.l.b16 %v1872
      %v1969 = vunpack.c.l.b16 %v1873
      %v1970 = vunpack.c.l.b16 %v1874
      %v1971 = vunpack.c.l.b16 %v1875
      %v1972 = vunpack.c.l.b16 %v1876
      %v1973 = vunpack.c.l.b16 %v1877
      %v1974 = vunpack.c.l.b16 %v1878
      %v1975 = vunpack.c.l.b16 %v1879
      %v1976 = vunpack.c.l.b16 %v1880
      %v1977 = vunpack.c.l.b16 %v1881
      %v1978 = vunpack.c.l.b16 %v1882
      %v1979 = vunpack.c.l.b16 %v1883
      %v1980 = vunpack.c.l.b16 %v1884
      %v1981 = vunpack.c.l.b16 %v1885
      %v1982 = vunpack.c.l.b16 %v1886
      %v1983 = vunpack.c.l.b16 %v1887
      %v1984 = vunpack.c.l.b16 %v1888
      %v1985 = vunpack.c.l.b16 %v1889
      %v1986 = vunpack.c.l.b16 %v1890
      %v1987 = vunpack.c.l.b16 %v1891
      %v1988 = vunpack.c.l.b16 %v1892
      %v1989 = vunpack.c.l.b16 %v1893
      %v1990 = vunpack.c.l.b16 %v1894
      %v1991 = vunpack.c.l.b16 %v1895
      %v1992 = vunpack.c.l.b16 %v1896
      %v1993 = vunpack.c.l.b16 %v1897
      %v1994 = vunpack.c.l.b16 %v1898
      %v1995 = vunpack.c.l.b16 %v1899
      %v1996 = vunpack.c.l.b16 %v1900
      %v1997 = vunpack.c.l.b16 %v1901
      %v1998 = vunpack.c.l.b16 %v1902
      %v1999 = vunpack.c.l.b16 %v1903
      %v2000 = vunpack.c.l.b16 %v1904
      %v2001 = vunpack.c.l.b16 %v1905
      %v2002 = vpack.c.b16 %v1955, %v1954
      %v2003 = vpack.c.b16 %v1957, %v1956
      %v2004 = vpack.c.b16 %v1959, %v1958
      %v2005 = vpack.c.b16 %v1961, %v1960
      %v2006 = vpack.c.b16 %v1963, %v1962
      %v2007 = vpack.c.b16 %v1965, %v1964
      %v2008 = vpack.c.b16 %v1967, %v1966
      %v2009 = vpack.c.b16 %v1969, %v1968
      %v2010 = vpack.c.b16 %v1971, %v1970
      %v2011 = vpack.c.b16 %v1973, %v1972
      %v2012 = vpack.c.b16 %v1975, %v1974
      %v2013 = vpack.c.b16 %v1977, %v1976
      %v2014 = vpack.c.b16 %v1979, %v1978
      %v2015 = vpack.c.b16 %v1981, %v1980
      %v2016 = vpack.c.b16 %v1983, %v1982
      %v2017 = vpack.c.b16 %v1985, %v1984
      %v2018 = vpack.c.b16 %v1987, %v1986
      %v2019 = vpack.c.b16 %v1989, %v1988
      %v2020 = vpack.c.b16 %v1991, %v1990
      %v2021 = vpack.c.b16 %v1993, %v1992
      %v2022 = vpack.c.b16 %v1995, %v1994
      %v2023 = vpack.c.b16 %v1997, %v1996
      %v2024 = vpack.c.b16 %v1999, %v1998
      %v2025 = vpack.c.b16 %v2001, %v2000
      %2050 = vmatprep.subr.bf16.mxu0 0
      %2051 = vmatpush1.bf16.msra.mxu0 %v2002
      %2052 = vmatprep.subr.bf16.mxu0 0
      %2053 = vmatpush1.bf16.msra.mxu0 %v2003
      %2054 = vmatprep.subr.bf16.mxu0 0
      %2055 = vmatpush1.bf16.msra.mxu0 %v2004
      %2056 = vmatprep.subr.bf16.mxu0 0
      %2057 = vmatpush1.bf16.msra.mxu0 %v2005
      %2058 = vmatprep.subr.bf16.mxu0 0
      %2059 = vmatpush1.bf16.msra.mxu0 %v2006
      %2060 = vmatprep.subr.bf16.mxu0 0
      %2061 = vmatpush1.bf16.msra.mxu0 %v2007
      %2062 = vmatprep.subr.bf16.mxu0 0
      %2063 = vmatpush1.bf16.msra.mxu0 %v2008
      %2064 = vmatprep.subr.bf16.mxu0 0
      %2065 = vmatpush1.bf16.msra.mxu0 %v2009
      %2066 = vmatprep.subr.bf16.mxu0 0
      %2067 = vmatpush1.bf16.msra.mxu0 %v2010
      %2068 = vmatprep.subr.bf16.mxu0 0
      %2069 = vmatpush1.bf16.msra.mxu0 %v2011
      %2070 = vmatprep.subr.bf16.mxu0 0
      %2071 = vmatpush1.bf16.msra.mxu0 %v2012
      %2072 = vmatprep.subr.bf16.mxu0 0
      %2073 = vmatpush1.bf16.msra.mxu0 %v2013
      %2074 = vmatprep.subr.bf16.mxu0 0
      %2075 = vmatpush1.bf16.msra.mxu0 %v2014
      %2076 = vmatprep.subr.bf16.mxu0 0
      %2077 = vmatpush1.bf16.msra.mxu0 %v2015
      %2078 = vmatprep.subr.bf16.mxu0 0
      %2079 = vmatpush1.bf16.msra.mxu0 %v2016
      %2080 = vmatprep.subr.bf16.mxu0 0
      %2081 = vmatpush1.bf16.msra.mxu0 %v2017
      %2082 = vmatprep.mubr.bf16.mxu0 %v1848
      %2083 = vmatmul.mubr.bf16.gmra.mrb[0].mxu0 %v1847
      %v2084 = vpop.f32.mrb[0].mxu0
      %v2085 = vadd.f32 0.0, %v2084
      %v2086 = vpop.f32.mrb[0].mxu0
      %v2087 = vpop.f32.mrb[0].mxu0
      %v2088 = vadd.f32 0.0, %v2087
      %v2089 = vpop.f32.mrb[0].mxu0
      %2090 = vmatprep.mubr.bf16.mxu0 %v1849
      %2091 = vmatmul.mubr.bf16.gmra.mrb[0].mxu0 %v1848
      %v2092 = vpop.f32.mrb[0].mxu0
      %v2093 = vadd.f32 0.0, %v2092
      %v2094 = vpop.f32.mrb[0].mxu0
      %v2095 = vpop.f32.mrb[0].mxu0
      %v2096 = vadd.f32 0.0, %v2095
      %v2097 = vpop.f32.mrb[0].mxu0
      %2098 = vmatprep.mubr.bf16.mxu0 %v1850
      %2099 = vmatmul.mubr.bf16.gmra.mrb[0].mxu0 %v1849
      %v2100 = vpop.f32.mrb[0].mxu0
      %v2101 = vadd.f32 0.0, %v2100
      %v2102 = vpop.f32.mrb[0].mxu0
      %v2103 = vpop.f32.mrb[0].mxu0
      %v2104 = vadd.f32 0.0, %v2103
      %v2105 = vpop.f32.mrb[0].mxu0
      %2106 = vmatprep.mubr.bf16.mxu0 %v1851
      %2107 = vmatmul.mubr.bf16.gmra.mrb[0].mxu0 %v1850
      %v2108 = vpop.f32.mrb[0].mxu0
      %v2109 = vadd.f32 0.0, %v2108
      %v2110 = vpop.f32.mrb[0].mxu0
      %v2111 = vpop.f32.mrb[0].mxu0
      %v2112 = vadd.f32 0.0, %v2111
      %v2113 = vpop.f32.mrb[0].mxu0
      %2114 = vmatprep.mubr.bf16.mxu0 %v1852
      %2115 = vmatmul.mubr.bf16.gmra.mrb[0].mxu0 %v1851
      %v2116 = vpop.f32.mrb[0].mxu0
      %v2117 = vadd.f32 0.0, %v2116
      %v2118 = vpop.f32.mrb[0].mxu0
      %v2119 = vpop.f32.mrb[0].mxu0
      %v2120 = vadd.f32 0.0, %v2119
      %v2121 = vpop.f32.mrb[0].mxu0
      %2122 = vmatprep.mubr.bf16.mxu0 %v1853
      %2123 = vmatmul.mubr.bf16.gmra.mrb[0].mxu0 %v1852
      %v2124 = vpop.f32.mrb[0].mxu0
      %v2125 = vadd.f32 0.0, %v2124
      %v2126 = vpop.f32.mrb[0].mxu0
      %v2127 = vpop.f32.mrb[0].mxu0
      %v2128 = vadd.f32 0.0, %v2127
      %v2129 = vpop.f32.mrb[0].mxu0
      %2130 = vmatprep.mubr.bf16.mxu0 %v1854
      %2131 = vmatmul.mubr.bf16.gmra.mrb[0].mxu0 %v1853
      %v2132 = vpop.f32.mrb[0].mxu0
      %v2133 = vadd.f32 0.0, %v2132
      %v2134 = vpop.f32.mrb[0].mxu0
      %v2135 = vpop.f32.mrb[0].mxu0
      %v2136 = vadd.f32 0.0, %v2135
      %v2137 = vpop.f32.mrb[0].mxu0
      %2138 = vmatprep.mubr.bf16.mxu0 %v1855
      %2139 = vmatmul.mubr.bf16.gmra.mrb[0].mxu0 %v1854
      %v2140 = vpop.f32.mrb[0].mxu0
      %v2141 = vadd.f32 0.0, %v2140
      %v2142 = vpop.f32.mrb[0].mxu0
      %v2143 = vpop.f32.mrb[0].mxu0
      %v2144 = vadd.f32 0.0, %v2143
      %v2145 = vpop.f32.mrb[0].mxu0
      %2146 = vdwg.mxu0
      %2147 = vmatprep.subr.bf16.mxu0 0
      %2148 = vmatpush1.bf16.msra.mxu0 %v2018
      %2149 = vmatprep.subr.bf16.mxu0 0
      %2150 = vmatpush1.bf16.msra.mxu0 %v2019
      %2151 = vmatprep.subr.bf16.mxu0 0
      %2152 = vmatpush1.bf16.msra.mxu0 %v2020
      %2153 = vmatprep.subr.bf16.mxu0 0
      %2154 = vmatpush1.bf16.msra.mxu0 %v2021
      %2155 = vmatprep.subr.bf16.mxu0 0
      %2156 = vmatpush1.bf16.msra.mxu0 %v2022
      %2157 = vmatprep.subr.bf16.mxu0 0
      %2158 = vmatpush1.bf16.msra.mxu0 %v2023
      %2159 = vmatprep.subr.bf16.mxu0 0
      %2160 = vmatpush1.bf16.msra.mxu0 %v2024
      %2161 = vmatprep.subr.bf16.mxu0 0
      %2162 = vmatpush1.bf16.msra.mxu0 %v2025
      %2163 = vmatprep.subr.bf16.mxu0 0
      %2164 = vmatpush1.bf16.msra.mxu0 0
      %2165 = vmatprep.subr.bf16.mxu0 0
      %2166 = vmatpush1.bf16.msra.mxu0 0
      %2167 = vmatprep.subr.bf16.mxu0 0
      %2168 = vmatpush1.bf16.msra.mxu0 0
      %2169 = vmatprep.subr.bf16.mxu0 0
      %2170 = vmatpush1.bf16.msra.mxu0 0
      %2171 = vmatprep.subr.bf16.mxu0 0
      %2172 = vmatpush1.bf16.msra.mxu0 0
      %2173 = vmatprep.subr.bf16.mxu0 0
      %2174 = vmatpush1.bf16.msra.mxu0 0
      %2175 = vmatprep.subr.bf16.mxu0 0
      %2176 = vmatpush1.bf16.msra.mxu0 0
      %2177 = vmatprep.subr.bf16.mxu0 0
      %2178 = vmatpush1.bf16.msra.mxu0 0
      %2179 = vmatprep.mubr.bf16.mxu0 0
      %2180 = vmatmul.mubr.bf16.gmra.mrb[0].mxu0 %v1849
      %v2181 = vpop.f32.mrb[0].mxu0
      %v2182 = vadd.f32 %v2085, %v2181
      %v2183 = vpop.f32.mrb[0].mxu0
      %v2184 = vpop.f32.mrb[0].mxu0
      %v2185 = vadd.f32 %v2088, %v2184
      %v2186 = vpop.f32.mrb[0].mxu0
      %2187 = vmatprep.mubr.bf16.mxu0 0
      %2188 = vmatmul.mubr.bf16.gmra.mrb[0].mxu0 %v1850
      %v2189 = vpop.f32.mrb[0].mxu0
      %v2190 = vadd.f32 %v2093, %v2189
      %v2191 = vpop.f32.mrb[0].mxu0
      %v2192 = vpop.f32.mrb[0].mxu0
      %v2193 = vadd.f32 %v2096, %v2192
      %v2194 = vpop.f32.mrb[0].mxu0
      %2195 = vmatprep.mubr.bf16.mxu0 0
      %2196 = vmatmul.mubr.bf16.gmra.mrb[0].mxu0 %v1851
      %v2197 = vpop.f32.mrb[0].mxu0
      %v2198 = vadd.f32 %v2101, %v2197
      %v2199 = vpop.f32.mrb[0].mxu0
      %v2200 = vpop.f32.mrb[0].mxu0
      %v2201 = vadd.f32 %v2104, %v2200
      %v2202 = vpop.f32.mrb[0].mxu0
      %2203 = vmatprep.mubr.bf16.mxu0 0
      %2204 = vmatmul.mubr.bf16.gmra.mrb[0].mxu0 %v1852
      %v2205 = vpop.f32.mrb[0].mxu0
      %v2206 = vadd.f32 %v2109, %v2205
      %v2207 = vpop.f32.mrb[0].mxu0
      %v2208 = vpop.f32.mrb[0].mxu0
      %v2209 = vadd.f32 %v2112, %v2208
      %v2210 = vpop.f32.mrb[0].mxu0
      %2211 = vmatprep.mubr.bf16.mxu0 0
      %2212 = vmatmul.mubr.bf16.gmra.mrb[0].mxu0 %v1853
      %v2213 = vpop.f32.mrb[0].mxu0
      %v2214 = vadd.f32 %v2117, %v2213
      %v2215 = vpop.f32.mrb[0].mxu0
      %v2216 = vpop.f32.mrb[0].mxu0
      %v2217 = vadd.f32 %v2120, %v2216
      %v2218 = vpop.f32.mrb[0].mxu0
      %2219 = vmatprep.mubr.bf16.mxu0 0
      %2220 = vmatmul.mubr.bf16.gmra.mrb[0].mxu0 %v1854
      %v2221 = vpop.f32.mrb[0].mxu0
      %v2222 = vadd.f32 %v2125, %v2221
      %v2223 = vpop.f32.mrb[0].mxu0
      %v2224 = vpop.f32.mrb[0].mxu0
      %v2225 = vadd.f32 %v2128, %v2224
      %v2226 = vpop.f32.mrb[0].mxu0
      %2227 = vmatprep.mubr.bf16.mxu0 0
      %2228 = vmatmul.mubr.bf16.gmra.mrb[0].mxu0 %v1855
      %v2229 = vpop.f32.mrb[0].mxu0
      %v2230 = vadd.f32 %v2133, %v2229
      %v2231 = vpop.f32.mrb[0].mxu0
      %v2232 = vpop.f32.mrb[0].mxu0
      %v2233 = vadd.f32 %v2136, %v2232
      %v2234 = vpop.f32.mrb[0].mxu0
      %2235 = vmatprep.mubr.bf16.mxu0 0
      %2236 = vmatmul.mubr.bf16.gmra.mrb[0].mxu0 %v1856
      %v2237 = vpop.f32.mrb[0].mxu0
      %v2238 = vadd.f32 %v2141, %v2237
      %v2239 = vpop.f32.mrb[0].mxu0
      %v2240 = vpop.f32.mrb[0].mxu0
      %v2241 = vadd.f32 %v2144, %v2240
      %v2242 = vpop.f32.mrb[0].mxu0
      %2243 = vdwg.mxu0
      %v2292 = vunpack.c.l.b16 %v1779
      %v2293 = vunpack.c.l.b16 %v1780
      %v2294 = vunpack.c.l.b16 %v1781
      %v2295 = vunpack.c.l.b16 %v1782
      %v2296 = vunpack.c.l.b16 %v1783
      %v2297 = vunpack.c.l.b16 %v1784
      %v2298 = vunpack.c.l.b16 %v1785
      %v2299 = vunpack.c.l.b16 %v1786
      %v2300 = vunpack.c.l.b16 %v1787
      %v2301 = vunpack.c.l.b16 %v1788
      %v2302 = vunpack.c.l.b16 %v1789
      %v2303 = vunpack.c.l.b16 %v1790
      %v2304 = vunpack.c.l.b16 %v1791
      %v2305 = vunpack.c.l.b16 %v1792
      %v2306 = vunpack.c.l.b16 %v1793
      %v2307 = vunpack.c.l.b16 %v1794
      %v2308 = vunpack.c.l.b16 %v1795
      %v2309 = vunpack.c.l.b16 %v1796
      %v2310 = vunpack.c.l.b16 %v1797
      %v2311 = vunpack.c.l.b16 %v1798
      %v2312 = vunpack.c.l.b16 %v1799
      %v2313 = vunpack.c.l.b16 %v1800
      %v2314 = vunpack.c.l.b16 %v1801
      %v2315 = vunpack.c.l.b16 %v1802
      %v2316 = vunpack.c.l.b16 %v1803
      %v2317 = vunpack.c.l.b16 %v1804
      %v2318 = vunpack.c.l.b16 %v1805
      %v2319 = vunpack.c.l.b16 %v1806
      %v2320 = vunpack.c.l.b16 %v1807
      %v2321 = vunpack.c.l.b16 %v1808
      %v2322 = vunpack.c.l.b16 %v1809
      %v2323 = vunpack.c.l.b16 %v1810
      %v2324 = vunpack.c.l.b16 %v1811
      %v2325 = vunpack.c.l.b16 %v1812
      %v2326 = vunpack.c.l.b16 %v1813
      %v2327 = vunpack.c.l.b16 %v1814
      %v2328 = vunpack.c.l.b16 %v1815
      %v2329 = vunpack.c.l.b16 %v1816
      %v2330 = vunpack.c.l.b16 %v1817
      %v2331 = vunpack.c.l.b16 %v1818
      %v2332 = vunpack.c.l.b16 %v1819
      %v2333 = vunpack.c.l.b16 %v1820
      %v2334 = vunpack.c.l.b16 %v1821
      %v2335 = vunpack.c.l.b16 %v1822
      %v2336 = vunpack.c.l.b16 %v1823
      %v2337 = vunpack.c.l.b16 %v1824
      %v2338 = vunpack.c.l.b16 %v1825
      %v2339 = vunpack.c.l.b16 %v1826
      %v2340 = vpack.c.b16 %v2293, %v2292
      %v2341 = vpack.c.b16 %v2295, %v2294
      %v2342 = vpack.c.b16 %v2297, %v2296
      %v2343 = vpack.c.b16 %v2299, %v2298
      %v2344 = vpack.c.b16 %v2301, %v2300
      %v2345 = vpack.c.b16 %v2303, %v2302
      %v2346 = vpack.c.b16 %v2305, %v2304
      %v2347 = vpack.c.b16 %v2307, %v2306
      %v2348 = vpack.c.b16 %v2309, %v2308
      %v2349 = vpack.c.b16 %v2311, %v2310
      %v2350 = vpack.c.b16 %v2313, %v2312
      %v2351 = vpack.c.b16 %v2315, %v2314
      %v2352 = vpack.c.b16 %v2317, %v2316
      %v2353 = vpack.c.b16 %v2319, %v2318
      %v2354 = vpack.c.b16 %v2321, %v2320
      %v2355 = vpack.c.b16 %v2323, %v2322
      %v2356 = vpack.c.b16 %v2325, %v2324
      %v2357 = vpack.c.b16 %v2327, %v2326
      %v2358 = vpack.c.b16 %v2329, %v2328
      %v2359 = vpack.c.b16 %v2331, %v2330
      %v2360 = vpack.c.b16 %v2333, %v2332
      %v2361 = vpack.c.b16 %v2335, %v2334
      %v2362 = vpack.c.b16 %v2337, %v2336
      %v2363 = vpack.c.b16 %v2339, %v2338
      %2388 = vmatprep.subr.bf16.mxu0 0
      %2389 = vmatpush1.bf16.msra.mxu0 %v2340
      %2390 = vmatprep.subr.bf16.mxu0 0
      %2391 = vmatpush1.bf16.msra.mxu0 %v2341
      %2392 = vmatprep.subr.bf16.mxu0 0
      %2393 = vmatpush1.bf16.msra.mxu0 %v2342
      %2394 = vmatprep.subr.bf16.mxu0 0
      %2395 = vmatpush1.bf16.msra.mxu0 %v2343
      %2396 = vmatprep.subr.bf16.mxu0 0
      %2397 = vmatpush1.bf16.msra.mxu0 %v2344
      %2398 = vmatprep.subr.bf16.mxu0 0
      %2399 = vmatpush1.bf16.msra.mxu0 %v2345
      %2400 = vmatprep.subr.bf16.mxu0 0
      %2401 = vmatpush1.bf16.msra.mxu0 %v2346
      %2402 = vmatprep.subr.bf16.mxu0 0
      %2403 = vmatpush1.bf16.msra.mxu0 %v2347
      %2404 = vmatprep.subr.bf16.mxu0 0
      %2405 = vmatpush1.bf16.msra.mxu0 %v2348
      %2406 = vmatprep.subr.bf16.mxu0 0
      %2407 = vmatpush1.bf16.msra.mxu0 %v2349
      %2408 = vmatprep.subr.bf16.mxu0 0
      %2409 = vmatpush1.bf16.msra.mxu0 %v2350
      %2410 = vmatprep.subr.bf16.mxu0 0
      %2411 = vmatpush1.bf16.msra.mxu0 %v2351
      %2412 = vmatprep.subr.bf16.mxu0 0
      %2413 = vmatpush1.bf16.msra.mxu0 %v2352
      %2414 = vmatprep.subr.bf16.mxu0 0
      %2415 = vmatpush1.bf16.msra.mxu0 %v2353
      %2416 = vmatprep.subr.bf16.mxu0 0
      %2417 = vmatpush1.bf16.msra.mxu0 %v2354
      %2418 = vmatprep.subr.bf16.mxu0 0
      %2419 = vmatpush1.bf16.msra.mxu0 %v2355
      %2420 = vmatprep.mubr.bf16.mxu0 %v1770
      %2421 = vmatmul.mubr.bf16.gmra.mrb[0].mxu0 %v1769
      %v2422 = vpop.f32.mrb[0].mxu0
      %v2423 = vadd.f32 %v2182, %v2422
      %v2424 = vpop.f32.mrb[0].mxu0
      %v2425 = vpop.f32.mrb[0].mxu0
      %v2426 = vadd.f32 %v2185, %v2425
      %v2427 = vpop.f32.mrb[0].mxu0
      %2428 = vmatprep.mubr.bf16.mxu0 %v1771
      %2429 = vmatmul.mubr.bf16.gmra.mrb[0].mxu0 %v1770
      %v2430 = vpop.f32.mrb[0].mxu0
      %v2431 = vadd.f32 %v2190, %v2430
      %v2432 = vpop.f32.mrb[0].mxu0
      %v2433 = vpop.f32.mrb[0].mxu0
      %v2434 = vadd.f32 %v2193, %v2433
      %v2435 = vpop.f32.mrb[0].mxu0
      %2436 = vmatprep.mubr.bf16.mxu0 %v1772
      %2437 = vmatmul.mubr.bf16.gmra.mrb[0].mxu0 %v1771
      %v2438 = vpop.f32.mrb[0].mxu0
      %v2439 = vadd.f32 %v2198, %v2438
      %v2440 = vpop.f32.mrb[0].mxu0
      %v2441 = vpop.f32.mrb[0].mxu0
      %v2442 = vadd.f32 %v2201, %v2441
      %v2443 = vpop.f32.mrb[0].mxu0
      %2444 = vmatprep.mubr.bf16.mxu0 %v1773
      %2445 = vmatmul.mubr.bf16.gmra.mrb[0].mxu0 %v1772
      %v2446 = vpop.f32.mrb[0].mxu0
      %v2447 = vadd.f32 %v2206, %v2446
      %v2448 = vpop.f32.mrb[0].mxu0
      %v2449 = vpop.f32.mrb[0].mxu0
      %v2450 = vadd.f32 %v2209, %v2449
      %v2451 = vpop.f32.mrb[0].mxu0
      %2452 = vmatprep.mubr.bf16.mxu0 %v1774
      %2453 = vmatmul.mubr.bf16.gmra.mrb[0].mxu0 %v1773
      %v2454 = vpop.f32.mrb[0].mxu0
      %v2455 = vadd.f32 %v2214, %v2454
      %v2456 = vpop.f32.mrb[0].mxu0
      %v2457 = vpop.f32.mrb[0].mxu0
      %v2458 = vadd.f32 %v2217, %v2457
      %v2459 = vpop.f32.mrb[0].mxu0
      %2460 = vmatprep.mubr.bf16.mxu0 %v1775
      %2461 = vmatmul.mubr.bf16.gmra.mrb[0].mxu0 %v1774
      %v2462 = vpop.f32.mrb[0].mxu0
      %v2463 = vadd.f32 %v2222, %v2462
      %v2464 = vpop.f32.mrb[0].mxu0
      %v2465 = vpop.f32.mrb[0].mxu0
      %v2466 = vadd.f32 %v2225, %v2465
      %v2467 = vpop.f32.mrb[0].mxu0
      %2468 = vmatprep.mubr.bf16.mxu0 %v1776
      %2469 = vmatmul.mubr.bf16.gmra.mrb[0].mxu0 %v1775
      %v2470 = vpop.f32.mrb[0].mxu0
      %v2471 = vadd.f32 %v2230, %v2470
      %v2472 = vpop.f32.mrb[0].mxu0
      %v2473 = vpop.f32.mrb[0].mxu0
      %v2474 = vadd.f32 %v2233, %v2473
      %v2475 = vpop.f32.mrb[0].mxu0
      %2476 = vmatprep.mubr.bf16.mxu0 %v1777
      %2477 = vmatmul.mubr.bf16.gmra.mrb[0].mxu0 %v1776
      %v2478 = vpop.f32.mrb[0].mxu0
      %v2479 = vadd.f32 %v2238, %v2478
      %v2480 = vpop.f32.mrb[0].mxu0
      %v2481 = vpop.f32.mrb[0].mxu0
      %v2482 = vadd.f32 %v2241, %v2481
      %v2483 = vpop.f32.mrb[0].mxu0
      %2484 = vdwg.mxu0
      %2485 = vmatprep.subr.bf16.mxu0 0
      %2486 = vmatpush1.bf16.msra.mxu0 %v2356
      %2487 = vmatprep.subr.bf16.mxu0 0
      %2488 = vmatpush1.bf16.msra.mxu0 %v2357
      %2489 = vmatprep.subr.bf16.mxu0 0
      %2490 = vmatpush1.bf16.msra.mxu0 %v2358
      %2491 = vmatprep.subr.bf16.mxu0 0
      %2492 = vmatpush1.bf16.msra.mxu0 %v2359
      %2493 = vmatprep.subr.bf16.mxu0 0
      %2494 = vmatpush1.bf16.msra.mxu0 %v2360
      %2495 = vmatprep.subr.bf16.mxu0 0
      %2496 = vmatpush1.bf16.msra.mxu0 %v2361
      %2497 = vmatprep.subr.bf16.mxu0 0
      %2498 = vmatpush1.bf16.msra.mxu0 %v2362
      %2499 = vmatprep.subr.bf16.mxu0 0
      %2500 = vmatpush1.bf16.msra.mxu0 %v2363
      %2501 = vmatprep.subr.bf16.mxu0 0
      %2502 = vmatpush1.bf16.msra.mxu0 0
      %2503 = vmatprep.subr.bf16.mxu0 0
      %2504 = vmatpush1.bf16.msra.mxu0 0
      %2505 = vmatprep.subr.bf16.mxu0 0
      %2506 = vmatpush1.bf16.msra.mxu0 0
      %2507 = vmatprep.subr.bf16.mxu0 0
      %2508 = vmatpush1.bf16.msra.mxu0 0
      %2509 = vmatprep.subr.bf16.mxu0 0
      %2510 = vmatpush1.bf16.msra.mxu0 0
      %2511 = vmatprep.subr.bf16.mxu0 0
      %2512 = vmatpush1.bf16.msra.mxu0 0
      %2513 = vmatprep.subr.bf16.mxu0 0
      %2514 = vmatpush1.bf16.msra.mxu0 0
      %2515 = vmatprep.subr.bf16.mxu0 0
      %2516 = vmatpush1.bf16.msra.mxu0 0
      %2517 = vmatprep.mubr.bf16.mxu0 0
      %2518 = vmatmul.mubr.bf16.gmra.mrb[0].mxu0 %v1771
      %v2519 = vpop.f32.mrb[0].mxu0
      %v2520 = vadd.f32 %v2423, %v2519
      %v2521 = vpop.f32.mrb[0].mxu0
      %v2522 = vpop.f32.mrb[0].mxu0
      %v2523 = vadd.f32 %v2426, %v2522
      %v2524 = vpop.f32.mrb[0].mxu0
      %2525 = vmatprep.mubr.bf16.mxu0 0
      %2526 = vmatmul.mubr.bf16.gmra.mrb[0].mxu0 %v1772
      %v2527 = vpop.f32.mrb[0].mxu0
      %v2528 = vadd.f32 %v2431, %v2527
      %v2529 = vpop.f32.mrb[0].mxu0
      %v2530 = vpop.f32.mrb[0].mxu0
      %v2531 = vadd.f32 %v2434, %v2530
      %v2532 = vpop.f32.mrb[0].mxu0
      %2533 = vmatprep.mubr.bf16.mxu0 0
      %2534 = vmatmul.mubr.bf16.gmra.mrb[0].mxu0 %v1773
      %v2535 = vpop.f32.mrb[0].mxu0
      %v2536 = vadd.f32 %v2439, %v2535
      %v2537 = vpop.f32.mrb[0].mxu0
      %v2538 = vpop.f32.mrb[0].mxu0
      %v2539 = vadd.f32 %v2442, %v2538
      %v2540 = vpop.f32.mrb[0].mxu0
      %2541 = vmatprep.mubr.bf16.mxu0 0
      %2542 = vmatmul.mubr.bf16.gmra.mrb[0].mxu0 %v1774
      %v2543 = vpop.f32.mrb[0].mxu0
      %v2544 = vadd.f32 %v2447, %v2543
      %v2545 = vpop.f32.mrb[0].mxu0
      %v2546 = vpop.f32.mrb[0].mxu0
      %v2547 = vadd.f32 %v2450, %v2546
      %v2548 = vpop.f32.mrb[0].mxu0
      %2549 = vmatprep.mubr.bf16.mxu0 0
      %2550 = vmatmul.mubr.bf16.gmra.mrb[0].mxu0 %v1775
      %v2551 = vpop.f32.mrb[0].mxu0
      %v2552 = vadd.f32 %v2455, %v2551
      %v2553 = vpop.f32.mrb[0].mxu0
      %v2554 = vpop.f32.mrb[0].mxu0
      %v2555 = vadd.f32 %v2458, %v2554
      %v2556 = vpop.f32.mrb[0].mxu0
      %2557 = vmatprep.mubr.bf16.mxu0 0
      %2558 = vmatmul.mubr.bf16.gmra.mrb[0].mxu0 %v1776
      %v2559 = vpop.f32.mrb[0].mxu0
      %v2560 = vadd.f32 %v2463, %v2559
      %v2561 = vpop.f32.mrb[0].mxu0
      %v2562 = vpop.f32.mrb[0].mxu0
      %v2563 = vadd.f32 %v2466, %v2562
      %v2564 = vpop.f32.mrb[0].mxu0
      %2565 = vmatprep.mubr.bf16.mxu0 0
      %2566 = vmatmul.mubr.bf16.gmra.mrb[0].mxu0 %v1777
      %v2567 = vpop.f32.mrb[0].mxu0
      %v2568 = vadd.f32 %v2471, %v2567
      %v2569 = vpop.f32.mrb[0].mxu0
      %v2570 = vpop.f32.mrb[0].mxu0
      %v2571 = vadd.f32 %v2474, %v2570
      %v2572 = vpop.f32.mrb[0].mxu0
      %2573 = vmatprep.mubr.bf16.mxu0 0
      %2574 = vmatmul.mubr.bf16.gmra.mrb[0].mxu0 %v1778
      %v2575 = vpop.f32.mrb[0].mxu0
      %v2576 = vadd.f32 %v2479, %v2575
      %v2577 = vpop.f32.mrb[0].mxu0
      %v2578 = vpop.f32.mrb[0].mxu0
      %v2579 = vadd.f32 %v2482, %v2578
      %v2580 = vpop.f32.mrb[0].mxu0
      %2581 = vdwg.mxu0
      %v2582 = vld [vmem:[#allocation2 + $0x9] sm:$0xff]
      %v2583 = vld [vmem:[#allocation2 + $0x11] sm:$0xff]
      %v2584 = vld [vmem:[#allocation2 + $0x29] sm:$0xff]
      %v2585 = vld [vmem:[#allocation2 + $0x31] sm:$0xff]
      %v2586 = vld [vmem:[#allocation2 + $0x49] sm:$0xff]
      %v2587 = vld [vmem:[#allocation2 + $0x51] sm:$0xff]
      %v2588 = vld [vmem:[#allocation2 + $0x69] sm:$0xff]
      %v2589 = vld [vmem:[#allocation2 + $0x71] sm:$0xff]
      %v2590 = vld [vmem:[#allocation2 + $0x89] sm:$0xff]
      %v2591 = vld [vmem:[#allocation2 + $0x91] sm:$0xff]
      %v2592 = vld [vmem:[#allocation2 + $0xa9] sm:$0xff]
      %v2593 = vld [vmem:[#allocation2 + $0xb1] sm:$0xff]
      %v2594 = vld [vmem:[#allocation2 + $0xc9] sm:$0xff]
      %v2595 = vld [vmem:[#allocation2 + $0xd1] sm:$0xff]
      %v2596 = vld [vmem:[#allocation2 + $0xe9] sm:$0xff]
      %v2597 = vld [vmem:[#allocation2 + $0xf1] sm:$0xff]
      %v2598 = vld [vmem:[#allocation2 + $0x109] sm:$0xff]
      %v2599 = vld [vmem:[#allocation2 + $0x111] sm:$0xff]
      %v2600 = vld [vmem:[#allocation2 + $0x129] sm:$0xff]
      %v2601 = vld [vmem:[#allocation2 + $0x131] sm:$0xff]
      %v2602 = vpack.c.bf16 %v2583, %v2582
      %v2603 = vpack.c.bf16 %v2585, %v2584
      %v2604 = vpack.c.bf16 %v2587, %v2586
      %v2605 = vpack.c.bf16 %v2589, %v2588
      %v2606 = vpack.c.bf16 %v2591, %v2590
      %v2607 = vpack.c.bf16 %v2593, %v2592
      %v2608 = vpack.c.bf16 %v2595, %v2594
      %v2609 = vpack.c.bf16 %v2597, %v2596
      %v2610 = vpack.c.bf16 %v2599, %v2598
      %v2611 = vpack.c.bf16 %v2601, %v2600
      %s2612 = scalar_lea.vmem %s3, 384
      %v2613 = vld [vmem:[%s2612] sm:$0xf]
      %v2614 = vld [vmem:[%s2612 + $0x4] sm:$0xf]
      %v2615 = vld [vmem:[%s2612 + $0x8] sm:$0xf]
      %v2616 = vld [vmem:[%s2612 + $0xc] sm:$0xf]
      %v2617 = vld [vmem:[%s2612 + $0x10] sm:$0xf]
      %v2618 = vld [vmem:[%s2612 + $0x14] sm:$0xf]
      %v2619 = vld [vmem:[%s2612 + $0x18] sm:$0xf]
      %v2620 = vld [vmem:[%s2612 + $0x1c] sm:$0xf]
      %v2621 = vld [vmem:[%s2612 + $0x20] sm:$0xf]
      %v2622 = vld [vmem:[%s2612 + $0x24] sm:$0xf]
      %v2623 = vld [vmem:[%s2612 + $0x28] sm:$0xf]
      %v2624 = vld [vmem:[%s2612 + $0x2c] sm:$0xf]
      %v2625 = vld [vmem:[%s2612 + $0x30] sm:$0xf]
      %v2626 = vld [vmem:[%s2612 + $0x34] sm:$0xf]
      %v2627 = vld [vmem:[%s2612 + $0x38] sm:$0xf]
      %v2628 = vld [vmem:[%s2612 + $0x3c] sm:$0xf]
      %v2629 = vld [vmem:[%s2612 + $0x40] sm:$0xf]
      %v2630 = vld [vmem:[%s2612 + $0x44] sm:$0xf]
      %v2631 = vld [vmem:[%s2612 + $0x48] sm:$0xf]
      %v2632 = vld [vmem:[%s2612 + $0x4c] sm:$0xf]
      %v2633 = vld [vmem:[%s2612 + $0x50] sm:$0xf]
      %v2634 = vld [vmem:[%s2612 + $0x54] sm:$0xf]
      %v2635 = vld [vmem:[%s2612 + $0x58] sm:$0xf]
      %v2636 = vld [vmem:[%s2612 + $0x5c] sm:$0xf]
      %v2637 = vld [vmem:[%s2612 + $0x60] sm:$0xf]
      %v2638 = vld [vmem:[%s2612 + $0x64] sm:$0xf]
      %v2639 = vld [vmem:[%s2612 + $0x68] sm:$0xf]
      %v2640 = vld [vmem:[%s2612 + $0x6c] sm:$0xf]
      %v2641 = vld [vmem:[%s2612 + $0x70] sm:$0xf]
      %v2642 = vld [vmem:[%s2612 + $0x74] sm:$0xf]
      %v2643 = vld [vmem:[%s2612 + $0x78] sm:$0xf]
      %v2644 = vld [vmem:[%s2612 + $0x7c] sm:$0xf]
      %v2645 = vld [vmem:[%s2612 + $0x80] sm:$0xf]
      %v2646 = vld [vmem:[%s2612 + $0x84] sm:$0xf]
      %v2647 = vld [vmem:[%s2612 + $0x88] sm:$0xf]
      %v2648 = vld [vmem:[%s2612 + $0x8c] sm:$0xf]
      %v2649 = vld [vmem:[%s2612 + $0x90] sm:$0xf]
      %v2650 = vld [vmem:[%s2612 + $0x94] sm:$0xf]
      %v2651 = vld [vmem:[%s2612 + $0x98] sm:$0xf]
      %v2652 = vld [vmem:[%s2612 + $0x9c] sm:$0xf]
      %v2653 = vld [vmem:[%s2612 + $0xa0] sm:$0xf]
      %v2654 = vld [vmem:[%s2612 + $0xa4] sm:$0xf]
      %v2655 = vld [vmem:[%s2612 + $0xa8] sm:$0xf]
      %v2656 = vld [vmem:[%s2612 + $0xac] sm:$0xf]
      %v2657 = vld [vmem:[%s2612 + $0xb0] sm:$0xf]
      %v2658 = vld [vmem:[%s2612 + $0xb4] sm:$0xf]
      %v2659 = vld [vmem:[%s2612 + $0xb8] sm:$0xf]
      %v2660 = vld [vmem:[%s2612 + $0xbc] sm:$0xf]
      %v2709 = vunpack.c.l.b16 %v2613
      %v2710 = vunpack.c.l.b16 %v2614
      %v2711 = vunpack.c.l.b16 %v2615
      %v2712 = vunpack.c.l.b16 %v2616
      %v2713 = vunpack.c.l.b16 %v2617
      %v2714 = vunpack.c.l.b16 %v2618
      %v2715 = vunpack.c.l.b16 %v2619
      %v2716 = vunpack.c.l.b16 %v2620
      %v2717 = vunpack.c.l.b16 %v2621
      %v2718 = vunpack.c.l.b16 %v2622
      %v2719 = vunpack.c.l.b16 %v2623
      %v2720 = vunpack.c.l.b16 %v2624
      %v2721 = vunpack.c.l.b16 %v2625
      %v2722 = vunpack.c.l.b16 %v2626
      %v2723 = vunpack.c.l.b16 %v2627
      %v2724 = vunpack.c.l.b16 %v2628
      %v2725 = vunpack.c.l.b16 %v2629
      %v2726 = vunpack.c.l.b16 %v2630
      %v2727 = vunpack.c.l.b16 %v2631
      %v2728 = vunpack.c.l.b16 %v2632
      %v2729 = vunpack.c.l.b16 %v2633
      %v2730 = vunpack.c.l.b16 %v2634
      %v2731 = vunpack.c.l.b16 %v2635
      %v2732 = vunpack.c.l.b16 %v2636
      %v2733 = vunpack.c.l.b16 %v2637
      %v2734 = vunpack.c.l.b16 %v2638
      %v2735 = vunpack.c.l.b16 %v2639
      %v2736 = vunpack.c.l.b16 %v2640
      %v2737 = vunpack.c.l.b16 %v2641
      %v2738 = vunpack.c.l.b16 %v2642
      %v2739 = vunpack.c.l.b16 %v2643
      %v2740 = vunpack.c.l.b16 %v2644
      %v2741 = vunpack.c.l.b16 %v2645
      %v2742 = vunpack.c.l.b16 %v2646
      %v2743 = vunpack.c.l.b16 %v2647
      %v2744 = vunpack.c.l.b16 %v2648
      %v2745 = vunpack.c.l.b16 %v2649
      %v2746 = vunpack.c.l.b16 %v2650
      %v2747 = vunpack.c.l.b16 %v2651
      %v2748 = vunpack.c.l.b16 %v2652
      %v2749 = vunpack.c.l.b16 %v2653
      %v2750 = vunpack.c.l.b16 %v2654
      %v2751 = vunpack.c.l.b16 %v2655
      %v2752 = vunpack.c.l.b16 %v2656
      %v2753 = vunpack.c.l.b16 %v2657
      %v2754 = vunpack.c.l.b16 %v2658
      %v2755 = vunpack.c.l.b16 %v2659
      %v2756 = vunpack.c.l.b16 %v2660
      %v2757 = vpack.c.b16 %v2710, %v2709
      %v2758 = vpack.c.b16 %v2712, %v2711
      %v2759 = vpack.c.b16 %v2714, %v2713
      %v2760 = vpack.c.b16 %v2716, %v2715
      %v2761 = vpack.c.b16 %v2718, %v2717
      %v2762 = vpack.c.b16 %v2720, %v2719
      %v2763 = vpack.c.b16 %v2722, %v2721
      %v2764 = vpack.c.b16 %v2724, %v2723
      %v2765 = vpack.c.b16 %v2726, %v2725
      %v2766 = vpack.c.b16 %v2728, %v2727
      %v2767 = vpack.c.b16 %v2730, %v2729
      %v2768 = vpack.c.b16 %v2732, %v2731
      %v2769 = vpack.c.b16 %v2734, %v2733
      %v2770 = vpack.c.b16 %v2736, %v2735
      %v2771 = vpack.c.b16 %v2738, %v2737
      %v2772 = vpack.c.b16 %v2740, %v2739
      %v2773 = vpack.c.b16 %v2742, %v2741
      %v2774 = vpack.c.b16 %v2744, %v2743
      %v2775 = vpack.c.b16 %v2746, %v2745
      %v2776 = vpack.c.b16 %v2748, %v2747
      %v2777 = vpack.c.b16 %v2750, %v2749
      %v2778 = vpack.c.b16 %v2752, %v2751
      %v2779 = vpack.c.b16 %v2754, %v2753
      %v2780 = vpack.c.b16 %v2756, %v2755
      %2805 = vmatprep.subr.bf16.mxu0 0
      %2806 = vmatpush1.bf16.msra.mxu0 %v2757
      %2807 = vmatprep.subr.bf16.mxu0 0
      %2808 = vmatpush1.bf16.msra.mxu0 %v2758
      %2809 = vmatprep.subr.bf16.mxu0 0
      %2810 = vmatpush1.bf16.msra.mxu0 %v2759
      %2811 = vmatprep.subr.bf16.mxu0 0
      %2812 = vmatpush1.bf16.msra.mxu0 %v2760
      %2813 = vmatprep.subr.bf16.mxu0 0
      %2814 = vmatpush1.bf16.msra.mxu0 %v2761
      %2815 = vmatprep.subr.bf16.mxu0 0
      %2816 = vmatpush1.bf16.msra.mxu0 %v2762
      %2817 = vmatprep.subr.bf16.mxu0 0
      %2818 = vmatpush1.bf16.msra.mxu0 %v2763
      %2819 = vmatprep.subr.bf16.mxu0 0
      %2820 = vmatpush1.bf16.msra.mxu0 %v2764
      %2821 = vmatprep.subr.bf16.mxu0 0
      %2822 = vmatpush1.bf16.msra.mxu0 %v2765
      %2823 = vmatprep.subr.bf16.mxu0 0
      %2824 = vmatpush1.bf16.msra.mxu0 %v2766
      %2825 = vmatprep.subr.bf16.mxu0 0
      %2826 = vmatpush1.bf16.msra.mxu0 %v2767
      %2827 = vmatprep.subr.bf16.mxu0 0
      %2828 = vmatpush1.bf16.msra.mxu0 %v2768
      %2829 = vmatprep.subr.bf16.mxu0 0
      %2830 = vmatpush1.bf16.msra.mxu0 %v2769
      %2831 = vmatprep.subr.bf16.mxu0 0
      %2832 = vmatpush1.bf16.msra.mxu0 %v2770
      %2833 = vmatprep.subr.bf16.mxu0 0
      %2834 = vmatpush1.bf16.msra.mxu0 %v2771
      %2835 = vmatprep.subr.bf16.mxu0 0
      %2836 = vmatpush1.bf16.msra.mxu0 %v2772
      %2837 = vmatprep.mubr.bf16.mxu0 %v2603
      %2838 = vmatmul.mubr.bf16.gmra.mrb[0].mxu0 %v2602
      %v2839 = vpop.f32.mrb[0].mxu0
      %v2840 = vadd.f32 0.0, %v2839
      %v2841 = vpop.f32.mrb[0].mxu0
      %v2842 = vpop.f32.mrb[0].mxu0
      %v2843 = vadd.f32 0.0, %v2842
      %v2844 = vpop.f32.mrb[0].mxu0
      %2845 = vmatprep.mubr.bf16.mxu0 %v2604
      %2846 = vmatmul.mubr.bf16.gmra.mrb[0].mxu0 %v2603
      %v2847 = vpop.f32.mrb[0].mxu0
      %v2848 = vadd.f32 0.0, %v2847
      %v2849 = vpop.f32.mrb[0].mxu0
      %v2850 = vpop.f32.mrb[0].mxu0
      %v2851 = vadd.f32 0.0, %v2850
      %v2852 = vpop.f32.mrb[0].mxu0
      %2853 = vmatprep.mubr.bf16.mxu0 %v2605
      %2854 = vmatmul.mubr.bf16.gmra.mrb[0].mxu0 %v2604
      %v2855 = vpop.f32.mrb[0].mxu0
      %v2856 = vadd.f32 0.0, %v2855
      %v2857 = vpop.f32.mrb[0].mxu0
      %v2858 = vpop.f32.mrb[0].mxu0
      %v2859 = vadd.f32 0.0, %v2858
      %v2860 = vpop.f32.mrb[0].mxu0
      %2861 = vmatprep.mubr.bf16.mxu0 %v2606
      %2862 = vmatmul.mubr.bf16.gmra.mrb[0].mxu0 %v2605
      %v2863 = vpop.f32.mrb[0].mxu0
      %v2864 = vadd.f32 0.0, %v2863
      %v2865 = vpop.f32.mrb[0].mxu0
      %v2866 = vpop.f32.mrb[0].mxu0
      %v2867 = vadd.f32 0.0, %v2866
      %v2868 = vpop.f32.mrb[0].mxu0
      %2869 = vmatprep.mubr.bf16.mxu0 %v2607
      %2870 = vmatmul.mubr.bf16.gmra.mrb[0].mxu0 %v2606
      %v2871 = vpop.f32.mrb[0].mxu0
      %v2872 = vadd.f32 0.0, %v2871
      %v2873 = vpop.f32.mrb[0].mxu0
      %v2874 = vpop.f32.mrb[0].mxu0
      %v2875 = vadd.f32 0.0, %v2874
      %v2876 = vpop.f32.mrb[0].mxu0
      %2877 = vmatprep.mubr.bf16.mxu0 %v2608
      %2878 = vmatmul.mubr.bf16.gmra.mrb[0].mxu0 %v2607
      %v2879 = vpop.f32.mrb[0].mxu0
      %v2880 = vadd.f32 0.0, %v2879
      %v2881 = vpop.f32.mrb[0].mxu0
      %v2882 = vpop.f32.mrb[0].mxu0
      %v2883 = vadd.f32 0.0, %v2882
      %v2884 = vpop.f32.mrb[0].mxu0
      %2885 = vmatprep.mubr.bf16.mxu0 %v2609
      %2886 = vmatmul.mubr.bf16.gmra.mrb[0].mxu0 %v2608
      %v2887 = vpop.f32.mrb[0].mxu0
      %v2888 = vadd.f32 0.0, %v2887
      %v2889 = vpop.f32.mrb[0].mxu0
      %v2890 = vpop.f32.mrb[0].mxu0
      %v2891 = vadd.f32 0.0, %v2890
      %v2892 = vpop.f32.mrb[0].mxu0
      %2893 = vmatprep.mubr.bf16.mxu0 %v2610
      %2894 = vmatmul.mubr.bf16.gmra.mrb[0].mxu0 %v2609
      %v2895 = vpop.f32.mrb[0].mxu0
      %v2896 = vadd.f32 0.0, %v2895
      %v2897 = vpop.f32.mrb[0].mxu0
      %v2898 = vpop.f32.mrb[0].mxu0
      %v2899 = vadd.f32 0.0, %v2898
      %v2900 = vpop.f32.mrb[0].mxu0
      %2901 = vdwg.mxu0
      %2902 = vmatprep.subr.bf16.mxu0 0
      %2903 = vmatpush1.bf16.msra.mxu0 %v2773
      %2904 = vmatprep.subr.bf16.mxu0 0
      %2905 = vmatpush1.bf16.msra.mxu0 %v2774
      %2906 = vmatprep.subr.bf16.mxu0 0
      %2907 = vmatpush1.bf16.msra.mxu0 %v2775
      %2908 = vmatprep.subr.bf16.mxu0 0
      %2909 = vmatpush1.bf16.msra.mxu0 %v2776
      %2910 = vmatprep.subr.bf16.mxu0 0
      %2911 = vmatpush1.bf16.msra.mxu0 %v2777
      %2912 = vmatprep.subr.bf16.mxu0 0
      %2913 = vmatpush1.bf16.msra.mxu0 %v2778
      %2914 = vmatprep.subr.bf16.mxu0 0
      %2915 = vmatpush1.bf16.msra.mxu0 %v2779
      %2916 = vmatprep.subr.bf16.mxu0 0
      %2917 = vmatpush1.bf16.msra.mxu0 %v2780
      %2918 = vmatprep.subr.bf16.mxu0 0
      %2919 = vmatpush1.bf16.msra.mxu0 0
      %2920 = vmatprep.subr.bf16.mxu0 0
      %2921 = vmatpush1.bf16.msra.mxu0 0
      %2922 = vmatprep.subr.bf16.mxu0 0
      %2923 = vmatpush1.bf16.msra.mxu0 0
      %2924 = vmatprep.subr.bf16.mxu0 0
      %2925 = vmatpush1.bf16.msra.mxu0 0
      %2926 = vmatprep.subr.bf16.mxu0 0
      %2927 = vmatpush1.bf16.msra.mxu0 0
      %2928 = vmatprep.subr.bf16.mxu0 0
      %2929 = vmatpush1.bf16.msra.mxu0 0
      %2930 = vmatprep.subr.bf16.mxu0 0
      %2931 = vmatpush1.bf16.msra.mxu0 0
      %2932 = vmatprep.subr.bf16.mxu0 0
      %2933 = vmatpush1.bf16.msra.mxu0 0
      %2934 = vmatprep.mubr.bf16.mxu0 0
      %2935 = vmatmul.mubr.bf16.gmra.mrb[0].mxu0 %v2604
      %v2936 = vpop.f32.mrb[0].mxu0
      %v2937 = vadd.f32 %v2840, %v2936
      %v2938 = vpop.f32.mrb[0].mxu0
      %v2939 = vpop.f32.mrb[0].mxu0
      %v2940 = vadd.f32 %v2843, %v2939
      %v2941 = vpop.f32.mrb[0].mxu0
      %2942 = vmatprep.mubr.bf16.mxu0 0
      %2943 = vmatmul.mubr.bf16.gmra.mrb[0].mxu0 %v2605
      %v2944 = vpop.f32.mrb[0].mxu0
      %v2945 = vadd.f32 %v2848, %v2944
      %v2946 = vpop.f32.mrb[0].mxu0
      %v2947 = vpop.f32.mrb[0].mxu0
      %v2948 = vadd.f32 %v2851, %v2947
      %v2949 = vpop.f32.mrb[0].mxu0
      %2950 = vmatprep.mubr.bf16.mxu0 0
      %2951 = vmatmul.mubr.bf16.gmra.mrb[0].mxu0 %v2606
      %v2952 = vpop.f32.mrb[0].mxu0
      %v2953 = vadd.f32 %v2856, %v2952
      %v2954 = vpop.f32.mrb[0].mxu0
      %v2955 = vpop.f32.mrb[0].mxu0
      %v2956 = vadd.f32 %v2859, %v2955
      %v2957 = vpop.f32.mrb[0].mxu0
      %2958 = vmatprep.mubr.bf16.mxu0 0
      %2959 = vmatmul.mubr.bf16.gmra.mrb[0].mxu0 %v2607
      %v2960 = vpop.f32.mrb[0].mxu0
      %v2961 = vadd.f32 %v2864, %v2960
      %v2962 = vpop.f32.mrb[0].mxu0
      %v2963 = vpop.f32.mrb[0].mxu0
      %v2964 = vadd.f32 %v2867, %v2963
      %v2965 = vpop.f32.mrb[0].mxu0
      %2966 = vmatprep.mubr.bf16.mxu0 0
      %2967 = vmatmul.mubr.bf16.gmra.mrb[0].mxu0 %v2608
      %v2968 = vpop.f32.mrb[0].mxu0
      %v2969 = vadd.f32 %v2872, %v2968
      %v2970 = vpop.f32.mrb[0].mxu0
      %v2971 = vpop.f32.mrb[0].mxu0
      %v2972 = vadd.f32 %v2875, %v2971
      %v2973 = vpop.f32.mrb[0].mxu0
      %2974 = vmatprep.mubr.bf16.mxu0 0
      %2975 = vmatmul.mubr.bf16.gmra.mrb[0].mxu0 %v2609
      %v2976 = vpop.f32.mrb[0].mxu0
      %v2977 = vadd.f32 %v2880, %v2976
      %v2978 = vpop.f32.mrb[0].mxu0
      %v2979 = vpop.f32.mrb[0].mxu0
      %v2980 = vadd.f32 %v2883, %v2979
      %v2981 = vpop.f32.mrb[0].mxu0
      %2982 = vmatprep.mubr.bf16.mxu0 0
      %2983 = vmatmul.mubr.bf16.gmra.mrb[0].mxu0 %v2610
      %v2984 = vpop.f32.mrb[0].mxu0
      %v2985 = vadd.f32 %v2888, %v2984
      %v2986 = vpop.f32.mrb[0].mxu0
      %v2987 = vpop.f32.mrb[0].mxu0
      %v2988 = vadd.f32 %v2891, %v2987
      %v2989 = vpop.f32.mrb[0].mxu0
      %2990 = vmatprep.mubr.bf16.mxu0 0
      %2991 = vmatmul.mubr.bf16.gmra.mrb[0].mxu0 %v2611
      %v2992 = vpop.f32.mrb[0].mxu0
      %v2993 = vadd.f32 %v2896, %v2992
      %v2994 = vpop.f32.mrb[0].mxu0
      %v2995 = vpop.f32.mrb[0].mxu0
      %v2996 = vadd.f32 %v2899, %v2995
      %v2997 = vpop.f32.mrb[0].mxu0
      %2998 = vdwg.mxu0
      %v2999 = vadd.f32 %v2520, %v2937
      %v3000 = vadd.f32 %v2523, %v2940
      %v3001 = vadd.f32 %v2528, %v2945
      %v3002 = vadd.f32 %v2531, %v2948
      %v3003 = vadd.f32 %v2536, %v2953
      %v3004 = vadd.f32 %v2539, %v2956
      %v3005 = vadd.f32 %v2544, %v2961
      %v3006 = vadd.f32 %v2547, %v2964
      %v3007 = vadd.f32 %v2552, %v2969
      %v3008 = vadd.f32 %v2555, %v2972
      %v3009 = vadd.f32 %v2560, %v2977
      %v3010 = vadd.f32 %v2563, %v2980
      %v3011 = vadd.f32 %v2568, %v2985
      %v3012 = vadd.f32 %v2571, %v2988
      %v3013 = vadd.f32 %v2576, %v2993
      %v3014 = vadd.f32 %v2579, %v2996
      %s3015 = scalar_lea.vmem %s252, 48
      %v3016 = vld [vmem:[%s3015 + $0x1] sm:$0xff]
      %v3017 = vld [vmem:[%s3015 + $0x9] sm:$0xff]
      %v3018 = vld [vmem:[%s3015 + $0x19] sm:$0xff]
      %v3019 = vld [vmem:[%s3015 + $0x21] sm:$0xff]
      %v3020 = vld [vmem:[%s3015 + $0x31] sm:$0xff]
      %v3021 = vld [vmem:[%s3015 + $0x39] sm:$0xff]
      %v3022 = vld [vmem:[%s3015 + $0x49] sm:$0xff]
      %v3023 = vld [vmem:[%s3015 + $0x51] sm:$0xff]
      %v3024 = vld [vmem:[%s3015 + $0x61] sm:$0xff]
      %v3025 = vld [vmem:[%s3015 + $0x69] sm:$0xff]
      %v3026 = vld [vmem:[%s3015 + $0x79] sm:$0xff]
      %v3027 = vld [vmem:[%s3015 + $0x81] sm:$0xff]
      %v3028 = vld [vmem:[%s3015 + $0x91] sm:$0xff]
      %v3029 = vld [vmem:[%s3015 + $0x99] sm:$0xff]
      %v3030 = vld [vmem:[%s3015 + $0xa9] sm:$0xff]
      %v3031 = vld [vmem:[%s3015 + $0xb1] sm:$0xff]
      %v3032 = vld [vmem:[%s4] sm:$0x1]
      %v3034 = vlaneseq
      %v3035 = vshrl.u32 %v3034, 7
      %v3036 = vsub.s32 0, %v3035
      %v3037 = vrot.slane %v3032, %v3036
      %v3039 = vadd.f32 %v2999, %v3037
      %v3040 = vadd.f32 %v3000, %v3037
      %v3041 = vadd.f32 %v3001, %v3037
      %v3042 = vadd.f32 %v3002, %v3037
      %v3043 = vadd.f32 %v3003, %v3037
      %v3044 = vadd.f32 %v3004, %v3037
      %v3045 = vadd.f32 %v3005, %v3037
      %v3046 = vadd.f32 %v3006, %v3037
      %v3047 = vadd.f32 %v3007, %v3037
      %v3048 = vadd.f32 %v3008, %v3037
      %v3049 = vadd.f32 %v3009, %v3037
      %v3050 = vadd.f32 %v3010, %v3037
      %v3051 = vadd.f32 %v3011, %v3037
      %v3052 = vadd.f32 %v3012, %v3037
      %v3053 = vadd.f32 %v3013, %v3037
      %v3054 = vadd.f32 %v3014, %v3037
      %v3055 = vadd.f32 %v3039, %v3016
      %v3056 = vadd.f32 %v3040, %v3017
      %v3057 = vadd.f32 %v3041, %v3018
      %v3058 = vadd.f32 %v3042, %v3019
      %v3059 = vadd.f32 %v3043, %v3020
      %v3060 = vadd.f32 %v3044, %v3021
      %v3061 = vadd.f32 %v3045, %v3022
      %v3062 = vadd.f32 %v3046, %v3023
      %v3063 = vadd.f32 %v3047, %v3024
      %v3064 = vadd.f32 %v3048, %v3025
      %v3065 = vadd.f32 %v3049, %v3026
      %v3066 = vadd.f32 %v3050, %v3027
      %v3067 = vadd.f32 %v3051, %v3028
      %v3068 = vadd.f32 %v3052, %v3029
      %v3069 = vadd.f32 %v3053, %v3030
      %v3070 = vadd.f32 %v3054, %v3031
      %v3071 = vmax.f32 %v3055, 0.0
      %v3072 = vmax.f32 %v3056, 0.0
      %v3073 = vmax.f32 %v3057, 0.0
      %v3074 = vmax.f32 %v3058, 0.0
      %v3075 = vmax.f32 %v3059, 0.0
      %v3076 = vmax.f32 %v3060, 0.0
      %v3077 = vmax.f32 %v3061, 0.0
      %v3078 = vmax.f32 %v3062, 0.0
      %v3079 = vmax.f32 %v3063, 0.0
      %v3080 = vmax.f32 %v3064, 0.0
      %v3081 = vmax.f32 %v3065, 0.0
      %v3082 = vmax.f32 %v3066, 0.0
      %v3083 = vmax.f32 %v3067, 0.0
      %v3084 = vmax.f32 %v3068, 0.0
      %v3085 = vmax.f32 %v3069, 0.0
      %v3086 = vmax.f32 %v3070, 0.0
      %3087 = vst [vmem:[%s262] sm:$0xff] %v3071
      %3088 = vst [vmem:[%s262 + $0x8] sm:$0xff] %v3072
      %3089 = vst [vmem:[%s262 + $0x10] sm:$0xff] %v3073
      %3090 = vst [vmem:[%s262 + $0x18] sm:$0xff] %v3074
      %3091 = vst [vmem:[%s262 + $0x20] sm:$0xff] %v3075
      %3092 = vst [vmem:[%s262 + $0x28] sm:$0xff] %v3076
      %3093 = vst [vmem:[%s262 + $0x30] sm:$0xff] %v3077
      %3094 = vst [vmem:[%s262 + $0x38] sm:$0xff] %v3078
      %3095 = vst [vmem:[%s262 + $0x40] sm:$0xff] %v3079
      %3096 = vst [vmem:[%s262 + $0x48] sm:$0xff] %v3080
      %3097 = vst [vmem:[%s262 + $0x50] sm:$0xff] %v3081
      %3098 = vst [vmem:[%s262 + $0x58] sm:$0xff] %v3082
      %3099 = vst [vmem:[%s262 + $0x60] sm:$0xff] %v3083
      %3100 = vst [vmem:[%s262 + $0x68] sm:$0xff] %v3084
      %3101 = vst [vmem:[%s262 + $0x70] sm:$0xff] %v3085
      %3102 = vst [vmem:[%s262 + $0x78] sm:$0xff] %v3086
      %s3103 = smul.u32 8, %s21
      %p3104 = scmp.lt.s32.totalorder %s20, 1
      %s3105 = scalar_select %p3104, %s20, 1
      %p3106 = scmp.lt.s32.totalorder %s3103, 15
      %s3107 = scalar_select %p3106, %s3103, 15
      %s3108 = smul.addr %s3107, 2
      %s3109 = smul.addr %s3105, 32
      %s3110 = sadd.s32 %s3108, %s3109
      %s3111 = smul.addr %s3110, 8
      %s3112 = scalar_lea.vmem %s5, %s3111
      // Predicated region
      $region49: #{basic_block.1} parent=39 // pred_check
        %p3113 = pneg %p160
      $region50: #{basic_block.1} parent=39 // pred_check_branch
        %3115 = sbr.rel (%p3113) target = $region52
      $region51: #{basic_block.1} parent=39 // pred_region
        %s3116 = smul.u32 8, %s21
      $region52: #{basic_block.1} parent=39 // pred_fallthru
        _
    $region40: #{basic_block.1} parent=5 // pred_fallthru
      _
    %p3117 = scmp.le.s32.totalorder 2, %s11
    // Predicated region
    $region53: #{basic_block.1} parent=5 // pred_check
      %p3118 = pneg %p3117
    $region54: #{basic_block.1} parent=5 // pred_check_branch
      %3120 = sbr.rel (%p3118) target = $region56
    $region55: #{basic_block.1} parent=5 // pred_region
      %s3121 = ssub.s32 %s11, 2
      // Predicated region
      $region57: #{basic_block.1} parent=55 // pred_check
        %p3122 = pneg %p166
      $region58: #{basic_block.1} parent=55 // pred_check_branch
        %3124 = sbr.rel (%p3122) target = $region60
      $region59: #{basic_block.1} parent=55 // pred_region
        %s3125 = smul.u32 8, %s23
        %p3126 = scmp.lt.s32.totalorder %s22, 1
        %s3127 = scalar_select %p3126, %s22, 1
        %p3128 = scmp.lt.s32.totalorder %s3125, 15
        %s3129 = scalar_select %p3128, %s3125, 15
        %s3130 = smul.addr %s3129, 2
        %s3131 = smul.addr %s3127, 32
        %s3132 = sadd.s32 %s3130, %s3131
        %s3133 = smul.addr %s3132, 8
        %s3134 = scalar_lea.vmem %s5, %s3133
      $region60: #{basic_block.1} parent=55 // pred_fallthru
        _
    $region56: #{basic_block.1} parent=5 // pred_fallthru
      _
  $region6: #{basic_block.1} parent=0 // loop_footer
    %s15 = sadd.s32 1, %s11
  $region7: #{basic_block.1} parent=0 // loop_footer_branch
    %10 = sbr.rel target = $region3
  $region8: #{basic_block.1} parent=0 // loop_exit
    _

</llo_original>
